<compile_context>
chip_gen: v7x
topology: tpu7x:2x2x1
jax: 0.10.0
libtpu: 0.0.40
codegen_flags: <defaults>
</compile_context>

<pallas_src>
import math

import jax
import jax.numpy as jnp
from jax.experimental import pallas as pl
from jax.experimental.pallas import tpu as pltpu

N_EMBD = 64
SEQ_LEN = 16
VOCAB_SIZE = 256          # lane-dense (2 x 128) logits slab
N_HEAD = 8
N_LAYER_DECODER = 1
HEAD_DIM = N_EMBD // N_HEAD
LN_EPS = 1e-5             # PyTorch nn.LayerNorm default


def _layernorm(x, w, b):
    mu = jnp.mean(x, axis=-1, keepdims=True)
    var = jnp.mean((x - mu) ** 2, axis=-1, keepdims=True)
    return (x - mu) * jax.lax.rsqrt(var + LN_EPS) * w + b


def _dot(a, b):
    return jnp.dot(a, b, preferred_element_type=jnp.float32)


def _dot_nt(a, b):  # a @ b.T without materializing a transpose
    return jax.lax.dot_general(
        a, b, (((1,), (1,)), ((), ())), preferred_element_type=jnp.float32
    )


def _decoder_block(x, in_w, in_b, out_w, out_b, ln1_w, ln1_b,
                   w1, b1, w2, b2, ln2_w, ln2_b):
    """One TransformerBlock on a (T, E) activation (values, not refs)."""
    T, E = x.shape

    # --- multi-head self-attention (nn.MultiheadAttention semantics) ---
    qkv = _dot(x, in_w) + in_b                      # (T, 3E) = q | k | v
    q = qkv[:, :E] * (1.0 / math.sqrt(HEAD_DIM))    # scale once for all heads
    k = qkv[:, E:2 * E]
    v = qkv[:, 2 * E:]

    # The PyTorch module passes a *bool* tril mask to nn.MultiheadAttention,
    # where True means "not allowed to attend".  We reproduce it exactly: the
    # lower triangle (incl. diagonal) is blocked with -inf, so the fully
    # masked last query row yields NaN, just like PyTorch.  Built once and
    # applied to every head as a single additive bias.
    row = jax.lax.broadcasted_iota(jnp.int32, (T, T), 0)
    col = jax.lax.broadcasted_iota(jnp.int32, (T, T), 1)
    mask_bias = jnp.where(col <= row, -jnp.inf, 0.0)

    # Per-head attention with the out-projection folded into the loop,
    # which removes the 8-way lane concatenate of head outputs (the MXU has
    # plenty of slack for the extra small (T,hd)@(hd,E) matmuls).
    attn = jnp.zeros((T, E), jnp.float32)
    for h in range(N_HEAD):                         # static unroll over heads
        lo = h * HEAD_DIM
        hi = lo + HEAD_DIM
        s = _dot_nt(q[:, lo:hi], k[:, lo:hi]) + mask_bias   # (T, T)
        m = jnp.max(s, axis=-1, keepdims=True)
        p = jnp.exp(s - m)
        # divide -> EUP reciprocal (co-issues with VALU work)
        p = p * pl.reciprocal(jnp.sum(p, axis=-1, keepdims=True), approx=True)
        ctx = _dot(p, v[:, lo:hi])                          # (T, hd)
        attn = attn + _dot(ctx, out_w[lo:hi, :])            # (T, E)
    attn = attn + out_b

    # residual + ln1
    x = _layernorm(x + attn, ln1_w, ln1_b)

    # --- MLP (Linear -> ReLU -> Linear) + residual + ln2 ---
    h1 = jnp.maximum(_dot(x, w1) + b1, 0.0)
    x = _layernorm(x + _dot(h1, w2) + b2, ln2_w, ln2_b)
    return x


def fused_block_head_kernel(
    x_ref,
    in_w_ref, in_b_ref, out_w_ref, out_b_ref, ln1_w_ref, ln1_b_ref,
    w1_ref, b1_ref, w2_ref, b2_ref, ln2_w_ref, ln2_b_ref,
    lnf_w_ref, lnf_b_ref, head_w_ref,
    o_ref,
):
    """Decoder block + final LayerNorm + unembedding, fully fused.

    The intermediate (T, E) activation stays in VMEM/vregs; the only HBM
    output is the lane-dense (T, VOCAB) logits block.
    """
    x = _decoder_block(
        x_ref[...],
        in_w_ref[...], in_b_ref[...], out_w_ref[...], out_b_ref[...],
        ln1_w_ref[...], ln1_b_ref[...],
        w1_ref[...], b1_ref[...], w2_ref[...], b2_ref[...],
        ln2_w_ref[...], ln2_b_ref[...],
    )
    x = _layernorm(x, lnf_w_ref[...], lnf_b_ref[...])
    o_ref[...] = _dot(x, head_w_ref[...])           # (T, V), lane-dense store


def block_only_kernel(
    x_ref,
    in_w_ref, in_b_ref, out_w_ref, out_b_ref, ln1_w_ref, ln1_b_ref,
    w1_ref, b1_ref, w2_ref, b2_ref, ln2_w_ref, ln2_b_ref,
    o_ref,
):
    """Only used for the first N_LAYER_DECODER-1 layers (none at L=1)."""
    o_ref[...] = _decoder_block(
        x_ref[...],
        in_w_ref[...], in_b_ref[...], out_w_ref[...], out_b_ref[...],
        ln1_w_ref[...], ln1_b_ref[...],
        w1_ref[...], b1_ref[...], w2_ref[...], b2_ref[...],
        ln2_w_ref[...], ln2_b_ref[...],
    )


def _const_spec(shape):
    # Whole-array block whose index map is independent of the grid step:
    # Pallas fetches it once and does not re-DMA it on later grid steps.
    return pl.BlockSpec(shape, lambda b: (0,) * len(shape))


_COMPILER_PARAMS = pltpu.CompilerParams(
    dimension_semantics=("parallel",),   # batch shards across the 2 TCs on v7x
    vmem_limit_bytes=32 * 1024 * 1024,
)


def _block_param_specs(E):
    return [
        _const_spec((E, 3 * E)), _const_spec((1, 3 * E)),
        _const_spec((E, E)), _const_spec((1, E)),
        _const_spec((1, E)), _const_spec((1, E)),
        _const_spec((E, 4 * E)), _const_spec((1, 4 * E)),
        _const_spec((4 * E, E)), _const_spec((1, E)),
        _const_spec((1, E)), _const_spec((1, E)),
    ]


def _block_param_values(p):
    return (p["in_w"], p["in_b"], p["out_w"], p["out_b"],
            p["ln1_w"], p["ln1_b"], p["w1"], p["b1"], p["w2"], p["b2"],
            p["ln2_w"], p["ln2_b"])


def transformer_block(x, p):
    B, T, E = x.shape
    return pl.pallas_call(
        block_only_kernel,
        out_shape=jax.ShapeDtypeStruct((B, T, E), jnp.float32),
        grid=(B,),
        in_specs=[pl.BlockSpec((None, T, E), lambda b: (b, 0, 0))]
                 + _block_param_specs(E),
        out_specs=pl.BlockSpec((None, T, E), lambda b: (b, 0, 0)),
        compiler_params=_COMPILER_PARAMS,
    )(x, *_block_param_values(p))


def fused_block_and_head(x, p):
    B, T, E = x.shape
    V = p["head_w"].shape[1]
    in_specs = (
        [pl.BlockSpec((None, T, E), lambda b: (b, 0, 0))]
        + _block_param_specs(E)
        + [_const_spec((1, E)), _const_spec((1, E)),
           # TODO(synk): at the original sizes (E=512, V=50257) tile this
           # (E, V) weight over a "parallel" vocab grid axis (V_TILE ~ 2048)
           # and raise vmem_limit_bytes; at (64, 256) it fits whole.
           _const_spec((E, V))]
    )
    return pl.pallas_call(
        fused_block_head_kernel,
        out_shape=jax.ShapeDtypeStruct((B, T, V), jnp.float32),
        grid=(B,),
        in_specs=in_specs,
        out_specs=pl.BlockSpec((None, T, V), lambda b: (b, 0, 0)),
        compiler_params=_COMPILER_PARAMS,
    )(x, *_block_param_values(p), p["lnf_w"], p["lnf_b"], p["head_w"])


def babyjoey_forward(tokens, p):
    # Embedding lookup is glue (gather) done in plain JAX; every matmul /
    # softmax / layernorm hot path runs inside the fused Pallas kernel.
    B, T = tokens.shape
    tok = jnp.take(p["tok_emb"], tokens, axis=0)             # (B, T, E)
    pos = jnp.take(p["pos_emb"], jnp.arange(T), axis=0)      # (T, E)
    x = tok + pos[None, :, :]
    # With N_LAYER_DECODER == 1 only the fused (block + ln_f + head) kernel
    # runs; extra layers would use the block-only kernel first.
    for _ in range(N_LAYER_DECODER - 1):
        x = transformer_block(x, p)
    return fused_block_and_head(x, p)


def init_params(key):
    ks = jax.random.split(key, 8)
    s = 0.02
    f32 = jnp.float32
    p = {
        "tok_emb": jax.random.normal(ks[0], (VOCAB_SIZE, N_EMBD), f32) * s,
        "pos_emb": jax.random.normal(ks[1], (SEQ_LEN, N_EMBD), f32) * s,
        # attention: in_proj (E, 3E) and out_proj (E, E), already (in, out)
        "in_w": jax.random.normal(ks[2], (N_EMBD, 3 * N_EMBD), f32) * s,
        "in_b": jnp.zeros((1, 3 * N_EMBD), f32),
        "out_w": jax.random.normal(ks[3], (N_EMBD, N_EMBD), f32) * s,
        "out_b": jnp.zeros((1, N_EMBD), f32),
        "ln1_w": jnp.ones((1, N_EMBD), f32),
        "ln1_b": jnp.zeros((1, N_EMBD), f32),
        "w1": jax.random.normal(ks[4], (N_EMBD, 4 * N_EMBD), f32) * s,
        "b1": jnp.zeros((1, 4 * N_EMBD), f32),
        "w2": jax.random.normal(ks[5], (4 * N_EMBD, N_EMBD), f32) * s,
        "b2": jnp.zeros((1, N_EMBD), f32),
        "ln2_w": jnp.ones((1, N_EMBD), f32),
        "ln2_b": jnp.zeros((1, N_EMBD), f32),
        "lnf_w": jnp.ones((1, N_EMBD), f32),
        "lnf_b": jnp.zeros((1, N_EMBD), f32),
        "head_w": jax.random.normal(ks[6], (N_EMBD, VOCAB_SIZE), f32) * s,
    }
    return p


if __name__ == "__main__":
    key = jax.random.PRNGKey(0)
    params = init_params(key)
    tokens = jax.random.randint(
        jax.random.fold_in(key, 1), (2, SEQ_LEN), 0, VOCAB_SIZE, dtype=jnp.int32
    )
    logits = jax.jit(babyjoey_forward)(tokens, params)
    jax.block_until_ready(logits)
    assert logits.shape == (2, SEQ_LEN, VOCAB_SIZE)
    print("KERNEL_OK")
</pallas_src>

<mosaic_0001>
module attributes {stable_mosaic.version = 11 : i64} {
  func.func @fused_block_head_kernel(%arg0: i32, %arg1: memref<1x16x64xf32, #tpu.memory_space<vmem>>, %arg2: memref<64x192xf32, #tpu.memory_space<vmem>>, %arg3: memref<1x192xf32, #tpu.memory_space<vmem>>, %arg4: memref<64x64xf32, #tpu.memory_space<vmem>>, %arg5: memref<1x64xf32, #tpu.memory_space<vmem>>, %arg6: memref<1x64xf32, #tpu.memory_space<vmem>>, %arg7: memref<1x64xf32, #tpu.memory_space<vmem>>, %arg8: memref<64x256xf32, #tpu.memory_space<vmem>>, %arg9: memref<1x256xf32, #tpu.memory_space<vmem>>, %arg10: memref<256x64xf32, #tpu.memory_space<vmem>>, %arg11: memref<1x64xf32, #tpu.memory_space<vmem>>, %arg12: memref<1x64xf32, #tpu.memory_space<vmem>>, %arg13: memref<1x64xf32, #tpu.memory_space<vmem>>, %arg14: memref<1x64xf32, #tpu.memory_space<vmem>>, %arg15: memref<1x64xf32, #tpu.memory_space<vmem>>, %arg16: memref<64x256xf32, #tpu.memory_space<vmem>>, %arg17: memref<1x16x256xf32, #tpu.memory_space<vmem>>) attributes {dimension_semantics = [#tpu.dimension_semantics<parallel>], iteration_bounds = array<i64: 2>, scalar_prefetch = 0 : i64, scratch_operands = 0 : i64, tpu.core_type = #tpu.core_type<tc>, window_params = [{transform_indices = @transform_0, window_bounds = array<i64: 1, 16, 64>}, {pipeline_mode = #tpu.pipeline_mode<synchronous>, transform_indices = @transform_1, window_bounds = array<i64: 64, 192>}, {pipeline_mode = #tpu.pipeline_mode<synchronous>, transform_indices = @transform_2, window_bounds = array<i64: 1, 192>}, {pipeline_mode = #tpu.pipeline_mode<synchronous>, transform_indices = @transform_3, window_bounds = array<i64: 64, 64>}, {pipeline_mode = #tpu.pipeline_mode<synchronous>, transform_indices = @transform_4, window_bounds = array<i64: 1, 64>}, {pipeline_mode = #tpu.pipeline_mode<synchronous>, transform_indices = @transform_5, window_bounds = array<i64: 1, 64>}, {pipeline_mode = #tpu.pipeline_mode<synchronous>, transform_indices = @transform_6, window_bounds = array<i64: 1, 64>}, {pipeline_mode = #tpu.pipeline_mode<synchronous>, transform_indices = @transform_7, window_bounds = array<i64: 64, 256>}, {pipeline_mode = #tpu.pipeline_mode<synchronous>, transform_indices = @transform_8, window_bounds = array<i64: 1, 256>}, {pipeline_mode = #tpu.pipeline_mode<synchronous>, transform_indices = @transform_9, window_bounds = array<i64: 256, 64>}, {pipeline_mode = #tpu.pipeline_mode<synchronous>, transform_indices = @transform_10, window_bounds = array<i64: 1, 64>}, {pipeline_mode = #tpu.pipeline_mode<synchronous>, transform_indices = @transform_11, window_bounds = array<i64: 1, 64>}, {pipeline_mode = #tpu.pipeline_mode<synchronous>, transform_indices = @transform_12, window_bounds = array<i64: 1, 64>}, {pipeline_mode = #tpu.pipeline_mode<synchronous>, transform_indices = @transform_13, window_bounds = array<i64: 1, 64>}, {pipeline_mode = #tpu.pipeline_mode<synchronous>, transform_indices = @transform_14, window_bounds = array<i64: 1, 64>}, {pipeline_mode = #tpu.pipeline_mode<synchronous>, transform_indices = @transform_15, window_bounds = array<i64: 64, 256>}, {transform_indices = @transform_16, window_bounds = array<i64: 1, 16, 256>}]} {
    %c0 = arith.constant 0 : index
    %c0_0 = arith.constant 0 : index
    %c0_1 = arith.constant 0 : index
    %0 = vector.load %arg1[%c0, %c0_0, %c0_1] : memref<1x16x64xf32, #tpu.memory_space<vmem>>, vector<1x16x64xf32>
    %1 = vector.shape_cast %0 : vector<1x16x64xf32> to vector<16x64xf32>
    %c0_2 = arith.constant 0 : index
    %c0_3 = arith.constant 0 : index
    %2 = vector.load %arg2[%c0_2, %c0_3] : memref<64x192xf32, #tpu.memory_space<vmem>>, vector<64x192xf32>
    %c0_4 = arith.constant 0 : index
    %c0_5 = arith.constant 0 : index
    %3 = vector.load %arg3[%c0_4, %c0_5] : memref<1x192xf32, #tpu.memory_space<vmem>>, vector<1x192xf32>
    %c0_6 = arith.constant 0 : index
    %c0_7 = arith.constant 0 : index
    %4 = vector.load %arg4[%c0_6, %c0_7] : memref<64x64xf32, #tpu.memory_space<vmem>>, vector<64x64xf32>
    %c0_8 = arith.constant 0 : index
    %c0_9 = arith.constant 0 : index
    %5 = vector.load %arg5[%c0_8, %c0_9] : memref<1x64xf32, #tpu.memory_space<vmem>>, vector<1x64xf32>
    %c0_10 = arith.constant 0 : index
    %c0_11 = arith.constant 0 : index
    %6 = vector.load %arg6[%c0_10, %c0_11] : memref<1x64xf32, #tpu.memory_space<vmem>>, vector<1x64xf32>
    %c0_12 = arith.constant 0 : index
    %c0_13 = arith.constant 0 : index
    %7 = vector.load %arg7[%c0_12, %c0_13] : memref<1x64xf32, #tpu.memory_space<vmem>>, vector<1x64xf32>
    %c0_14 = arith.constant 0 : index
    %c0_15 = arith.constant 0 : index
    %8 = vector.load %arg8[%c0_14, %c0_15] : memref<64x256xf32, #tpu.memory_space<vmem>>, vector<64x256xf32>
    %c0_16 = arith.constant 0 : index
    %c0_17 = arith.constant 0 : index
    %9 = vector.load %arg9[%c0_16, %c0_17] : memref<1x256xf32, #tpu.memory_space<vmem>>, vector<1x256xf32>
    %c0_18 = arith.constant 0 : index
    %c0_19 = arith.constant 0 : index
    %10 = vector.load %arg10[%c0_18, %c0_19] : memref<256x64xf32, #tpu.memory_space<vmem>>, vector<256x64xf32>
    %c0_20 = arith.constant 0 : index
    %c0_21 = arith.constant 0 : index
    %11 = vector.load %arg11[%c0_20, %c0_21] : memref<1x64xf32, #tpu.memory_space<vmem>>, vector<1x64xf32>
    %c0_22 = arith.constant 0 : index
    %c0_23 = arith.constant 0 : index
    %12 = vector.load %arg12[%c0_22, %c0_23] : memref<1x64xf32, #tpu.memory_space<vmem>>, vector<1x64xf32>
    %c0_24 = arith.constant 0 : index
    %c0_25 = arith.constant 0 : index
    %13 = vector.load %arg13[%c0_24, %c0_25] : memref<1x64xf32, #tpu.memory_space<vmem>>, vector<1x64xf32>
    %cst = arith.constant dense<0.000000e+00> : vector<16x192xf32>
    %14 = tpu.matmul %1, %2, %cst {dimension_numbers = #tpu.dot_dimension_numbers<[1], [0], [0], [1], [0, 0, 1, 1], [], []>} : vector<16x64xf32>, vector<64x192xf32>, vector<16x192xf32> -> vector<16x192xf32>
    %15 = vector.broadcast %3 : vector<1x192xf32> to vector<16x192xf32>
    %16 = arith.addf %14, %15 : vector<16x192xf32>
    %17 = vector.extract_strided_slice %16 {offsets = [0, 0], sizes = [16, 64], strides = [1, 1]} : vector<16x192xf32> to vector<16x64xf32>
    %cst_26 = arith.constant 0.353553385 : f32
    %18 = vector.broadcast %cst_26 : f32 to vector<16x64xf32>
    %19 = arith.mulf %17, %18 : vector<16x64xf32>
    %20 = vector.extract_strided_slice %16 {offsets = [0, 64], sizes = [16, 64], strides = [1, 1]} : vector<16x192xf32> to vector<16x64xf32>
    %21 = vector.extract_strided_slice %16 {offsets = [0, 128], sizes = [16, 64], strides = [1, 1]} : vector<16x192xf32> to vector<16x64xf32>
    %22 = tpu.iota {dimensions = array<i32: 0>} : vector<16x16xi32>
    %23 = tpu.iota {dimensions = array<i32: 1>} : vector<16x16xi32>
    %24 = arith.cmpi sle, %23, %22 : vector<16x16xi32>
    %cst_27 = arith.constant 0xFF800000 : f32
    %cst_28 = arith.constant 0.000000e+00 : f32
    %25 = vector.broadcast %cst_27 : f32 to vector<16x16xf32>
    %26 = vector.broadcast %cst_28 : f32 to vector<16x16xf32>
    %27 = arith.select %24, %25, %26 : vector<16x16xi1>, vector<16x16xf32>
    %cst_29 = arith.constant 0.000000e+00 : f32
    %28 = vector.broadcast %cst_29 : f32 to vector<16x64xf32>
    %29 = vector.extract_strided_slice %19 {offsets = [0, 0], sizes = [16, 8], strides = [1, 1]} : vector<16x64xf32> to vector<16x8xf32>
    %30 = vector.extract_strided_slice %20 {offsets = [0, 0], sizes = [16, 8], strides = [1, 1]} : vector<16x64xf32> to vector<16x8xf32>
    %cst_30 = arith.constant dense<0.000000e+00> : vector<16x16xf32>
    %31 = tpu.matmul %29, %30, %cst_30 {dimension_numbers = #tpu.dot_dimension_numbers<[1], [1], [0], [0], [0, 0, 1, 0], [], []>} : vector<16x8xf32>, vector<16x8xf32>, vector<16x16xf32> -> vector<16x16xf32>
    %32 = arith.addf %31, %27 : vector<16x16xf32>
    %cst_31 = arith.constant dense<0xFF800000> : vector<16xf32>
    %33 = vector.multi_reduction <maximumf>, %32, %cst_31 [1] : vector<16x16xf32> to vector<16xf32>
    %34 = vector.shape_cast %33 : vector<16xf32> to vector<16x1xf32>
    %35 = vector.broadcast %34 : vector<16x1xf32> to vector<16x16xf32>
    %36 = arith.subf %32, %35 : vector<16x16xf32>
    %37 = math.exp %36 : vector<16x16xf32>
    %cst_32 = arith.constant dense<0.000000e+00> : vector<16xf32>
    %38 = vector.multi_reduction <add>, %37, %cst_32 [1] : vector<16x16xf32> to vector<16xf32>
    %39 = vector.shape_cast %38 : vector<16xf32> to vector<16x1xf32>
    %40 = tpu.reciprocal %39 {approx = true} : vector<16x1xf32> -> vector<16x1xf32>
    %41 = vector.broadcast %40 : vector<16x1xf32> to vector<16x16xf32>
    %42 = arith.mulf %37, %41 : vector<16x16xf32>
    %43 = vector.extract_strided_slice %21 {offsets = [0, 0], sizes = [16, 8], strides = [1, 1]} : vector<16x64xf32> to vector<16x8xf32>
    %cst_33 = arith.constant dense<0.000000e+00> : vector<16x8xf32>
    %44 = tpu.matmul %42, %43, %cst_33 {dimension_numbers = #tpu.dot_dimension_numbers<[1], [0], [0], [1], [0, 0, 1, 1], [], []>} : vector<16x16xf32>, vector<16x8xf32>, vector<16x8xf32> -> vector<16x8xf32>
    %45 = vector.extract_strided_slice %4 {offsets = [0, 0], sizes = [8, 64], strides = [1, 1]} : vector<64x64xf32> to vector<8x64xf32>
    %cst_34 = arith.constant dense<0.000000e+00> : vector<16x64xf32>
    %46 = tpu.matmul %44, %45, %cst_34 {dimension_numbers = #tpu.dot_dimension_numbers<[1], [0], [0], [1], [0, 0, 1, 1], [], []>} : vector<16x8xf32>, vector<8x64xf32>, vector<16x64xf32> -> vector<16x64xf32>
    %47 = arith.addf %28, %46 : vector<16x64xf32>
    %48 = vector.extract_strided_slice %19 {offsets = [0, 8], sizes = [16, 8], strides = [1, 1]} : vector<16x64xf32> to vector<16x8xf32>
    %49 = vector.extract_strided_slice %20 {offsets = [0, 8], sizes = [16, 8], strides = [1, 1]} : vector<16x64xf32> to vector<16x8xf32>
    %cst_35 = arith.constant dense<0.000000e+00> : vector<16x16xf32>
    %50 = tpu.matmul %48, %49, %cst_35 {dimension_numbers = #tpu.dot_dimension_numbers<[1], [1], [0], [0], [0, 0, 1, 0], [], []>} : vector<16x8xf32>, vector<16x8xf32>, vector<16x16xf32> -> vector<16x16xf32>
    %51 = arith.addf %50, %27 : vector<16x16xf32>
    %cst_36 = arith.constant dense<0xFF800000> : vector<16xf32>
    %52 = vector.multi_reduction <maximumf>, %51, %cst_36 [1] : vector<16x16xf32> to vector<16xf32>
    %53 = vector.shape_cast %52 : vector<16xf32> to vector<16x1xf32>
    %54 = vector.broadcast %53 : vector<16x1xf32> to vector<16x16xf32>
    %55 = arith.subf %51, %54 : vector<16x16xf32>
    %56 = math.exp %55 : vector<16x16xf32>
    %cst_37 = arith.constant dense<0.000000e+00> : vector<16xf32>
    %57 = vector.multi_reduction <add>, %56, %cst_37 [1] : vector<16x16xf32> to vector<16xf32>
    %58 = vector.shape_cast %57 : vector<16xf32> to vector<16x1xf32>
    %59 = tpu.reciprocal %58 {approx = true} : vector<16x1xf32> -> vector<16x1xf32>
    %60 = vector.broadcast %59 : vector<16x1xf32> to vector<16x16xf32>
    %61 = arith.mulf %56, %60 : vector<16x16xf32>
    %62 = vector.extract_strided_slice %21 {offsets = [0, 8], sizes = [16, 8], strides = [1, 1]} : vector<16x64xf32> to vector<16x8xf32>
    %cst_38 = arith.constant dense<0.000000e+00> : vector<16x8xf32>
    %63 = tpu.matmul %61, %62, %cst_38 {dimension_numbers = #tpu.dot_dimension_numbers<[1], [0], [0], [1], [0, 0, 1, 1], [], []>} : vector<16x16xf32>, vector<16x8xf32>, vector<16x8xf32> -> vector<16x8xf32>
    %64 = vector.extract_strided_slice %4 {offsets = [8, 0], sizes = [8, 64], strides = [1, 1]} : vector<64x64xf32> to vector<8x64xf32>
    %cst_39 = arith.constant dense<0.000000e+00> : vector<16x64xf32>
    %65 = tpu.matmul %63, %64, %cst_39 {dimension_numbers = #tpu.dot_dimension_numbers<[1], [0], [0], [1], [0, 0, 1, 1], [], []>} : vector<16x8xf32>, vector<8x64xf32>, vector<16x64xf32> -> vector<16x64xf32>
    %66 = arith.addf %47, %65 : vector<16x64xf32>
    %67 = vector.extract_strided_slice %19 {offsets = [0, 16], sizes = [16, 8], strides = [1, 1]} : vector<16x64xf32> to vector<16x8xf32>
    %68 = vector.extract_strided_slice %20 {offsets = [0, 16], sizes = [16, 8], strides = [1, 1]} : vector<16x64xf32> to vector<16x8xf32>
    %cst_40 = arith.constant dense<0.000000e+00> : vector<16x16xf32>
    %69 = tpu.matmul %67, %68, %cst_40 {dimension_numbers = #tpu.dot_dimension_numbers<[1], [1], [0], [0], [0, 0, 1, 0], [], []>} : vector<16x8xf32>, vector<16x8xf32>, vector<16x16xf32> -> vector<16x16xf32>
    %70 = arith.addf %69, %27 : vector<16x16xf32>
    %cst_41 = arith.constant dense<0xFF800000> : vector<16xf32>
    %71 = vector.multi_reduction <maximumf>, %70, %cst_41 [1] : vector<16x16xf32> to vector<16xf32>
    %72 = vector.shape_cast %71 : vector<16xf32> to vector<16x1xf32>
    %73 = vector.broadcast %72 : vector<16x1xf32> to vector<16x16xf32>
    %74 = arith.subf %70, %73 : vector<16x16xf32>
    %75 = math.exp %74 : vector<16x16xf32>
    %cst_42 = arith.constant dense<0.000000e+00> : vector<16xf32>
    %76 = vector.multi_reduction <add>, %75, %cst_42 [1] : vector<16x16xf32> to vector<16xf32>
    %77 = vector.shape_cast %76 : vector<16xf32> to vector<16x1xf32>
    %78 = tpu.reciprocal %77 {approx = true} : vector<16x1xf32> -> vector<16x1xf32>
    %79 = vector.broadcast %78 : vector<16x1xf32> to vector<16x16xf32>
    %80 = arith.mulf %75, %79 : vector<16x16xf32>
    %81 = vector.extract_strided_slice %21 {offsets = [0, 16], sizes = [16, 8], strides = [1, 1]} : vector<16x64xf32> to vector<16x8xf32>
    %cst_43 = arith.constant dense<0.000000e+00> : vector<16x8xf32>
    %82 = tpu.matmul %80, %81, %cst_43 {dimension_numbers = #tpu.dot_dimension_numbers<[1], [0], [0], [1], [0, 0, 1, 1], [], []>} : vector<16x16xf32>, vector<16x8xf32>, vector<16x8xf32> -> vector<16x8xf32>
    %83 = vector.extract_strided_slice %4 {offsets = [16, 0], sizes = [8, 64], strides = [1, 1]} : vector<64x64xf32> to vector<8x64xf32>
    %cst_44 = arith.constant dense<0.000000e+00> : vector<16x64xf32>
    %84 = tpu.matmul %82, %83, %cst_44 {dimension_numbers = #tpu.dot_dimension_numbers<[1], [0], [0], [1], [0, 0, 1, 1], [], []>} : vector<16x8xf32>, vector<8x64xf32>, vector<16x64xf32> -> vector<16x64xf32>
    %85 = arith.addf %66, %84 : vector<16x64xf32>
    %86 = vector.extract_strided_slice %19 {offsets = [0, 24], sizes = [16, 8], strides = [1, 1]} : vector<16x64xf32> to vector<16x8xf32>
    %87 = vector.extract_strided_slice %20 {offsets = [0, 24], sizes = [16, 8], strides = [1, 1]} : vector<16x64xf32> to vector<16x8xf32>
    %cst_45 = arith.constant dense<0.000000e+00> : vector<16x16xf32>
    %88 = tpu.matmul %86, %87, %cst_45 {dimension_numbers = #tpu.dot_dimension_numbers<[1], [1], [0], [0], [0, 0, 1, 0], [], []>} : vector<16x8xf32>, vector<16x8xf32>, vector<16x16xf32> -> vector<16x16xf32>
    %89 = arith.addf %88, %27 : vector<16x16xf32>
    %cst_46 = arith.constant dense<0xFF800000> : vector<16xf32>
    %90 = vector.multi_reduction <maximumf>, %89, %cst_46 [1] : vector<16x16xf32> to vector<16xf32>
    %91 = vector.shape_cast %90 : vector<16xf32> to vector<16x1xf32>
    %92 = vector.broadcast %91 : vector<16x1xf32> to vector<16x16xf32>
    %93 = arith.subf %89, %92 : vector<16x16xf32>
    %94 = math.exp %93 : vector<16x16xf32>
    %cst_47 = arith.constant dense<0.000000e+00> : vector<16xf32>
    %95 = vector.multi_reduction <add>, %94, %cst_47 [1] : vector<16x16xf32> to vector<16xf32>
    %96 = vector.shape_cast %95 : vector<16xf32> to vector<16x1xf32>
    %97 = tpu.reciprocal %96 {approx = true} : vector<16x1xf32> -> vector<16x1xf32>
    %98 = vector.broadcast %97 : vector<16x1xf32> to vector<16x16xf32>
    %99 = arith.mulf %94, %98 : vector<16x16xf32>
    %100 = vector.extract_strided_slice %21 {offsets = [0, 24], sizes = [16, 8], strides = [1, 1]} : vector<16x64xf32> to vector<16x8xf32>
    %cst_48 = arith.constant dense<0.000000e+00> : vector<16x8xf32>
    %101 = tpu.matmul %99, %100, %cst_48 {dimension_numbers = #tpu.dot_dimension_numbers<[1], [0], [0], [1], [0, 0, 1, 1], [], []>} : vector<16x16xf32>, vector<16x8xf32>, vector<16x8xf32> -> vector<16x8xf32>
    %102 = vector.extract_strided_slice %4 {offsets = [24, 0], sizes = [8, 64], strides = [1, 1]} : vector<64x64xf32> to vector<8x64xf32>
    %cst_49 = arith.constant dense<0.000000e+00> : vector<16x64xf32>
    %103 = tpu.matmul %101, %102, %cst_49 {dimension_numbers = #tpu.dot_dimension_numbers<[1], [0], [0], [1], [0, 0, 1, 1], [], []>} : vector<16x8xf32>, vector<8x64xf32>, vector<16x64xf32> -> vector<16x64xf32>
    %104 = arith.addf %85, %103 : vector<16x64xf32>
    %105 = vector.extract_strided_slice %19 {offsets = [0, 32], sizes = [16, 8], strides = [1, 1]} : vector<16x64xf32> to vector<16x8xf32>
    %106 = vector.extract_strided_slice %20 {offsets = [0, 32], sizes = [16, 8], strides = [1, 1]} : vector<16x64xf32> to vector<16x8xf32>
    %cst_50 = arith.constant dense<0.000000e+00> : vector<16x16xf32>
    %107 = tpu.matmul %105, %106, %cst_50 {dimension_numbers = #tpu.dot_dimension_numbers<[1], [1], [0], [0], [0, 0, 1, 0], [], []>} : vector<16x8xf32>, vector<16x8xf32>, vector<16x16xf32> -> vector<16x16xf32>
    %108 = arith.addf %107, %27 : vector<16x16xf32>
    %cst_51 = arith.constant dense<0xFF800000> : vector<16xf32>
    %109 = vector.multi_reduction <maximumf>, %108, %cst_51 [1] : vector<16x16xf32> to vector<16xf32>
    %110 = vector.shape_cast %109 : vector<16xf32> to vector<16x1xf32>
    %111 = vector.broadcast %110 : vector<16x1xf32> to vector<16x16xf32>
    %112 = arith.subf %108, %111 : vector<16x16xf32>
    %113 = math.exp %112 : vector<16x16xf32>
    %cst_52 = arith.constant dense<0.000000e+00> : vector<16xf32>
    %114 = vector.multi_reduction <add>, %113, %cst_52 [1] : vector<16x16xf32> to vector<16xf32>
    %115 = vector.shape_cast %114 : vector<16xf32> to vector<16x1xf32>
    %116 = tpu.reciprocal %115 {approx = true} : vector<16x1xf32> -> vector<16x1xf32>
    %117 = vector.broadcast %116 : vector<16x1xf32> to vector<16x16xf32>
    %118 = arith.mulf %113, %117 : vector<16x16xf32>
    %119 = vector.extract_strided_slice %21 {offsets = [0, 32], sizes = [16, 8], strides = [1, 1]} : vector<16x64xf32> to vector<16x8xf32>
    %cst_53 = arith.constant dense<0.000000e+00> : vector<16x8xf32>
    %120 = tpu.matmul %118, %119, %cst_53 {dimension_numbers = #tpu.dot_dimension_numbers<[1], [0], [0], [1], [0, 0, 1, 1], [], []>} : vector<16x16xf32>, vector<16x8xf32>, vector<16x8xf32> -> vector<16x8xf32>
    %121 = vector.extract_strided_slice %4 {offsets = [32, 0], sizes = [8, 64], strides = [1, 1]} : vector<64x64xf32> to vector<8x64xf32>
    %cst_54 = arith.constant dense<0.000000e+00> : vector<16x64xf32>
    %122 = tpu.matmul %120, %121, %cst_54 {dimension_numbers = #tpu.dot_dimension_numbers<[1], [0], [0], [1], [0, 0, 1, 1], [], []>} : vector<16x8xf32>, vector<8x64xf32>, vector<16x64xf32> -> vector<16x64xf32>
    %123 = arith.addf %104, %122 : vector<16x64xf32>
    %124 = vector.extract_strided_slice %19 {offsets = [0, 40], sizes = [16, 8], strides = [1, 1]} : vector<16x64xf32> to vector<16x8xf32>
    %125 = vector.extract_strided_slice %20 {offsets = [0, 40], sizes = [16, 8], strides = [1, 1]} : vector<16x64xf32> to vector<16x8xf32>
    %cst_55 = arith.constant dense<0.000000e+00> : vector<16x16xf32>
    %126 = tpu.matmul %124, %125, %cst_55 {dimension_numbers = #tpu.dot_dimension_numbers<[1], [1], [0], [0], [0, 0, 1, 0], [], []>} : vector<16x8xf32>, vector<16x8xf32>, vector<16x16xf32> -> vector<16x16xf32>
    %127 = arith.addf %126, %27 : vector<16x16xf32>
    %cst_56 = arith.constant dense<0xFF800000> : vector<16xf32>
    %128 = vector.multi_reduction <maximumf>, %127, %cst_56 [1] : vector<16x16xf32> to vector<16xf32>
    %129 = vector.shape_cast %128 : vector<16xf32> to vector<16x1xf32>
    %130 = vector.broadcast %129 : vector<16x1xf32> to vector<16x16xf32>
    %131 = arith.subf %127, %130 : vector<16x16xf32>
    %132 = math.exp %131 : vector<16x16xf32>
    %cst_57 = arith.constant dense<0.000000e+00> : vector<16xf32>
    %133 = vector.multi_reduction <add>, %132, %cst_57 [1] : vector<16x16xf32> to vector<16xf32>
    %134 = vector.shape_cast %133 : vector<16xf32> to vector<16x1xf32>
    %135 = tpu.reciprocal %134 {approx = true} : vector<16x1xf32> -> vector<16x1xf32>
    %136 = vector.broadcast %135 : vector<16x1xf32> to vector<16x16xf32>
    %137 = arith.mulf %132, %136 : vector<16x16xf32>
    %138 = vector.extract_strided_slice %21 {offsets = [0, 40], sizes = [16, 8], strides = [1, 1]} : vector<16x64xf32> to vector<16x8xf32>
    %cst_58 = arith.constant dense<0.000000e+00> : vector<16x8xf32>
    %139 = tpu.matmul %137, %138, %cst_58 {dimension_numbers = #tpu.dot_dimension_numbers<[1], [0], [0], [1], [0, 0, 1, 1], [], []>} : vector<16x16xf32>, vector<16x8xf32>, vector<16x8xf32> -> vector<16x8xf32>
    %140 = vector.extract_strided_slice %4 {offsets = [40, 0], sizes = [8, 64], strides = [1, 1]} : vector<64x64xf32> to vector<8x64xf32>
    %cst_59 = arith.constant dense<0.000000e+00> : vector<16x64xf32>
    %141 = tpu.matmul %139, %140, %cst_59 {dimension_numbers = #tpu.dot_dimension_numbers<[1], [0], [0], [1], [0, 0, 1, 1], [], []>} : vector<16x8xf32>, vector<8x64xf32>, vector<16x64xf32> -> vector<16x64xf32>
    %142 = arith.addf %123, %141 : vector<16x64xf32>
    %143 = vector.extract_strided_slice %19 {offsets = [0, 48], sizes = [16, 8], strides = [1, 1]} : vector<16x64xf32> to vector<16x8xf32>
    %144 = vector.extract_strided_slice %20 {offsets = [0, 48], sizes = [16, 8], strides = [1, 1]} : vector<16x64xf32> to vector<16x8xf32>
    %cst_60 = arith.constant dense<0.000000e+00> : vector<16x16xf32>
    %145 = tpu.matmul %143, %144, %cst_60 {dimension_numbers = #tpu.dot_dimension_numbers<[1], [1], [0], [0], [0, 0, 1, 0], [], []>} : vector<16x8xf32>, vector<16x8xf32>, vector<16x16xf32> -> vector<16x16xf32>
    %146 = arith.addf %145, %27 : vector<16x16xf32>
    %cst_61 = arith.constant dense<0xFF800000> : vector<16xf32>
    %147 = vector.multi_reduction <maximumf>, %146, %cst_61 [1] : vector<16x16xf32> to vector<16xf32>
    %148 = vector.shape_cast %147 : vector<16xf32> to vector<16x1xf32>
    %149 = vector.broadcast %148 : vector<16x1xf32> to vector<16x16xf32>
    %150 = arith.subf %146, %149 : vector<16x16xf32>
    %151 = math.exp %150 : vector<16x16xf32>
    %cst_62 = arith.constant dense<0.000000e+00> : vector<16xf32>
    %152 = vector.multi_reduction <add>, %151, %cst_62 [1] : vector<16x16xf32> to vector<16xf32>
    %153 = vector.shape_cast %152 : vector<16xf32> to vector<16x1xf32>
    %154 = tpu.reciprocal %153 {approx = true} : vector<16x1xf32> -> vector<16x1xf32>
    %155 = vector.broadcast %154 : vector<16x1xf32> to vector<16x16xf32>
    %156 = arith.mulf %151, %155 : vector<16x16xf32>
    %157 = vector.extract_strided_slice %21 {offsets = [0, 48], sizes = [16, 8], strides = [1, 1]} : vector<16x64xf32> to vector<16x8xf32>
    %cst_63 = arith.constant dense<0.000000e+00> : vector<16x8xf32>
    %158 = tpu.matmul %156, %157, %cst_63 {dimension_numbers = #tpu.dot_dimension_numbers<[1], [0], [0], [1], [0, 0, 1, 1], [], []>} : vector<16x16xf32>, vector<16x8xf32>, vector<16x8xf32> -> vector<16x8xf32>
    %159 = vector.extract_strided_slice %4 {offsets = [48, 0], sizes = [8, 64], strides = [1, 1]} : vector<64x64xf32> to vector<8x64xf32>
    %cst_64 = arith.constant dense<0.000000e+00> : vector<16x64xf32>
    %160 = tpu.matmul %158, %159, %cst_64 {dimension_numbers = #tpu.dot_dimension_numbers<[1], [0], [0], [1], [0, 0, 1, 1], [], []>} : vector<16x8xf32>, vector<8x64xf32>, vector<16x64xf32> -> vector<16x64xf32>
    %161 = arith.addf %142, %160 : vector<16x64xf32>
    %162 = vector.extract_strided_slice %19 {offsets = [0, 56], sizes = [16, 8], strides = [1, 1]} : vector<16x64xf32> to vector<16x8xf32>
    %163 = vector.extract_strided_slice %20 {offsets = [0, 56], sizes = [16, 8], strides = [1, 1]} : vector<16x64xf32> to vector<16x8xf32>
    %cst_65 = arith.constant dense<0.000000e+00> : vector<16x16xf32>
    %164 = tpu.matmul %162, %163, %cst_65 {dimension_numbers = #tpu.dot_dimension_numbers<[1], [1], [0], [0], [0, 0, 1, 0], [], []>} : vector<16x8xf32>, vector<16x8xf32>, vector<16x16xf32> -> vector<16x16xf32>
    %165 = arith.addf %164, %27 : vector<16x16xf32>
    %cst_66 = arith.constant dense<0xFF800000> : vector<16xf32>
    %166 = vector.multi_reduction <maximumf>, %165, %cst_66 [1] : vector<16x16xf32> to vector<16xf32>
    %167 = vector.shape_cast %166 : vector<16xf32> to vector<16x1xf32>
    %168 = vector.broadcast %167 : vector<16x1xf32> to vector<16x16xf32>
    %169 = arith.subf %165, %168 : vector<16x16xf32>
    %170 = math.exp %169 : vector<16x16xf32>
    %cst_67 = arith.constant dense<0.000000e+00> : vector<16xf32>
    %171 = vector.multi_reduction <add>, %170, %cst_67 [1] : vector<16x16xf32> to vector<16xf32>
    %172 = vector.shape_cast %171 : vector<16xf32> to vector<16x1xf32>
    %173 = tpu.reciprocal %172 {approx = true} : vector<16x1xf32> -> vector<16x1xf32>
    %174 = vector.broadcast %173 : vector<16x1xf32> to vector<16x16xf32>
    %175 = arith.mulf %170, %174 : vector<16x16xf32>
    %176 = vector.extract_strided_slice %21 {offsets = [0, 56], sizes = [16, 8], strides = [1, 1]} : vector<16x64xf32> to vector<16x8xf32>
    %cst_68 = arith.constant dense<0.000000e+00> : vector<16x8xf32>
    %177 = tpu.matmul %175, %176, %cst_68 {dimension_numbers = #tpu.dot_dimension_numbers<[1], [0], [0], [1], [0, 0, 1, 1], [], []>} : vector<16x16xf32>, vector<16x8xf32>, vector<16x8xf32> -> vector<16x8xf32>
    %178 = vector.extract_strided_slice %4 {offsets = [56, 0], sizes = [8, 64], strides = [1, 1]} : vector<64x64xf32> to vector<8x64xf32>
    %cst_69 = arith.constant dense<0.000000e+00> : vector<16x64xf32>
    %179 = tpu.matmul %177, %178, %cst_69 {dimension_numbers = #tpu.dot_dimension_numbers<[1], [0], [0], [1], [0, 0, 1, 1], [], []>} : vector<16x8xf32>, vector<8x64xf32>, vector<16x64xf32> -> vector<16x64xf32>
    %180 = arith.addf %161, %179 : vector<16x64xf32>
    %181 = vector.broadcast %5 : vector<1x64xf32> to vector<16x64xf32>
    %182 = arith.addf %180, %181 : vector<16x64xf32>
    %183 = arith.addf %1, %182 : vector<16x64xf32>
    %cst_70 = arith.constant dense<0.000000e+00> : vector<16xf32>
    %184 = vector.multi_reduction <add>, %183, %cst_70 [1] : vector<16x64xf32> to vector<16xf32>
    %185 = vector.shape_cast %184 : vector<16xf32> to vector<16x1xf32>
    %cst_71 = arith.constant 6.400000e+01 : f32
    %186 = vector.broadcast %cst_71 : f32 to vector<16x1xf32>
    %187 = arith.divf %185, %186 : vector<16x1xf32>
    %188 = vector.broadcast %187 : vector<16x1xf32> to vector<16x64xf32>
    %189 = arith.subf %183, %188 : vector<16x64xf32>
    %190 = arith.mulf %189, %189 : vector<16x64xf32>
    %cst_72 = arith.constant dense<0.000000e+00> : vector<16xf32>
    %191 = vector.multi_reduction <add>, %190, %cst_72 [1] : vector<16x64xf32> to vector<16xf32>
    %192 = vector.shape_cast %191 : vector<16xf32> to vector<16x1xf32>
    %cst_73 = arith.constant 6.400000e+01 : f32
    %193 = vector.broadcast %cst_73 : f32 to vector<16x1xf32>
    %194 = arith.divf %192, %193 : vector<16x1xf32>
    %195 = vector.broadcast %187 : vector<16x1xf32> to vector<16x64xf32>
    %196 = arith.subf %183, %195 : vector<16x64xf32>
    %cst_74 = arith.constant 9.99999974E-6 : f32
    %197 = vector.broadcast %cst_74 : f32 to vector<16x1xf32>
    %198 = arith.addf %194, %197 : vector<16x1xf32>
    %199 = math.rsqrt %198 : vector<16x1xf32>
    %200 = vector.broadcast %199 : vector<16x1xf32> to vector<16x64xf32>
    %201 = arith.mulf %196, %200 : vector<16x64xf32>
    %202 = vector.broadcast %6 : vector<1x64xf32> to vector<16x64xf32>
    %203 = arith.mulf %201, %202 : vector<16x64xf32>
    %204 = vector.broadcast %7 : vector<1x64xf32> to vector<16x64xf32>
    %205 = arith.addf %203, %204 : vector<16x64xf32>
    %cst_75 = arith.constant dense<0.000000e+00> : vector<16x256xf32>
    %206 = tpu.matmul %205, %8, %cst_75 {dimension_numbers = #tpu.dot_dimension_numbers<[1], [0], [0], [1], [0, 0, 1, 1], [], []>} : vector<16x64xf32>, vector<64x256xf32>, vector<16x256xf32> -> vector<16x256xf32>
    %207 = vector.broadcast %9 : vector<1x256xf32> to vector<16x256xf32>
    %208 = arith.addf %206, %207 : vector<16x256xf32>
    %cst_76 = arith.constant 0.000000e+00 : f32
    %209 = vector.broadcast %cst_76 : f32 to vector<16x256xf32>
    %210 = arith.maximumf %208, %209 : vector<16x256xf32>
    %cst_77 = arith.constant dense<0.000000e+00> : vector<16x64xf32>
    %211 = tpu.matmul %210, %10, %cst_77 {dimension_numbers = #tpu.dot_dimension_numbers<[1], [0], [0], [1], [0, 0, 1, 1], [], []>} : vector<16x256xf32>, vector<256x64xf32>, vector<16x64xf32> -> vector<16x64xf32>
    %212 = arith.addf %205, %211 : vector<16x64xf32>
    %213 = vector.broadcast %11 : vector<1x64xf32> to vector<16x64xf32>
    %214 = arith.addf %212, %213 : vector<16x64xf32>
    %cst_78 = arith.constant dense<0.000000e+00> : vector<16xf32>
    %215 = vector.multi_reduction <add>, %214, %cst_78 [1] : vector<16x64xf32> to vector<16xf32>
    %216 = vector.shape_cast %215 : vector<16xf32> to vector<16x1xf32>
    %cst_79 = arith.constant 6.400000e+01 : f32
    %217 = vector.broadcast %cst_79 : f32 to vector<16x1xf32>
    %218 = arith.divf %216, %217 : vector<16x1xf32>
    %219 = vector.broadcast %218 : vector<16x1xf32> to vector<16x64xf32>
    %220 = arith.subf %214, %219 : vector<16x64xf32>
    %221 = arith.mulf %220, %220 : vector<16x64xf32>
    %cst_80 = arith.constant dense<0.000000e+00> : vector<16xf32>
    %222 = vector.multi_reduction <add>, %221, %cst_80 [1] : vector<16x64xf32> to vector<16xf32>
    %223 = vector.shape_cast %222 : vector<16xf32> to vector<16x1xf32>
    %cst_81 = arith.constant 6.400000e+01 : f32
    %224 = vector.broadcast %cst_81 : f32 to vector<16x1xf32>
    %225 = arith.divf %223, %224 : vector<16x1xf32>
    %226 = vector.broadcast %218 : vector<16x1xf32> to vector<16x64xf32>
    %227 = arith.subf %214, %226 : vector<16x64xf32>
    %cst_82 = arith.constant 9.99999974E-6 : f32
    %228 = vector.broadcast %cst_82 : f32 to vector<16x1xf32>
    %229 = arith.addf %225, %228 : vector<16x1xf32>
    %230 = math.rsqrt %229 : vector<16x1xf32>
    %231 = vector.broadcast %230 : vector<16x1xf32> to vector<16x64xf32>
    %232 = arith.mulf %227, %231 : vector<16x64xf32>
    %233 = vector.broadcast %12 : vector<1x64xf32> to vector<16x64xf32>
    %234 = arith.mulf %232, %233 : vector<16x64xf32>
    %235 = vector.broadcast %13 : vector<1x64xf32> to vector<16x64xf32>
    %236 = arith.addf %234, %235 : vector<16x64xf32>
    %c0_83 = arith.constant 0 : index
    %c0_84 = arith.constant 0 : index
    %237 = vector.load %arg14[%c0_83, %c0_84] : memref<1x64xf32, #tpu.memory_space<vmem>>, vector<1x64xf32>
    %c0_85 = arith.constant 0 : index
    %c0_86 = arith.constant 0 : index
    %238 = vector.load %arg15[%c0_85, %c0_86] : memref<1x64xf32, #tpu.memory_space<vmem>>, vector<1x64xf32>
    %cst_87 = arith.constant dense<0.000000e+00> : vector<16xf32>
    %239 = vector.multi_reduction <add>, %236, %cst_87 [1] : vector<16x64xf32> to vector<16xf32>
    %240 = vector.shape_cast %239 : vector<16xf32> to vector<16x1xf32>
    %cst_88 = arith.constant 6.400000e+01 : f32
    %241 = vector.broadcast %cst_88 : f32 to vector<16x1xf32>
    %242 = arith.divf %240, %241 : vector<16x1xf32>
    %243 = vector.broadcast %242 : vector<16x1xf32> to vector<16x64xf32>
    %244 = arith.subf %236, %243 : vector<16x64xf32>
    %245 = arith.mulf %244, %244 : vector<16x64xf32>
    %cst_89 = arith.constant dense<0.000000e+00> : vector<16xf32>
    %246 = vector.multi_reduction <add>, %245, %cst_89 [1] : vector<16x64xf32> to vector<16xf32>
    %247 = vector.shape_cast %246 : vector<16xf32> to vector<16x1xf32>
    %cst_90 = arith.constant 6.400000e+01 : f32
    %248 = vector.broadcast %cst_90 : f32 to vector<16x1xf32>
    %249 = arith.divf %247, %248 : vector<16x1xf32>
    %250 = vector.broadcast %242 : vector<16x1xf32> to vector<16x64xf32>
    %251 = arith.subf %236, %250 : vector<16x64xf32>
    %cst_91 = arith.constant 9.99999974E-6 : f32
    %252 = vector.broadcast %cst_91 : f32 to vector<16x1xf32>
    %253 = arith.addf %249, %252 : vector<16x1xf32>
    %254 = math.rsqrt %253 : vector<16x1xf32>
    %255 = vector.broadcast %254 : vector<16x1xf32> to vector<16x64xf32>
    %256 = arith.mulf %251, %255 : vector<16x64xf32>
    %257 = vector.broadcast %237 : vector<1x64xf32> to vector<16x64xf32>
    %258 = arith.mulf %256, %257 : vector<16x64xf32>
    %259 = vector.broadcast %238 : vector<1x64xf32> to vector<16x64xf32>
    %260 = arith.addf %258, %259 : vector<16x64xf32>
    %c0_92 = arith.constant 0 : index
    %c0_93 = arith.constant 0 : index
    %261 = vector.load %arg16[%c0_92, %c0_93] : memref<64x256xf32, #tpu.memory_space<vmem>>, vector<64x256xf32>
    %cst_94 = arith.constant dense<0.000000e+00> : vector<16x256xf32>
    %262 = tpu.matmul %260, %261, %cst_94 {dimension_numbers = #tpu.dot_dimension_numbers<[1], [0], [0], [1], [0, 0, 1, 1], [], []>} : vector<16x64xf32>, vector<64x256xf32>, vector<16x256xf32> -> vector<16x256xf32>
    %c0_95 = arith.constant 0 : index
    %c0_96 = arith.constant 0 : index
    %c0_97 = arith.constant 0 : index
    %263 = vector.load %arg17[%c0_95, %c0_96, %c0_97] : memref<1x16x256xf32, #tpu.memory_space<vmem>>, vector<1x16x256xf32>
    %264 = vector.shape_cast %263 : vector<1x16x256xf32> to vector<16x256xf32>
    %265 = vector.shape_cast %262 : vector<16x256xf32> to vector<1x16x256xf32>
    tpu.vector_store %arg17[%c0_95, %c0_96, %c0_97], %265 {strides = array<i32>} : memref<1x16x256xf32, #tpu.memory_space<vmem>>, vector<1x16x256xf32>,
    return
  }
  func.func @transform_0(%arg0: i32) -> (i32, i32, i32) {
    %c0_i32 = arith.constant 0 : i32
    %c0_i32_0 = arith.constant 0 : i32
    %c0_i32_1 = arith.constant 0 : i32
    return %arg0, %c0_i32, %c0_i32_0 : i32, i32, i32
  }
  func.func @transform_1(%arg0: i32) -> (i32, i32) {
    %c0_i32 = arith.constant 0 : i32
    %c0_i32_0 = arith.constant 0 : i32
    %c0_i32_1 = arith.constant 0 : i32
    return %c0_i32, %c0_i32_0 : i32, i32
  }
  func.func @transform_2(%arg0: i32) -> (i32, i32) {
    %c0_i32 = arith.constant 0 : i32
    %c0_i32_0 = arith.constant 0 : i32
    %c0_i32_1 = arith.constant 0 : i32
    return %c0_i32, %c0_i32_0 : i32, i32
  }
  func.func @transform_3(%arg0: i32) -> (i32, i32) {
    %c0_i32 = arith.constant 0 : i32
    %c0_i32_0 = arith.constant 0 : i32
    %c0_i32_1 = arith.constant 0 : i32
    return %c0_i32, %c0_i32_0 : i32, i32
  }
  func.func @transform_4(%arg0: i32) -> (i32, i32) {
    %c0_i32 = arith.constant 0 : i32
    %c0_i32_0 = arith.constant 0 : i32
    %c0_i32_1 = arith.constant 0 : i32
    return %c0_i32, %c0_i32_0 : i32, i32
  }
  func.func @transform_5(%arg0: i32) -> (i32, i32) {
    %c0_i32 = arith.constant 0 : i32
    %c0_i32_0 = arith.constant 0 : i32
    %c0_i32_1 = arith.constant 0 : i32
    return %c0_i32, %c0_i32_0 : i32, i32
  }
  func.func @transform_6(%arg0: i32) -> (i32, i32) {
    %c0_i32 = arith.constant 0 : i32
    %c0_i32_0 = arith.constant 0 : i32
    %c0_i32_1 = arith.constant 0 : i32
    return %c0_i32, %c0_i32_0 : i32, i32
  }
  func.func @transform_7(%arg0: i32) -> (i32, i32) {
    %c0_i32 = arith.constant 0 : i32
    %c0_i32_0 = arith.constant 0 : i32
    %c0_i32_1 = arith.constant 0 : i32
    return %c0_i32, %c0_i32_0 : i32, i32
  }
  func.func @transform_8(%arg0: i32) -> (i32, i32) {
    %c0_i32 = arith.constant 0 : i32
    %c0_i32_0 = arith.constant 0 : i32
    %c0_i32_1 = arith.constant 0 : i32
    return %c0_i32, %c0_i32_0 : i32, i32
  }
  func.func @transform_9(%arg0: i32) -> (i32, i32) {
    %c0_i32 = arith.constant 0 : i32
    %c0_i32_0 = arith.constant 0 : i32
    %c0_i32_1 = arith.constant 0 : i32
    return %c0_i32, %c0_i32_0 : i32, i32
  }
  func.func @transform_10(%arg0: i32) -> (i32, i32) {
    %c0_i32 = arith.constant 0 : i32
    %c0_i32_0 = arith.constant 0 : i32
    %c0_i32_1 = arith.constant 0 : i32
    return %c0_i32, %c0_i32_0 : i32, i32
  }
  func.func @transform_11(%arg0: i32) -> (i32, i32) {
    %c0_i32 = arith.constant 0 : i32
    %c0_i32_0 = arith.constant 0 : i32
    %c0_i32_1 = arith.constant 0 : i32
    return %c0_i32, %c0_i32_0 : i32, i32
  }
  func.func @transform_12(%arg0: i32) -> (i32, i32) {
    %c0_i32 = arith.constant 0 : i32
    %c0_i32_0 = arith.constant 0 : i32
    %c0_i32_1 = arith.constant 0 : i32
    return %c0_i32, %c0_i32_0 : i32, i32
  }
  func.func @transform_13(%arg0: i32) -> (i32, i32) {
    %c0_i32 = arith.constant 0 : i32
    %c0_i32_0 = arith.constant 0 : i32
    %c0_i32_1 = arith.constant 0 : i32
    return %c0_i32, %c0_i32_0 : i32, i32
  }
  func.func @transform_14(%arg0: i32) -> (i32, i32) {
    %c0_i32 = arith.constant 0 : i32
    %c0_i32_0 = arith.constant 0 : i32
    %c0_i32_1 = arith.constant 0 : i32
    return %c0_i32, %c0_i32_0 : i32, i32
  }
  func.func @transform_15(%arg0: i32) -> (i32, i32) {
    %c0_i32 = arith.constant 0 : i32
    %c0_i32_0 = arith.constant 0 : i32
    %c0_i32_1 = arith.constant 0 : i32
    return %c0_i32, %c0_i32_0 : i32, i32
  }
  func.func @transform_16(%arg0: i32) -> (i32, i32, i32) {
    %c0_i32 = arith.constant 0 : i32
    %c0_i32_0 = arith.constant 0 : i32
    %c0_i32_1 = arith.constant 0 : i32
    return %arg0, %c0_i32, %c0_i32_0 : i32, i32, i32
  }
}

</mosaic_0001>

<llo_original>
// kernel: babyjoey_forward.1
$region0: #{babyjoey_forward.1}
  #allocation0 [shape = 'u32[]', space=smem, size = 0x4, offset = 0x4, fixed_abs, tag = 'smem constant byte address 0x4 - core index']
  #allocation1 [shape = 'u32[144,128]{1,0:T(1,128)}', space=vmem, size = 0x12000, scoped, tag = 'internal scratch']
  %s0 = inlined_call_operand.vmem [shape: f32[2,16,64], index: 0, kind: input, shape index: {}]
  %s1 = inlined_call_operand.vmem [shape: f32[64,192], index: 1, kind: input, shape index: {}]
  %s2 = inlined_call_operand.vmem [shape: f32[1,192], index: 2, kind: input, shape index: {}]
  %s3 = inlined_call_operand.vmem [shape: f32[64,64], index: 3, kind: input, shape index: {}]
  %s4 = inlined_call_operand.vmem [shape: f32[1,64], index: 4, kind: input, shape index: {}]
  %s5 = inlined_call_operand.vmem [shape: f32[1,64], index: 5, kind: input, shape index: {}]
  %s6 = inlined_call_operand.vmem [shape: f32[1,64], index: 6, kind: input, shape index: {}]
  %s7 = inlined_call_operand.vmem [shape: f32[64,256], index: 7, kind: input, shape index: {}]
  %s8 = inlined_call_operand.vmem [shape: f32[1,256], index: 8, kind: input, shape index: {}]
  %s9 = inlined_call_operand.vmem [shape: f32[256,64], index: 9, kind: input, shape index: {}]
  %s10 = inlined_call_operand.vmem [shape: f32[1,64], index: 10, kind: input, shape index: {}]
  %s11 = inlined_call_operand.vmem [shape: f32[1,64], index: 11, kind: input, shape index: {}]
  %s12 = inlined_call_operand.vmem [shape: f32[1,64], index: 12, kind: input, shape index: {}]
  %s13 = inlined_call_operand.vmem [shape: f32[1,64], index: 13, kind: input, shape index: {}]
  %s14 = inlined_call_operand.vmem [shape: f32[1,64], index: 14, kind: input, shape index: {}]
  %s15 = inlined_call_operand.vmem [shape: f32[64,256], index: 15, kind: input, shape index: {}]
  %s16 = inlined_call_operand.hbm [shape: f32[2,16,256], index: 16, kind: output, shape index: {}]
  %s17 = sld [smem:[#allocation0]]
  $region97: #{babyjoey_forward.1} parent=0
    _
  %s19 = ssub.s32 1, %s17
  %s20 = scalar_select 0, %s19, %s17
  $region1: #{babyjoey_forward.1} parent=0
    #allocation2 [shape = 'u8[32768]{0}', space=vmem, size = 0x8000, scoped, tag = 'output window, operand 0']
    #allocation3 [shape = 's32[2]{0}', space=sflag, size = 0x8, scoped, tag = 'scoped memory for babyjoey_forward.1']
    %21 = vsyncpa [#allocation3], 0
    %s22 = scalar_lea.sflag [#allocation3], 1
    %23 = vsyncpa %s22, 0
    loop: start=0, step=1, limit=4
    $region2: #{babyjoey_forward.1} parent=1 // loop_pre_header
      _
    $region3: #{babyjoey_forward.1} parent=1 // loop_header
      %s25 = sphi 0, %s29
      %p26 = scmp.ge.s32.totalorder %s25, 4
      %s35 = sphi 0, %s37
      %s38 = sphi 0, %s35
      %s39 = sphi 0, %s38
      %s55 = sphi 0, %s39
      %s59 = sphi 0, %s59
      %s61 = sphi 0, %s59
      %s62 = sphi 0, %s61
      %s76 = sphi 0, %s62
      %s80 = sphi 0, %s80
      %s82 = sphi 0, %s80
      %s83 = sphi 0, %s82
      %s97 = sphi 0, %s83
      %s101 = sphi 0, %s101
      %s103 = sphi 0, %s101
      %s104 = sphi 0, %s103
      %s118 = sphi 0, %s104
      %s122 = sphi 0, %s122
      %s124 = sphi 0, %s122
      %s125 = sphi 0, %s124
      %s139 = sphi 0, %s125
      %s143 = sphi 0, %s143
      %s145 = sphi 0, %s143
      %s146 = sphi 0, %s145
      %s160 = sphi 0, %s146
      %s164 = sphi 0, %s164
      %s166 = sphi 0, %s164
      %s167 = sphi 0, %s166
      %s181 = sphi 0, %s167
      %s185 = sphi 0, %s185
      %s187 = sphi 0, %s185
      %s188 = sphi 0, %s187
      %s202 = sphi 0, %s188
      %s206 = sphi 0, %s206
      %s208 = sphi 0, %s206
      %s209 = sphi 0, %s208
      %s223 = sphi 0, %s209
      %s227 = sphi 0, %s227
      %s229 = sphi 0, %s227
      %s230 = sphi 0, %s229
      %s244 = sphi 0, %s230
      %s248 = sphi 0, %s248
      %s250 = sphi 0, %s248
      %s251 = sphi 0, %s250
      %s265 = sphi 0, %s251
      %s269 = sphi 0, %s269
      %s271 = sphi 0, %s269
      %s272 = sphi 0, %s271
      %s286 = sphi 0, %s272
      %s290 = sphi 0, %s290
      %s292 = sphi 0, %s290
      %s293 = sphi 0, %s292
      %s307 = sphi 0, %s293
      %s311 = sphi 0, %s311
      %s313 = sphi 0, %s311
      %s314 = sphi 0, %s313
      %s328 = sphi 0, %s314
      %s332 = sphi 0, %s332
      %s334 = sphi 0, %s332
      %s335 = sphi 0, %s334
      %s349 = sphi 0, %s335
      %s353 = sphi 0, %s353
      %s355 = sphi 0, %s353
      %s356 = sphi 0, %s355
      %s370 = sphi 0, %s356
      %s376 = sphi 0, %s378
      %s379 = sphi 0, %s376
      %s380 = sphi 0, %s379
      %s396 = sphi 0, %s380
    $region4: #{babyjoey_forward.1} parent=1 // loop_header_branch
      %28 = sbr.rel (%p26) target = $region8
    $region5: #{babyjoey_forward.1} parent=1 // loop_body
      %s30 = ssub.s32 %s25, 1
      %s31 = ssub.s32 %s25, 2
      %s32 = sadd.s32 %s25, 1
      %s33 = ssub.s32 %s25, %s32
      %p34 = scmp.eq.s32.totalorder %s33, 0
      %s36 = sadd.s32 %s35, 1
      %s37 = scalar_select %p34, %s35, %s36
      %p40 = pneg %p34
      %p41 = scmp.eq.s32.totalorder %s25, 1
      %p42 = por %p40, %p41
      %p43 = scmp.ne.s32.totalorder %s35, %s38
      %p44 = scmp.eq.s32.totalorder %s25, 0
      %p45 = por %p43, %p44
      %p46 = scmp.ne.s32.totalorder %s35, %s38
      %p47 = scmp.eq.s32.totalorder %s30, 1
      %p48 = por %p46, %p47
      %p49 = scmp.ne.s32.totalorder %s38, %s39
      %p50 = scmp.eq.s32.totalorder %s30, 0
      %p51 = por %p49, %p50
      %p52 = scmp.ne.s32.totalorder %s38, %s39
      %p53 = scmp.eq.s32.totalorder %s31, 1
      %p54 = por %p52, %p53
      %p56 = scmp.ne.s32.totalorder %s39, %s55
      %p57 = scmp.eq.s32.totalorder %s31, 0
      %p58 = por %p56, %p57
      %s60 = sadd.s32 %s59, 1
      %p63 = scmp.eq.s32.totalorder %s25, 1
      %p64 = scmp.ne.s32.totalorder %s59, %s61
      %p65 = scmp.eq.s32.totalorder %s25, 0
      %p66 = por %p64, %p65
      %p67 = scmp.ne.s32.totalorder %s59, %s61
      %p68 = scmp.eq.s32.totalorder %s30, 1
      %p69 = por %p67, %p68
      %p70 = scmp.ne.s32.totalorder %s61, %s62
      %p71 = scmp.eq.s32.totalorder %s30, 0
      %p72 = por %p70, %p71
      %p73 = scmp.ne.s32.totalorder %s61, %s62
      %p74 = scmp.eq.s32.totalorder %s31, 1
      %p75 = por %p73, %p74
      %p77 = scmp.ne.s32.totalorder %s62, %s76
      %p78 = scmp.eq.s32.totalorder %s31, 0
      %p79 = por %p77, %p78
      %s81 = sadd.s32 %s80, 1
      %p84 = scmp.eq.s32.totalorder %s25, 1
      %p85 = scmp.ne.s32.totalorder %s80, %s82
      %p86 = scmp.eq.s32.totalorder %s25, 0
      %p87 = por %p85, %p86
      %p88 = scmp.ne.s32.totalorder %s80, %s82
      %p89 = scmp.eq.s32.totalorder %s30, 1
      %p90 = por %p88, %p89
      %p91 = scmp.ne.s32.totalorder %s82, %s83
      %p92 = scmp.eq.s32.totalorder %s30, 0
      %p93 = por %p91, %p92
      %p94 = scmp.ne.s32.totalorder %s82, %s83
      %p95 = scmp.eq.s32.totalorder %s31, 1
      %p96 = por %p94, %p95
      %p98 = scmp.ne.s32.totalorder %s83, %s97
      %p99 = scmp.eq.s32.totalorder %s31, 0
      %p100 = por %p98, %p99
      %s102 = sadd.s32 %s101, 1
      %p105 = scmp.eq.s32.totalorder %s25, 1
      %p106 = scmp.ne.s32.totalorder %s101, %s103
      %p107 = scmp.eq.s32.totalorder %s25, 0
      %p108 = por %p106, %p107
      %p109 = scmp.ne.s32.totalorder %s101, %s103
      %p110 = scmp.eq.s32.totalorder %s30, 1
      %p111 = por %p109, %p110
      %p112 = scmp.ne.s32.totalorder %s103, %s104
      %p113 = scmp.eq.s32.totalorder %s30, 0
      %p114 = por %p112, %p113
      %p115 = scmp.ne.s32.totalorder %s103, %s104
      %p116 = scmp.eq.s32.totalorder %s31, 1
      %p117 = por %p115, %p116
      %p119 = scmp.ne.s32.totalorder %s104, %s118
      %p120 = scmp.eq.s32.totalorder %s31, 0
      %p121 = por %p119, %p120
      %s123 = sadd.s32 %s122, 1
      %p126 = scmp.eq.s32.totalorder %s25, 1
      %p127 = scmp.ne.s32.totalorder %s122, %s124
      %p128 = scmp.eq.s32.totalorder %s25, 0
      %p129 = por %p127, %p128
      %p130 = scmp.ne.s32.totalorder %s122, %s124
      %p131 = scmp.eq.s32.totalorder %s30, 1
      %p132 = por %p130, %p131
      %p133 = scmp.ne.s32.totalorder %s124, %s125
      %p134 = scmp.eq.s32.totalorder %s30, 0
      %p135 = por %p133, %p134
      %p136 = scmp.ne.s32.totalorder %s124, %s125
      %p137 = scmp.eq.s32.totalorder %s31, 1
      %p138 = por %p136, %p137
      %p140 = scmp.ne.s32.totalorder %s125, %s139
      %p141 = scmp.eq.s32.totalorder %s31, 0
      %p142 = por %p140, %p141
      %s144 = sadd.s32 %s143, 1
      %p147 = scmp.eq.s32.totalorder %s25, 1
      %p148 = scmp.ne.s32.totalorder %s143, %s145
      %p149 = scmp.eq.s32.totalorder %s25, 0
      %p150 = por %p148, %p149
      %p151 = scmp.ne.s32.totalorder %s143, %s145
      %p152 = scmp.eq.s32.totalorder %s30, 1
      %p153 = por %p151, %p152
      %p154 = scmp.ne.s32.totalorder %s145, %s146
      %p155 = scmp.eq.s32.totalorder %s30, 0
      %p156 = por %p154, %p155
      %p157 = scmp.ne.s32.totalorder %s145, %s146
      %p158 = scmp.eq.s32.totalorder %s31, 1
      %p159 = por %p157, %p158
      %p161 = scmp.ne.s32.totalorder %s146, %s160
      %p162 = scmp.eq.s32.totalorder %s31, 0
      %p163 = por %p161, %p162
      %s165 = sadd.s32 %s164, 1
      %p168 = scmp.eq.s32.totalorder %s25, 1
      %p169 = scmp.ne.s32.totalorder %s164, %s166
      %p170 = scmp.eq.s32.totalorder %s25, 0
      %p171 = por %p169, %p170
      %p172 = scmp.ne.s32.totalorder %s164, %s166
      %p173 = scmp.eq.s32.totalorder %s30, 1
      %p174 = por %p172, %p173
      %p175 = scmp.ne.s32.totalorder %s166, %s167
      %p176 = scmp.eq.s32.totalorder %s30, 0
      %p177 = por %p175, %p176
      %p178 = scmp.ne.s32.totalorder %s166, %s167
      %p179 = scmp.eq.s32.totalorder %s31, 1
      %p180 = por %p178, %p179
      %p182 = scmp.ne.s32.totalorder %s167, %s181
      %p183 = scmp.eq.s32.totalorder %s31, 0
      %p184 = por %p182, %p183
      %s186 = sadd.s32 %s185, 1
      %p189 = scmp.eq.s32.totalorder %s25, 1
      %p190 = scmp.ne.s32.totalorder %s185, %s187
      %p191 = scmp.eq.s32.totalorder %s25, 0
      %p192 = por %p190, %p191
      %p193 = scmp.ne.s32.totalorder %s185, %s187
      %p194 = scmp.eq.s32.totalorder %s30, 1
      %p195 = por %p193, %p194
      %p196 = scmp.ne.s32.totalorder %s187, %s188
      %p197 = scmp.eq.s32.totalorder %s30, 0
      %p198 = por %p196, %p197
      %p199 = scmp.ne.s32.totalorder %s187, %s188
      %p200 = scmp.eq.s32.totalorder %s31, 1
      %p201 = por %p199, %p200
      %p203 = scmp.ne.s32.totalorder %s188, %s202
      %p204 = scmp.eq.s32.totalorder %s31, 0
      %p205 = por %p203, %p204
      %s207 = sadd.s32 %s206, 1
      %p210 = scmp.eq.s32.totalorder %s25, 1
      %p211 = scmp.ne.s32.totalorder %s206, %s208
      %p212 = scmp.eq.s32.totalorder %s25, 0
      %p213 = por %p211, %p212
      %p214 = scmp.ne.s32.totalorder %s206, %s208
      %p215 = scmp.eq.s32.totalorder %s30, 1
      %p216 = por %p214, %p215
      %p217 = scmp.ne.s32.totalorder %s208, %s209
      %p218 = scmp.eq.s32.totalorder %s30, 0
      %p219 = por %p217, %p218
      %p220 = scmp.ne.s32.totalorder %s208, %s209
      %p221 = scmp.eq.s32.totalorder %s31, 1
      %p222 = por %p220, %p221
      %p224 = scmp.ne.s32.totalorder %s209, %s223
      %p225 = scmp.eq.s32.totalorder %s31, 0
      %p226 = por %p224, %p225
      %s228 = sadd.s32 %s227, 1
      %p231 = scmp.eq.s32.totalorder %s25, 1
      %p232 = scmp.ne.s32.totalorder %s227, %s229
      %p233 = scmp.eq.s32.totalorder %s25, 0
      %p234 = por %p232, %p233
      %p235 = scmp.ne.s32.totalorder %s227, %s229
      %p236 = scmp.eq.s32.totalorder %s30, 1
      %p237 = por %p235, %p236
      %p238 = scmp.ne.s32.totalorder %s229, %s230
      %p239 = scmp.eq.s32.totalorder %s30, 0
      %p240 = por %p238, %p239
      %p241 = scmp.ne.s32.totalorder %s229, %s230
      %p242 = scmp.eq.s32.totalorder %s31, 1
      %p243 = por %p241, %p242
      %p245 = scmp.ne.s32.totalorder %s230, %s244
      %p246 = scmp.eq.s32.totalorder %s31, 0
      %p247 = por %p245, %p246
      %s249 = sadd.s32 %s248, 1
      %p252 = scmp.eq.s32.totalorder %s25, 1
      %p253 = scmp.ne.s32.totalorder %s248, %s250
      %p254 = scmp.eq.s32.totalorder %s25, 0
      %p255 = por %p253, %p254
      %p256 = scmp.ne.s32.totalorder %s248, %s250
      %p257 = scmp.eq.s32.totalorder %s30, 1
      %p258 = por %p256, %p257
      %p259 = scmp.ne.s32.totalorder %s250, %s251
      %p260 = scmp.eq.s32.totalorder %s30, 0
      %p261 = por %p259, %p260
      %p262 = scmp.ne.s32.totalorder %s250, %s251
      %p263 = scmp.eq.s32.totalorder %s31, 1
      %p264 = por %p262, %p263
      %p266 = scmp.ne.s32.totalorder %s251, %s265
      %p267 = scmp.eq.s32.totalorder %s31, 0
      %p268 = por %p266, %p267
      %s270 = sadd.s32 %s269, 1
      %p273 = scmp.eq.s32.totalorder %s25, 1
      %p274 = scmp.ne.s32.totalorder %s269, %s271
      %p275 = scmp.eq.s32.totalorder %s25, 0
      %p276 = por %p274, %p275
      %p277 = scmp.ne.s32.totalorder %s269, %s271
      %p278 = scmp.eq.s32.totalorder %s30, 1
      %p279 = por %p277, %p278
      %p280 = scmp.ne.s32.totalorder %s271, %s272
      %p281 = scmp.eq.s32.totalorder %s30, 0
      %p282 = por %p280, %p281
      %p283 = scmp.ne.s32.totalorder %s271, %s272
      %p284 = scmp.eq.s32.totalorder %s31, 1
      %p285 = por %p283, %p284
      %p287 = scmp.ne.s32.totalorder %s272, %s286
      %p288 = scmp.eq.s32.totalorder %s31, 0
      %p289 = por %p287, %p288
      %s291 = sadd.s32 %s290, 1
      %p294 = scmp.eq.s32.totalorder %s25, 1
      %p295 = scmp.ne.s32.totalorder %s290, %s292
      %p296 = scmp.eq.s32.totalorder %s25, 0
      %p297 = por %p295, %p296
      %p298 = scmp.ne.s32.totalorder %s290, %s292
      %p299 = scmp.eq.s32.totalorder %s30, 1
      %p300 = por %p298, %p299
      %p301 = scmp.ne.s32.totalorder %s292, %s293
      %p302 = scmp.eq.s32.totalorder %s30, 0
      %p303 = por %p301, %p302
      %p304 = scmp.ne.s32.totalorder %s292, %s293
      %p305 = scmp.eq.s32.totalorder %s31, 1
      %p306 = por %p304, %p305
      %p308 = scmp.ne.s32.totalorder %s293, %s307
      %p309 = scmp.eq.s32.totalorder %s31, 0
      %p310 = por %p308, %p309
      %s312 = sadd.s32 %s311, 1
      %p315 = scmp.eq.s32.totalorder %s25, 1
      %p316 = scmp.ne.s32.totalorder %s311, %s313
      %p317 = scmp.eq.s32.totalorder %s25, 0
      %p318 = por %p316, %p317
      %p319 = scmp.ne.s32.totalorder %s311, %s313
      %p320 = scmp.eq.s32.totalorder %s30, 1
      %p321 = por %p319, %p320
      %p322 = scmp.ne.s32.totalorder %s313, %s314
      %p323 = scmp.eq.s32.totalorder %s30, 0
      %p324 = por %p322, %p323
      %p325 = scmp.ne.s32.totalorder %s313, %s314
      %p326 = scmp.eq.s32.totalorder %s31, 1
      %p327 = por %p325, %p326
      %p329 = scmp.ne.s32.totalorder %s314, %s328
      %p330 = scmp.eq.s32.totalorder %s31, 0
      %p331 = por %p329, %p330
      %s333 = sadd.s32 %s332, 1
      %p336 = scmp.eq.s32.totalorder %s25, 1
      %p337 = scmp.ne.s32.totalorder %s332, %s334
      %p338 = scmp.eq.s32.totalorder %s25, 0
      %p339 = por %p337, %p338
      %p340 = scmp.ne.s32.totalorder %s332, %s334
      %p341 = scmp.eq.s32.totalorder %s30, 1
      %p342 = por %p340, %p341
      %p343 = scmp.ne.s32.totalorder %s334, %s335
      %p344 = scmp.eq.s32.totalorder %s30, 0
      %p345 = por %p343, %p344
      %p346 = scmp.ne.s32.totalorder %s334, %s335
      %p347 = scmp.eq.s32.totalorder %s31, 1
      %p348 = por %p346, %p347
      %p350 = scmp.ne.s32.totalorder %s335, %s349
      %p351 = scmp.eq.s32.totalorder %s31, 0
      %p352 = por %p350, %p351
      %s354 = sadd.s32 %s353, 1
      %p357 = scmp.eq.s32.totalorder %s25, 1
      %p358 = scmp.ne.s32.totalorder %s353, %s355
      %p359 = scmp.eq.s32.totalorder %s25, 0
      %p360 = por %p358, %p359
      %p361 = scmp.ne.s32.totalorder %s353, %s355
      %p362 = scmp.eq.s32.totalorder %s30, 1
      %p363 = por %p361, %p362
      %p364 = scmp.ne.s32.totalorder %s355, %s356
      %p365 = scmp.eq.s32.totalorder %s30, 0
      %p366 = por %p364, %p365
      %p367 = scmp.ne.s32.totalorder %s355, %s356
      %p368 = scmp.eq.s32.totalorder %s31, 1
      %p369 = por %p367, %p368
      %p371 = scmp.ne.s32.totalorder %s356, %s370
      %p372 = scmp.eq.s32.totalorder %s31, 0
      %p373 = por %p371, %p372
      %s374 = ssub.s32 %s25, %s32
      %p375 = scmp.eq.s32.totalorder %s374, 0
      %s377 = sadd.s32 %s376, 1
      %s378 = scalar_select %p375, %s376, %s377
      %p381 = pneg %p375
      %p382 = scmp.eq.s32.totalorder %s25, 1
      %p383 = por %p381, %p382
      %p384 = scmp.ne.s32.totalorder %s376, %s379
      %p385 = scmp.eq.s32.totalorder %s25, 0
      %p386 = por %p384, %p385
      %p387 = scmp.ne.s32.totalorder %s376, %s379
      %p388 = scmp.eq.s32.totalorder %s30, 1
      %p389 = por %p387, %p388
      %p390 = scmp.ne.s32.totalorder %s379, %s380
      %p391 = scmp.eq.s32.totalorder %s30, 0
      %p392 = por %p390, %p391
      %p393 = scmp.ne.s32.totalorder %s379, %s380
      %p394 = scmp.eq.s32.totalorder %s31, 1
      %p395 = por %p393, %p394
      %p397 = scmp.ne.s32.totalorder %s380, %s396
      %p398 = scmp.eq.s32.totalorder %s31, 0
      %p399 = por %p397, %p398
      %p400 = scmp.le.s32.totalorder 1, %s25
      %p401 = scmp.lt.s32.totalorder %s25, 3
      %p402 = pnand %p400, %p401
      %p403 = pneg %p402
      // Predicated region
      $region9: #{babyjoey_forward.1} parent=5 // pred_check
        _
      $region10: #{babyjoey_forward.1} parent=5 // pred_check_branch
        %405 = sbr.rel (%p402) target = $region12
      $region11: #{babyjoey_forward.1} parent=5 // pred_region
        %s406 = ssub.s32 %s25, 1
        // Predicated region
        $region13: #{babyjoey_forward.1} parent=11 // pred_check
          %p407 = pneg %p72
        $region14: #{babyjoey_forward.1} parent=11 // pred_check_branch
          %409 = sbr.rel (%p407) target = $region16
        $region15: #{babyjoey_forward.1} parent=11 // pred_region
          _
        $region16: #{babyjoey_forward.1} parent=11 // pred_fallthru
          _
        // Predicated region
        $region17: #{babyjoey_forward.1} parent=11 // pred_check
          %p410 = pneg %p93
        $region18: #{babyjoey_forward.1} parent=11 // pred_check_branch
          %412 = sbr.rel (%p410) target = $region20
        $region19: #{babyjoey_forward.1} parent=11 // pred_region
          _
        $region20: #{babyjoey_forward.1} parent=11 // pred_fallthru
          _
        // Predicated region
        $region21: #{babyjoey_forward.1} parent=11 // pred_check
          %p413 = pneg %p114
        $region22: #{babyjoey_forward.1} parent=11 // pred_check_branch
          %415 = sbr.rel (%p413) target = $region24
        $region23: #{babyjoey_forward.1} parent=11 // pred_region
          _
        $region24: #{babyjoey_forward.1} parent=11 // pred_fallthru
          _
        // Predicated region
        $region25: #{babyjoey_forward.1} parent=11 // pred_check
          %p416 = pneg %p135
        $region26: #{babyjoey_forward.1} parent=11 // pred_check_branch
          %418 = sbr.rel (%p416) target = $region28
        $region27: #{babyjoey_forward.1} parent=11 // pred_region
          _
        $region28: #{babyjoey_forward.1} parent=11 // pred_fallthru
          _
        // Predicated region
        $region29: #{babyjoey_forward.1} parent=11 // pred_check
          %p419 = pneg %p156
        $region30: #{babyjoey_forward.1} parent=11 // pred_check_branch
          %421 = sbr.rel (%p419) target = $region32
        $region31: #{babyjoey_forward.1} parent=11 // pred_region
          _
        $region32: #{babyjoey_forward.1} parent=11 // pred_fallthru
          _
        // Predicated region
        $region33: #{babyjoey_forward.1} parent=11 // pred_check
          %p422 = pneg %p177
        $region34: #{babyjoey_forward.1} parent=11 // pred_check_branch
          %424 = sbr.rel (%p422) target = $region36
        $region35: #{babyjoey_forward.1} parent=11 // pred_region
          _
        $region36: #{babyjoey_forward.1} parent=11 // pred_fallthru
          _
        // Predicated region
        $region37: #{babyjoey_forward.1} parent=11 // pred_check
          %p425 = pneg %p198
        $region38: #{babyjoey_forward.1} parent=11 // pred_check_branch
          %427 = sbr.rel (%p425) target = $region40
        $region39: #{babyjoey_forward.1} parent=11 // pred_region
          _
        $region40: #{babyjoey_forward.1} parent=11 // pred_fallthru
          _
        // Predicated region
        $region41: #{babyjoey_forward.1} parent=11 // pred_check
          %p428 = pneg %p219
        $region42: #{babyjoey_forward.1} parent=11 // pred_check_branch
          %430 = sbr.rel (%p428) target = $region44
        $region43: #{babyjoey_forward.1} parent=11 // pred_region
          _
        $region44: #{babyjoey_forward.1} parent=11 // pred_fallthru
          _
        // Predicated region
        $region45: #{babyjoey_forward.1} parent=11 // pred_check
          %p431 = pneg %p240
        $region46: #{babyjoey_forward.1} parent=11 // pred_check_branch
          %433 = sbr.rel (%p431) target = $region48
        $region47: #{babyjoey_forward.1} parent=11 // pred_region
          _
        $region48: #{babyjoey_forward.1} parent=11 // pred_fallthru
          _
        // Predicated region
        $region49: #{babyjoey_forward.1} parent=11 // pred_check
          %p434 = pneg %p261
        $region50: #{babyjoey_forward.1} parent=11 // pred_check_branch
          %436 = sbr.rel (%p434) target = $region52
        $region51: #{babyjoey_forward.1} parent=11 // pred_region
          _
        $region52: #{babyjoey_forward.1} parent=11 // pred_fallthru
          _
        // Predicated region
        $region53: #{babyjoey_forward.1} parent=11 // pred_check
          %p437 = pneg %p282
        $region54: #{babyjoey_forward.1} parent=11 // pred_check_branch
          %439 = sbr.rel (%p437) target = $region56
        $region55: #{babyjoey_forward.1} parent=11 // pred_region
          _
        $region56: #{babyjoey_forward.1} parent=11 // pred_fallthru
          _
        // Predicated region
        $region57: #{babyjoey_forward.1} parent=11 // pred_check
          %p440 = pneg %p303
        $region58: #{babyjoey_forward.1} parent=11 // pred_check_branch
          %442 = sbr.rel (%p440) target = $region60
        $region59: #{babyjoey_forward.1} parent=11 // pred_region
          _
        $region60: #{babyjoey_forward.1} parent=11 // pred_fallthru
          _
        // Predicated region
        $region61: #{babyjoey_forward.1} parent=11 // pred_check
          %p443 = pneg %p324
        $region62: #{babyjoey_forward.1} parent=11 // pred_check_branch
          %445 = sbr.rel (%p443) target = $region64
        $region63: #{babyjoey_forward.1} parent=11 // pred_region
          _
        $region64: #{babyjoey_forward.1} parent=11 // pred_fallthru
          _
        // Predicated region
        $region65: #{babyjoey_forward.1} parent=11 // pred_check
          %p446 = pneg %p345
        $region66: #{babyjoey_forward.1} parent=11 // pred_check_branch
          %448 = sbr.rel (%p446) target = $region68
        $region67: #{babyjoey_forward.1} parent=11 // pred_region
          _
        $region68: #{babyjoey_forward.1} parent=11 // pred_fallthru
          _
        // Predicated region
        $region69: #{babyjoey_forward.1} parent=11 // pred_check
          %p449 = pneg %p366
        $region70: #{babyjoey_forward.1} parent=11 // pred_check_branch
          %451 = sbr.rel (%p449) target = $region72
        $region71: #{babyjoey_forward.1} parent=11 // pred_region
          _
        $region72: #{babyjoey_forward.1} parent=11 // pred_fallthru
          _
      $region12: #{babyjoey_forward.1} parent=5 // pred_fallthru
        _
      %p452 = scmp.lt.s32.totalorder %s25, 2
      // Predicated region
      $region73: #{babyjoey_forward.1} parent=5 // pred_check
        %p453 = pneg %p452
      $region74: #{babyjoey_forward.1} parent=5 // pred_check_branch
        %455 = sbr.rel (%p453) target = $region76
      $region75: #{babyjoey_forward.1} parent=5 // pred_region
        // Predicated region
        $region77: #{babyjoey_forward.1} parent=75 // pred_check
          %p456 = pneg %p45
        $region78: #{babyjoey_forward.1} parent=75 // pred_check_branch
          %458 = sbr.rel (%p456) target = $region80
        $region79: #{babyjoey_forward.1} parent=75 // pred_region
          %p459 = scmp.lt.s32.totalorder %s25, 1
          %s460 = scalar_select %p459, %s25, 1
          %s461 = smul.addr %s460, 2
          %s462 = smul.addr %s461, 8
          %s463 = scalar_lea.vmem %s0, %s462
        $region80: #{babyjoey_forward.1} parent=75 // pred_fallthru
          _
      $region76: #{babyjoey_forward.1} parent=5 // pred_fallthru
        _
      %p464 = scmp.le.s32.totalorder 1, %s25
      %p465 = scmp.lt.s32.totalorder %s25, 3
      %p466 = pnand %p464, %p465
      %p467 = pneg %p466
      // Predicated region
      $region81: #{babyjoey_forward.1} parent=5 // pred_check
        _
      $region82: #{babyjoey_forward.1} parent=5 // pred_check_branch
        %469 = sbr.rel (%p466) target = $region84
      $region83: #{babyjoey_forward.1} parent=5 // pred_region
        %s470 = ssub.s32 %s25, 1
        %p471 = scmp.lt.s32.totalorder %s30, 1
        %s472 = scalar_select %p471, %s30, 1
        %s473 = smul.addr %s472, 2
        %s474 = smul.addr %s473, 8
        %s475 = scalar_lea.vmem %s0, %s474
        %p476 = pneg %p51
        %p477 = pneg %p48
        %p478 = pneg %p72
        %p479 = pneg %p69
        %p480 = pneg %p93
        %p481 = pneg %p90
        %p482 = pneg %p114
        %p483 = pneg %p111
        %p484 = pneg %p135
        %p485 = pneg %p132
        %p486 = pneg %p156
        %p487 = pneg %p153
        %p488 = pneg %p177
        %p489 = pneg %p174
        %p490 = pneg %p198
        %p491 = pneg %p195
        %p492 = pneg %p219
        %p493 = pneg %p216
        %p494 = pneg %p240
        %p495 = pneg %p237
        %p496 = pneg %p261
        %p497 = pneg %p258
        %p498 = pneg %p282
        %p499 = pneg %p279
        %p500 = pneg %p303
        %p501 = pneg %p300
        %p502 = pneg %p324
        %p503 = pneg %p321
        %p504 = pneg %p345
        %p505 = pneg %p342
        %p506 = pneg %p366
        %p507 = pneg %p363
        %p508 = pneg %p392
        %p509 = pneg %p389
        %s510 = sand.u32 %s379, 1
        %s511 = scalar_lea.sflag [#allocation3], %s510
        %s512 = sand.u32 %s379, 1
        %s513 = smul.addr %s512, 32
        %s514 = scalar_lea.vmem [#allocation2], %s513
        %p515 = scmp.lt.s32.totalorder %s30, 1
        %s516 = scalar_select %p515, %s30, 1
        %s517 = smul.addr %s516, 2
        %s518 = smul.addr %s517, 8
        %s519 = scalar_lea.vmem %s0, %s518
        %v520 = vld [vmem:[%s519] sm:$0xff]
        %v521 = vld [vmem:[%s519 + $0x8] sm:$0xff]
        %v522 = vld [vmem:[%s1] sm:$0xff]
        %v523 = vld [vmem:[%s1 + $0x8] sm:$0xff]
        %v524 = vld [vmem:[%s1 + $0x10] sm:$0xff]
        %v525 = vld [vmem:[%s1 + $0x18] sm:$0xff]
        %v526 = vld [vmem:[%s1 + $0x20] sm:$0xff]
        %v527 = vld [vmem:[%s1 + $0x28] sm:$0xff]
        %v528 = vld [vmem:[%s1 + $0x30] sm:$0xff]
        %v529 = vld [vmem:[%s1 + $0x38] sm:$0xff]
        %v530 = vld [vmem:[%s1 + $0x40] sm:$0xff]
        %v531 = vld [vmem:[%s1 + $0x48] sm:$0xff]
        %v532 = vld [vmem:[%s1 + $0x50] sm:$0xff]
        %v533 = vld [vmem:[%s1 + $0x58] sm:$0xff]
        %v534 = vld [vmem:[%s1 + $0x60] sm:$0xff]
        %v535 = vld [vmem:[%s1 + $0x68] sm:$0xff]
        %v536 = vld [vmem:[%s1 + $0x70] sm:$0xff]
        %v537 = vld [vmem:[%s1 + $0x78] sm:$0xff]
        %v538 = vld [vmem:[%s2] sm:$0x3]
        %v539 = vld [vmem:[%s3] sm:$0xff]
        %v540 = vld [vmem:[%s3 + $0x8] sm:$0xff]
        %v541 = vld [vmem:[%s3 + $0x10] sm:$0xff]
        %v542 = vld [vmem:[%s3 + $0x18] sm:$0xff]
        %v543 = vld [vmem:[%s3 + $0x20] sm:$0xff]
        %v544 = vld [vmem:[%s3 + $0x28] sm:$0xff]
        %v545 = vld [vmem:[%s3 + $0x30] sm:$0xff]
        %v546 = vld [vmem:[%s3 + $0x38] sm:$0xff]
        %v547 = vld [vmem:[%s4] sm:$0x1]
        %v548 = vld [vmem:[%s5] sm:$0x1]
        %v549 = vld [vmem:[%s6] sm:$0x1]
        %v550 = vld [vmem:[%s7] sm:$0xff]
        %v551 = vld [vmem:[%s7 + $0x8] sm:$0xff]
        %v552 = vld [vmem:[%s7 + $0x10] sm:$0xff]
        %v553 = vld [vmem:[%s7 + $0x18] sm:$0xff]
        %v554 = vld [vmem:[%s7 + $0x20] sm:$0xff]
        %v555 = vld [vmem:[%s7 + $0x28] sm:$0xff]
        %v556 = vld [vmem:[%s7 + $0x30] sm:$0xff]
        %v557 = vld [vmem:[%s7 + $0x38] sm:$0xff]
        %v558 = vld [vmem:[%s7 + $0x40] sm:$0xff]
        %v559 = vld [vmem:[%s7 + $0x48] sm:$0xff]
        %v560 = vld [vmem:[%s7 + $0x50] sm:$0xff]
        %v561 = vld [vmem:[%s7 + $0x58] sm:$0xff]
        %v562 = vld [vmem:[%s7 + $0x60] sm:$0xff]
        %v563 = vld [vmem:[%s7 + $0x68] sm:$0xff]
        %v564 = vld [vmem:[%s7 + $0x70] sm:$0xff]
        %v565 = vld [vmem:[%s7 + $0x78] sm:$0xff]
        %v566 = vld [vmem:[%s8] sm:$0x3]
        %v567 = vld [vmem:[%s9] sm:$0xff]
        %v568 = vld [vmem:[%s9 + $0x8] sm:$0xff]
        %v569 = vld [vmem:[%s9 + $0x10] sm:$0xff]
        %v570 = vld [vmem:[%s9 + $0x18] sm:$0xff]
        %v571 = vld [vmem:[%s9 + $0x20] sm:$0xff]
        %v572 = vld [vmem:[%s9 + $0x28] sm:$0xff]
        %v573 = vld [vmem:[%s9 + $0x30] sm:$0xff]
        %v574 = vld [vmem:[%s9 + $0x38] sm:$0xff]
        %v575 = vld [vmem:[%s9 + $0x40] sm:$0xff]
        %v576 = vld [vmem:[%s9 + $0x48] sm:$0xff]
        %v577 = vld [vmem:[%s9 + $0x50] sm:$0xff]
        %v578 = vld [vmem:[%s9 + $0x58] sm:$0xff]
        %v579 = vld [vmem:[%s9 + $0x60] sm:$0xff]
        %v580 = vld [vmem:[%s9 + $0x68] sm:$0xff]
        %v581 = vld [vmem:[%s9 + $0x70] sm:$0xff]
        %v582 = vld [vmem:[%s9 + $0x78] sm:$0xff]
        %v583 = vld [vmem:[%s9 + $0x80] sm:$0xff]
        %v584 = vld [vmem:[%s9 + $0x88] sm:$0xff]
        %v585 = vld [vmem:[%s9 + $0x90] sm:$0xff]
        %v586 = vld [vmem:[%s9 + $0x98] sm:$0xff]
        %v587 = vld [vmem:[%s9 + $0xa0] sm:$0xff]
        %v588 = vld [vmem:[%s9 + $0xa8] sm:$0xff]
        %v589 = vld [vmem:[%s9 + $0xb0] sm:$0xff]
        %v590 = vld [vmem:[%s9 + $0xb8] sm:$0xff]
        %v591 = vld [vmem:[%s9 + $0xc0] sm:$0xff]
        %v592 = vld [vmem:[%s9 + $0xc8] sm:$0xff]
        %v593 = vld [vmem:[%s9 + $0xd0] sm:$0xff]
        %v594 = vld [vmem:[%s9 + $0xd8] sm:$0xff]
        %v595 = vld [vmem:[%s9 + $0xe0] sm:$0xff]
        %v596 = vld [vmem:[%s9 + $0xe8] sm:$0xff]
        %v597 = vld [vmem:[%s9 + $0xf0] sm:$0xff]
        %v598 = vld [vmem:[%s9 + $0xf8] sm:$0xff]
        %v599 = vld [vmem:[%s10] sm:$0x1]
        %v600 = vld [vmem:[%s11] sm:$0x1]
        %v601 = vld [vmem:[%s12] sm:$0x1]
        %v603 = vlaneseq
        %v604 = vshrl.u32 %v603, 7
        %v605 = vsub.s32 0, %v604
        %v606 = vrot.slane %v538, %v605
        %v607 = vlaneseq
        %v608 = vshrl.u32 %v607, 7
        %v609 = vsub.s32 1, %v608
        %v610 = vrot.slane %v538, %v609
        %vm613 = vcmask 523264
        %v615 = vsel %vm613, %v520, 0
        %v618 = vsel %vm613, %v521, 0
        %620 = vmatprep.subr.mxu0 %v523
        %621 = vmatpush1.msra.mxu0 %v522
        %622 = vmatprep.subr.mxu0 %v525
        %623 = vmatpush1.msra.mxu0 %v524
        %624 = vmatprep.subr.mxu0 %v527
        %625 = vmatpush1.msra.mxu0 %v526
        %626 = vmatprep.subr.mxu0 %v529
        %627 = vmatpush1.msra.mxu0 %v528
        %628 = vmatprep.subr.mxu0 %v531
        %629 = vmatpush1.msra.mxu0 %v530
        %630 = vmatprep.subr.mxu0 %v533
        %631 = vmatpush1.msra.mxu0 %v532
        %632 = vmatprep.subr.mxu0 %v535
        %633 = vmatpush1.msra.mxu0 %v534
        %634 = vmatprep.subr.mxu0 %v537
        %635 = vmatpush1.msra.mxu0 %v536
        %636 = vmatprep.subr.mxu0 0.0
        %637 = vmatpush1.msra.mxu0 0.0
        %638 = vmatprep.subr.mxu0 0.0
        %639 = vmatpush1.msra.mxu0 0.0
        %640 = vmatprep.subr.mxu0 0.0
        %641 = vmatpush1.msra.mxu0 0.0
        %642 = vmatprep.subr.mxu0 0.0
        %643 = vmatpush1.msra.mxu0 0.0
        %644 = vmatprep.subr.mxu0 0.0
        %645 = vmatpush1.msra.mxu0 0.0
        %646 = vmatprep.subr.mxu0 0.0
        %647 = vmatpush1.msra.mxu0 0.0
        %648 = vmatprep.subr.mxu0 0.0
        %649 = vmatpush1.msra.mxu0 0.0
        %650 = vmatprep.subr.mxu0 0.0
        %651 = vmatpush1.msra.mxu0 0.0
        %652 = vmatprep.subr.mxu0 0.0
        %653 = vmatpush1.msra.mxu0 0.0
        %654 = vmatprep.subr.mxu0 0.0
        %655 = vmatpush1.msra.mxu0 0.0
        %656 = vmatprep.subr.mxu0 0.0
        %657 = vmatpush1.msra.mxu0 0.0
        %658 = vmatprep.subr.mxu0 0.0
        %659 = vmatpush1.msra.mxu0 0.0
        %660 = vmatprep.subr.mxu0 0.0
        %661 = vmatpush1.msra.mxu0 0.0
        %662 = vmatprep.subr.mxu0 0.0
        %663 = vmatpush1.msra.mxu0 0.0
        %664 = vmatprep.subr.mxu0 0.0
        %665 = vmatpush1.msra.mxu0 0.0
        %666 = vmatprep.subr.mxu0 0.0
        %667 = vmatpush1.msra.mxu0 0.0
        %668 = vmatprep.subr.mxu0 0.0
        %669 = vmatpush1.msra.mxu0 0.0
        %670 = vmatprep.subr.mxu0 0.0
        %671 = vmatpush1.msra.mxu0 0.0
        %672 = vmatprep.subr.mxu0 0.0
        %673 = vmatpush1.msra.mxu0 0.0
        %674 = vmatprep.subr.mxu0 0.0
        %675 = vmatpush1.msra.mxu0 0.0
        %676 = vmatprep.subr.mxu0 0.0
        %677 = vmatpush1.msra.mxu0 0.0
        %678 = vmatprep.subr.mxu0 0.0
        %679 = vmatpush1.msra.mxu0 0.0
        %680 = vmatprep.subr.mxu0 0.0
        %681 = vmatpush1.msra.mxu0 0.0
        %682 = vmatprep.subr.mxu0 0.0
        %683 = vmatpush1.msra.mxu0 0.0
        %684 = vmatprep.mubr.f32.mxu0 0.0
        %685 = vmatmul.mubr.f32.gmra.mrb[0].mxu0 %v615
        %v686 = vpop.f32.mrb[0].mxu0
        %v687 = vadd.f32 %v606, %v686
        %v688 = vpop.f32.mrb[0].mxu0
        %v689 = vadd.f32 %v610, %v688
        %690 = vmatprep.mubr.f32.mxu0 0.0
        %691 = vmatmul.mubr.f32.gmra.mrb[0].mxu0 %v618
        %v692 = vpop.f32.mrb[0].mxu0
        %v693 = vadd.f32 %v606, %v692
        %v694 = vpop.f32.mrb[0].mxu0
        %v695 = vadd.f32 %v610, %v694
        %696 = vdwg.mxu0
        %v697 = vmul.f32 %v687, 0.35355338
        %v698 = vmul.f32 %v693, 0.35355338
        %v699 = vlaneseq
        %v700 = vshrl.u32 %v699, 7
        %v701 = vadd.s32 %v700, 8
        %v702 = vlaneseq
        %v703 = vand.u32 %v702, 127
        %vm704 = vcmp.le.s32.totalorder %v703, %v700
        %vm705 = vcmp.le.s32.totalorder %v703, %v701
        %v706 = vsel %vm704, -inf, 0.0
        %v707 = vsel %vm705, -inf, 0.0
        %710 = vrot.lane.b32.xlu0 %v687, 64
        %v711 = vpop.permute.xlu0 %710
        %712 = vrot.lane.b32.xlu0 %v693, 64
        %v713 = vpop.permute.xlu0 %712
        %vm714 = vcmask 64512
        %v716 = vsel %vm714, %v697, 0
        %v719 = vsel %vm714, %v698, 0
        %v721 = vsel %vm714, %v711, 0
        %v723 = vsel %vm714, %v713, 0
        %725 = vmatprep.subr.mxu0 0.0
        %726 = vmatpush1.xpose.msra.mxu0 %v721
        %727 = vmatprep.subr.mxu0 0.0
        %728 = vmatpush1.xpose.msra.mxu0 %v723
        %729 = vmatprep.subr.mxu0 0.0
        %730 = vmatpush1.xpose.msra.mxu0 0.0
        %731 = vmatprep.subr.mxu0 0.0
        %732 = vmatpush1.xpose.msra.mxu0 0.0
        %733 = vmatprep.subr.mxu0 0.0
        %734 = vmatpush1.xpose.msra.mxu0 0.0
        %735 = vmatprep.subr.mxu0 0.0
        %736 = vmatpush1.xpose.msra.mxu0 0.0
        %737 = vmatprep.subr.mxu0 0.0
        %738 = vmatpush1.xpose.msra.mxu0 0.0
        %739 = vmatprep.subr.mxu0 0.0
        %740 = vmatpush1.xpose.msra.mxu0 0.0
        %741 = vmatprep.subr.mxu0 0.0
        %742 = vmatpush1.xpose.msra.mxu0 0.0
        %743 = vmatprep.subr.mxu0 0.0
        %744 = vmatpush1.xpose.msra.mxu0 0.0
        %745 = vmatprep.subr.mxu0 0.0
        %746 = vmatpush1.xpose.msra.mxu0 0.0
        %747 = vmatprep.subr.mxu0 0.0
        %748 = vmatpush1.xpose.msra.mxu0 0.0
        %749 = vmatprep.subr.mxu0 0.0
        %750 = vmatpush1.xpose.msra.mxu0 0.0
        %751 = vmatprep.subr.mxu0 0.0
        %752 = vmatpush1.xpose.msra.mxu0 0.0
        %753 = vmatprep.subr.mxu0 0.0
        %754 = vmatpush1.xpose.msra.mxu0 0.0
        %755 = vmatprep.subr.mxu0 0.0
        %756 = vmatpush1.xpose.msra.mxu0 0.0
        %757 = vmatprep.subr.mxu0 0.0
        %758 = vmatpush1.xpose.msra.mxu0 0.0
        %759 = vmatprep.subr.mxu0 0.0
        %760 = vmatpush1.xpose.msra.mxu0 0.0
        %761 = vmatprep.subr.mxu0 0.0
        %762 = vmatpush1.xpose.msra.mxu0 0.0
        %763 = vmatprep.subr.mxu0 0.0
        %764 = vmatpush1.xpose.msra.mxu0 0.0
        %765 = vmatprep.subr.mxu0 0.0
        %766 = vmatpush1.xpose.msra.mxu0 0.0
        %767 = vmatprep.subr.mxu0 0.0
        %768 = vmatpush1.xpose.msra.mxu0 0.0
        %769 = vmatprep.subr.mxu0 0.0
        %770 = vmatpush1.xpose.msra.mxu0 0.0
        %771 = vmatprep.subr.mxu0 0.0
        %772 = vmatpush1.xpose.msra.mxu0 0.0
        %773 = vmatprep.subr.mxu0 0.0
        %774 = vmatpush1.xpose.msra.mxu0 0.0
        %775 = vmatprep.subr.mxu0 0.0
        %776 = vmatpush1.xpose.msra.mxu0 0.0
        %777 = vmatprep.subr.mxu0 0.0
        %778 = vmatpush1.xpose.msra.mxu0 0.0
        %779 = vmatprep.subr.mxu0 0.0
        %780 = vmatpush1.xpose.msra.mxu0 0.0
        %781 = vmatprep.subr.mxu0 0.0
        %782 = vmatpush1.xpose.msra.mxu0 0.0
        %783 = vmatprep.subr.mxu0 0.0
        %784 = vmatpush1.xpose.msra.mxu0 0.0
        %785 = vmatprep.subr.mxu0 0.0
        %786 = vmatpush1.xpose.msra.mxu0 0.0
        %787 = vmatprep.subr.mxu0 0.0
        %788 = vmatpush1.xpose.msra.mxu0 0.0
        %789 = vmatprep.mubr.f32.mxu0 0.0
        %790 = vmatmul.mubr.f32.gmra.mrb[0].mxu0 %v716
        %v791 = vpop.f32.mrb[0].mxu0
        %v792 = vadd.f32 %v706, %v791
        %v793 = vpop.f32.mrb[0].mxu0
        %794 = vmatprep.mubr.f32.mxu0 0.0
        %795 = vmatmul.mubr.f32.gmra.mrb[0].mxu0 %v719
        %v796 = vpop.f32.mrb[0].mxu0
        %v797 = vadd.f32 %v707, %v796
        %v798 = vpop.f32.mrb[0].mxu0
        %799 = vdwg.mxu0
        %vm800 = vcmask 130048
        %v801 = vsel %vm800, %v792, -inf
        %802 = vmax.xlane.f32.xlu0 %v801
        %v803 = vpop.xlane.xlu0 %802
        %v804 = vsel %vm800, %v797, -inf
        %805 = vmax.xlane.f32.xlu0 %v804
        %v806 = vpop.xlane.xlu0 %805
        %v807 = vsub.f32 %v792, %v803
        %v808 = vsub.f32 %v797, %v806
        %v809 = vmul.f32 %v807, 1.442695
        %v810 = vpow.pop %v809
        %v811 = vmul.f32 %v808, 1.442695
        %v812 = vpow.pop %v811
        %v813 = vsel %vm800, %v810, 0.0
        %814 = vadd.xlane.f32.xlu0 %v813
        %v815 = vpop.xlane.xlu0 %814
        %v816 = vsel %vm800, %v812, 0.0
        %817 = vadd.xlane.f32.xlu0 %v816
        %v818 = vpop.xlane.xlu0 %817
        %v819 = vrcp.pop %v815
        %v820 = vrcp.pop %v818
        %v821 = vmul.f32 %v810, %v819
        %v822 = vmul.f32 %v812, %v820
        %v824 = vsel %vm800, %v821, 0
        %v827 = vsel %vm800, %v822, 0
        %829 = vmatprep.subr.mxu0 0.0
        %830 = vmatpush1.msra.mxu0 %v689
        %831 = vmatprep.subr.mxu0 0.0
        %832 = vmatpush1.msra.mxu0 %v695
        %833 = vmatprep.subr.mxu0 0.0
        %834 = vmatpush1.msra.mxu0 0.0
        %835 = vmatprep.subr.mxu0 0.0
        %836 = vmatpush1.msra.mxu0 0.0
        %837 = vmatprep.subr.mxu0 0.0
        %838 = vmatpush1.msra.mxu0 0.0
        %839 = vmatprep.subr.mxu0 0.0
        %840 = vmatpush1.msra.mxu0 0.0
        %841 = vmatprep.subr.mxu0 0.0
        %842 = vmatpush1.msra.mxu0 0.0
        %843 = vmatprep.subr.mxu0 0.0
        %844 = vmatpush1.msra.mxu0 0.0
        %845 = vmatprep.subr.mxu0 0.0
        %846 = vmatpush1.msra.mxu0 0.0
        %847 = vmatprep.subr.mxu0 0.0
        %848 = vmatpush1.msra.mxu0 0.0
        %849 = vmatprep.subr.mxu0 0.0
        %850 = vmatpush1.msra.mxu0 0.0
        %851 = vmatprep.subr.mxu0 0.0
        %852 = vmatpush1.msra.mxu0 0.0
        %853 = vmatprep.subr.mxu0 0.0
        %854 = vmatpush1.msra.mxu0 0.0
        %855 = vmatprep.subr.mxu0 0.0
        %856 = vmatpush1.msra.mxu0 0.0
        %857 = vmatprep.subr.mxu0 0.0
        %858 = vmatpush1.msra.mxu0 0.0
        %859 = vmatprep.subr.mxu0 0.0
        %860 = vmatpush1.msra.mxu0 0.0
        %861 = vmatprep.subr.mxu0 0.0
        %862 = vmatpush1.msra.mxu0 0.0
        %863 = vmatprep.subr.mxu0 0.0
        %864 = vmatpush1.msra.mxu0 0.0
        %865 = vmatprep.subr.mxu0 0.0
        %866 = vmatpush1.msra.mxu0 0.0
        %867 = vmatprep.subr.mxu0 0.0
        %868 = vmatpush1.msra.mxu0 0.0
        %869 = vmatprep.subr.mxu0 0.0
        %870 = vmatpush1.msra.mxu0 0.0
        %871 = vmatprep.subr.mxu0 0.0
        %872 = vmatpush1.msra.mxu0 0.0
        %873 = vmatprep.subr.mxu0 0.0
        %874 = vmatpush1.msra.mxu0 0.0
        %875 = vmatprep.subr.mxu0 0.0
        %876 = vmatpush1.msra.mxu0 0.0
        %877 = vmatprep.subr.mxu0 0.0
        %878 = vmatpush1.msra.mxu0 0.0
        %879 = vmatprep.subr.mxu0 0.0
        %880 = vmatpush1.msra.mxu0 0.0
        %881 = vmatprep.subr.mxu0 0.0
        %882 = vmatpush1.msra.mxu0 0.0
        %883 = vmatprep.subr.mxu0 0.0
        %884 = vmatpush1.msra.mxu0 0.0
        %885 = vmatprep.subr.mxu0 0.0
        %886 = vmatpush1.msra.mxu0 0.0
        %887 = vmatprep.subr.mxu0 0.0
        %888 = vmatpush1.msra.mxu0 0.0
        %889 = vmatprep.subr.mxu0 0.0
        %890 = vmatpush1.msra.mxu0 0.0
        %891 = vmatprep.subr.mxu0 0.0
        %892 = vmatpush1.msra.mxu0 0.0
        %893 = vmatprep.mubr.f32.mxu0 0.0
        %894 = vmatmul.mubr.f32.gmra.mrb[0].mxu0 %v824
        %v895 = vpop.f32.mrb[0].mxu0
        %v896 = vadd.f32 0.0, %v895
        %v897 = vpop.f32.mrb[0].mxu0
        %898 = vmatprep.mubr.f32.mxu0 0.0
        %899 = vmatmul.mubr.f32.gmra.mrb[0].mxu0 %v827
        %v900 = vpop.f32.mrb[0].mxu0
        %v901 = vadd.f32 0.0, %v900
        %v902 = vpop.f32.mrb[0].mxu0
        %903 = vdwg.mxu0
        %904 = vrot.lane.b32.xlu0 %v697, 120
        %v905 = vpop.permute.xlu0 %904
        %906 = vrot.lane.b32.xlu0 %v698, 120
        %v907 = vpop.permute.xlu0 %906
        %908 = vrot.lane.b32.xlu0 %v687, 56
        %v909 = vpop.permute.xlu0 %908
        %910 = vrot.lane.b32.xlu0 %v693, 56
        %v911 = vpop.permute.xlu0 %910
        %v912 = vsel %vm714, %v905, 0
        %v914 = vsel %vm714, %v907, 0
        %v916 = vsel %vm714, %v909, 0
        %v918 = vsel %vm714, %v911, 0
        %920 = vmatprep.subr.mxu0 0.0
        %921 = vmatpush1.xpose.msra.mxu0 %v916
        %922 = vmatprep.subr.mxu0 0.0
        %923 = vmatpush1.xpose.msra.mxu0 %v918
        %924 = vmatprep.subr.mxu0 0.0
        %925 = vmatpush1.xpose.msra.mxu0 0.0
        %926 = vmatprep.subr.mxu0 0.0
        %927 = vmatpush1.xpose.msra.mxu0 0.0
        %928 = vmatprep.subr.mxu0 0.0
        %929 = vmatpush1.xpose.msra.mxu0 0.0
        %930 = vmatprep.subr.mxu0 0.0
        %931 = vmatpush1.xpose.msra.mxu0 0.0
        %932 = vmatprep.subr.mxu0 0.0
        %933 = vmatpush1.xpose.msra.mxu0 0.0
        %934 = vmatprep.subr.mxu0 0.0
        %935 = vmatpush1.xpose.msra.mxu0 0.0
        %936 = vmatprep.subr.mxu0 0.0
        %937 = vmatpush1.xpose.msra.mxu0 0.0
        %938 = vmatprep.subr.mxu0 0.0
        %939 = vmatpush1.xpose.msra.mxu0 0.0
        %940 = vmatprep.subr.mxu0 0.0
        %941 = vmatpush1.xpose.msra.mxu0 0.0
        %942 = vmatprep.subr.mxu0 0.0
        %943 = vmatpush1.xpose.msra.mxu0 0.0
        %944 = vmatprep.subr.mxu0 0.0
        %945 = vmatpush1.xpose.msra.mxu0 0.0
        %946 = vmatprep.subr.mxu0 0.0
        %947 = vmatpush1.xpose.msra.mxu0 0.0
        %948 = vmatprep.subr.mxu0 0.0
        %949 = vmatpush1.xpose.msra.mxu0 0.0
        %950 = vmatprep.subr.mxu0 0.0
        %951 = vmatpush1.xpose.msra.mxu0 0.0
        %952 = vmatprep.subr.mxu0 0.0
        %953 = vmatpush1.xpose.msra.mxu0 0.0
        %954 = vmatprep.subr.mxu0 0.0
        %955 = vmatpush1.xpose.msra.mxu0 0.0
        %956 = vmatprep.subr.mxu0 0.0
        %957 = vmatpush1.xpose.msra.mxu0 0.0
        %958 = vmatprep.subr.mxu0 0.0
        %959 = vmatpush1.xpose.msra.mxu0 0.0
        %960 = vmatprep.subr.mxu0 0.0
        %961 = vmatpush1.xpose.msra.mxu0 0.0
        %962 = vmatprep.subr.mxu0 0.0
        %963 = vmatpush1.xpose.msra.mxu0 0.0
        %964 = vmatprep.subr.mxu0 0.0
        %965 = vmatpush1.xpose.msra.mxu0 0.0
        %966 = vmatprep.subr.mxu0 0.0
        %967 = vmatpush1.xpose.msra.mxu0 0.0
        %968 = vmatprep.subr.mxu0 0.0
        %969 = vmatpush1.xpose.msra.mxu0 0.0
        %970 = vmatprep.subr.mxu0 0.0
        %971 = vmatpush1.xpose.msra.mxu0 0.0
        %972 = vmatprep.subr.mxu0 0.0
        %973 = vmatpush1.xpose.msra.mxu0 0.0
        %974 = vmatprep.subr.mxu0 0.0
        %975 = vmatpush1.xpose.msra.mxu0 0.0
        %976 = vmatprep.subr.mxu0 0.0
        %977 = vmatpush1.xpose.msra.mxu0 0.0
        %978 = vmatprep.subr.mxu0 0.0
        %979 = vmatpush1.xpose.msra.mxu0 0.0
        %980 = vmatprep.subr.mxu0 0.0
        %981 = vmatpush1.xpose.msra.mxu0 0.0
        %982 = vmatprep.subr.mxu0 0.0
        %983 = vmatpush1.xpose.msra.mxu0 0.0
        %984 = vmatprep.mubr.f32.mxu0 0.0
        %985 = vmatmul.mubr.f32.gmra.mrb[0].mxu0 %v912
        %v986 = vpop.f32.mrb[0].mxu0
        %v987 = vadd.f32 %v706, %v986
        %v988 = vpop.f32.mrb[0].mxu0
        %989 = vmatprep.mubr.f32.mxu0 0.0
        %990 = vmatmul.mubr.f32.gmra.mrb[0].mxu0 %v914
        %v991 = vpop.f32.mrb[0].mxu0
        %v992 = vadd.f32 %v707, %v991
        %v993 = vpop.f32.mrb[0].mxu0
        %994 = vdwg.mxu0
        %v995 = vsel %vm800, %v987, -inf
        %996 = vmax.xlane.f32.xlu0 %v995
        %v997 = vpop.xlane.xlu0 %996
        %v998 = vsel %vm800, %v992, -inf
        %999 = vmax.xlane.f32.xlu0 %v998
        %v1000 = vpop.xlane.xlu0 %999
        %v1001 = vsub.f32 %v987, %v997
        %v1002 = vsub.f32 %v992, %v1000
        %v1003 = vmul.f32 %v1001, 1.442695
        %v1004 = vpow.pop %v1003
        %v1005 = vmul.f32 %v1002, 1.442695
        %v1006 = vpow.pop %v1005
        %v1007 = vsel %vm800, %v1004, 0.0
        %1008 = vadd.xlane.f32.xlu0 %v1007
        %v1009 = vpop.xlane.xlu0 %1008
        %v1010 = vsel %vm800, %v1006, 0.0
        %1011 = vadd.xlane.f32.xlu0 %v1010
        %v1012 = vpop.xlane.xlu0 %1011
        %v1013 = vrcp.pop %v1009
        %v1014 = vrcp.pop %v1012
        %v1015 = vmul.f32 %v1004, %v1013
        %v1016 = vmul.f32 %v1006, %v1014
        %1019 = vrot.lane.b32.xlu0 %v689, 120
        %v1020 = vpop.permute.xlu0 %1019
        %1021 = vrot.lane.b32.xlu0 %v695, 120
        %v1022 = vpop.permute.xlu0 %1021
        %v1026 = vsel %vm800, %v1015, 0
        %v1029 = vsel %vm800, %v1016, 0
        %1031 = vmatprep.subr.mxu0 0.0
        %1032 = vmatpush1.msra.mxu0 %v1020
        %1033 = vmatprep.subr.mxu0 0.0
        %1034 = vmatpush1.msra.mxu0 %v1022
        %1035 = vmatprep.subr.mxu0 0.0
        %1036 = vmatpush1.msra.mxu0 0.0
        %1037 = vmatprep.subr.mxu0 0.0
        %1038 = vmatpush1.msra.mxu0 0.0
        %1039 = vmatprep.subr.mxu0 0.0
        %1040 = vmatpush1.msra.mxu0 0.0
        %1041 = vmatprep.subr.mxu0 0.0
        %1042 = vmatpush1.msra.mxu0 0.0
        %1043 = vmatprep.subr.mxu0 0.0
        %1044 = vmatpush1.msra.mxu0 0.0
        %1045 = vmatprep.subr.mxu0 0.0
        %1046 = vmatpush1.msra.mxu0 0.0
        %1047 = vmatprep.subr.mxu0 0.0
        %1048 = vmatpush1.msra.mxu0 0.0
        %1049 = vmatprep.subr.mxu0 0.0
        %1050 = vmatpush1.msra.mxu0 0.0
        %1051 = vmatprep.subr.mxu0 0.0
        %1052 = vmatpush1.msra.mxu0 0.0
        %1053 = vmatprep.subr.mxu0 0.0
        %1054 = vmatpush1.msra.mxu0 0.0
        %1055 = vmatprep.subr.mxu0 0.0
        %1056 = vmatpush1.msra.mxu0 0.0
        %1057 = vmatprep.subr.mxu0 0.0
        %1058 = vmatpush1.msra.mxu0 0.0
        %1059 = vmatprep.subr.mxu0 0.0
        %1060 = vmatpush1.msra.mxu0 0.0
        %1061 = vmatprep.subr.mxu0 0.0
        %1062 = vmatpush1.msra.mxu0 0.0
        %1063 = vmatprep.subr.mxu0 0.0
        %1064 = vmatpush1.msra.mxu0 0.0
        %1065 = vmatprep.subr.mxu0 0.0
        %1066 = vmatpush1.msra.mxu0 0.0
        %1067 = vmatprep.subr.mxu0 0.0
        %1068 = vmatpush1.msra.mxu0 0.0
        %1069 = vmatprep.subr.mxu0 0.0
        %1070 = vmatpush1.msra.mxu0 0.0
        %1071 = vmatprep.subr.mxu0 0.0
        %1072 = vmatpush1.msra.mxu0 0.0
        %1073 = vmatprep.subr.mxu0 0.0
        %1074 = vmatpush1.msra.mxu0 0.0
        %1075 = vmatprep.subr.mxu0 0.0
        %1076 = vmatpush1.msra.mxu0 0.0
        %1077 = vmatprep.subr.mxu0 0.0
        %1078 = vmatpush1.msra.mxu0 0.0
        %1079 = vmatprep.subr.mxu0 0.0
        %1080 = vmatpush1.msra.mxu0 0.0
        %1081 = vmatprep.subr.mxu0 0.0
        %1082 = vmatpush1.msra.mxu0 0.0
        %1083 = vmatprep.subr.mxu0 0.0
        %1084 = vmatpush1.msra.mxu0 0.0
        %1085 = vmatprep.subr.mxu0 0.0
        %1086 = vmatpush1.msra.mxu0 0.0
        %1087 = vmatprep.subr.mxu0 0.0
        %1088 = vmatpush1.msra.mxu0 0.0
        %1089 = vmatprep.subr.mxu0 0.0
        %1090 = vmatpush1.msra.mxu0 0.0
        %1091 = vmatprep.subr.mxu0 0.0
        %1092 = vmatpush1.msra.mxu0 0.0
        %1093 = vmatprep.subr.mxu0 0.0
        %1094 = vmatpush1.msra.mxu0 0.0
        %1095 = vmatprep.mubr.f32.mxu0 0.0
        %1096 = vmatmul.mubr.f32.gmra.mrb[0].mxu0 %v1026
        %v1097 = vpop.f32.mrb[0].mxu0
        %v1098 = vadd.f32 0.0, %v1097
        %v1099 = vpop.f32.mrb[0].mxu0
        %1100 = vmatprep.mubr.f32.mxu0 0.0
        %1101 = vmatmul.mubr.f32.gmra.mrb[0].mxu0 %v1029
        %v1102 = vpop.f32.mrb[0].mxu0
        %v1103 = vadd.f32 0.0, %v1102
        %v1104 = vpop.f32.mrb[0].mxu0
        %1105 = vdwg.mxu0
        %v1107 = vsel %vm714, %v1098, 0
        %v1110 = vsel %vm714, %v1103, 0
        %1112 = vmatprep.subr.mxu0 0.0
        %1113 = vmatpush1.msra.mxu0 %v540
        %1114 = vmatprep.subr.mxu0 0.0
        %1115 = vmatpush1.msra.mxu0 0.0
        %1116 = vmatprep.subr.mxu0 0.0
        %1117 = vmatpush1.msra.mxu0 0.0
        %1118 = vmatprep.subr.mxu0 0.0
        %1119 = vmatpush1.msra.mxu0 0.0
        %1120 = vmatprep.subr.mxu0 0.0
        %1121 = vmatpush1.msra.mxu0 0.0
        %1122 = vmatprep.subr.mxu0 0.0
        %1123 = vmatpush1.msra.mxu0 0.0
        %1124 = vmatprep.subr.mxu0 0.0
        %1125 = vmatpush1.msra.mxu0 0.0
        %1126 = vmatprep.subr.mxu0 0.0
        %1127 = vmatpush1.msra.mxu0 0.0
        %1128 = vmatprep.subr.mxu0 0.0
        %1129 = vmatpush1.msra.mxu0 0.0
        %1130 = vmatprep.subr.mxu0 0.0
        %1131 = vmatpush1.msra.mxu0 0.0
        %1132 = vmatprep.subr.mxu0 0.0
        %1133 = vmatpush1.msra.mxu0 0.0
        %1134 = vmatprep.subr.mxu0 0.0
        %1135 = vmatpush1.msra.mxu0 0.0
        %1136 = vmatprep.subr.mxu0 0.0
        %1137 = vmatpush1.msra.mxu0 0.0
        %1138 = vmatprep.subr.mxu0 0.0
        %1139 = vmatpush1.msra.mxu0 0.0
        %1140 = vmatprep.subr.mxu0 0.0
        %1141 = vmatpush1.msra.mxu0 0.0
        %1142 = vmatprep.subr.mxu0 0.0
        %1143 = vmatpush1.msra.mxu0 0.0
        %1144 = vmatprep.subr.mxu0 0.0
        %1145 = vmatpush1.msra.mxu0 0.0
        %1146 = vmatprep.subr.mxu0 0.0
        %1147 = vmatpush1.msra.mxu0 0.0
        %1148 = vmatprep.subr.mxu0 0.0
        %1149 = vmatpush1.msra.mxu0 0.0
        %1150 = vmatprep.subr.mxu0 0.0
        %1151 = vmatpush1.msra.mxu0 0.0
        %1152 = vmatprep.subr.mxu0 0.0
        %1153 = vmatpush1.msra.mxu0 0.0
        %1154 = vmatprep.subr.mxu0 0.0
        %1155 = vmatpush1.msra.mxu0 0.0
        %1156 = vmatprep.subr.mxu0 0.0
        %1157 = vmatpush1.msra.mxu0 0.0
        %1158 = vmatprep.subr.mxu0 0.0
        %1159 = vmatpush1.msra.mxu0 0.0
        %1160 = vmatprep.subr.mxu0 0.0
        %1161 = vmatpush1.msra.mxu0 0.0
        %1162 = vmatprep.subr.mxu0 0.0
        %1163 = vmatpush1.msra.mxu0 0.0
        %1164 = vmatprep.subr.mxu0 0.0
        %1165 = vmatpush1.msra.mxu0 0.0
        %1166 = vmatprep.subr.mxu0 0.0
        %1167 = vmatpush1.msra.mxu0 0.0
        %1168 = vmatprep.subr.mxu0 0.0
        %1169 = vmatpush1.msra.mxu0 0.0
        %1170 = vmatprep.subr.mxu0 0.0
        %1171 = vmatpush1.msra.mxu0 0.0
        %1172 = vmatprep.subr.mxu0 0.0
        %1173 = vmatpush1.msra.mxu0 0.0
        %1174 = vmatprep.subr.mxu0 0.0
        %1175 = vmatpush1.msra.mxu0 0.0
        %1176 = vmatprep.mubr.f32.mxu0 0.0
        %1177 = vmatmul.mubr.f32.gmra.mrb[0].mxu0 %v1107
        %v1178 = vpop.f32.mrb[0].mxu0
        %v1179 = vadd.f32 0.0, %v1178
        %v1180 = vpop.f32.mrb[0].mxu0
        %1181 = vmatprep.mubr.f32.mxu0 0.0
        %1182 = vmatmul.mubr.f32.gmra.mrb[0].mxu0 %v1110
        %v1183 = vpop.f32.mrb[0].mxu0
        %v1184 = vadd.f32 0.0, %v1183
        %v1185 = vpop.f32.mrb[0].mxu0
        %1186 = vdwg.mxu0
        %v1188 = vsel %vm714, %v896, 0
        %v1191 = vsel %vm714, %v901, 0
        %1193 = vmatprep.subr.mxu0 0.0
        %1194 = vmatpush1.msra.mxu0 %v539
        %1195 = vmatprep.subr.mxu0 0.0
        %1196 = vmatpush1.msra.mxu0 0.0
        %1197 = vmatprep.subr.mxu0 0.0
        %1198 = vmatpush1.msra.mxu0 0.0
        %1199 = vmatprep.subr.mxu0 0.0
        %1200 = vmatpush1.msra.mxu0 0.0
        %1201 = vmatprep.subr.mxu0 0.0
        %1202 = vmatpush1.msra.mxu0 0.0
        %1203 = vmatprep.subr.mxu0 0.0
        %1204 = vmatpush1.msra.mxu0 0.0
        %1205 = vmatprep.subr.mxu0 0.0
        %1206 = vmatpush1.msra.mxu0 0.0
        %1207 = vmatprep.subr.mxu0 0.0
        %1208 = vmatpush1.msra.mxu0 0.0
        %1209 = vmatprep.subr.mxu0 0.0
        %1210 = vmatpush1.msra.mxu0 0.0
        %1211 = vmatprep.subr.mxu0 0.0
        %1212 = vmatpush1.msra.mxu0 0.0
        %1213 = vmatprep.subr.mxu0 0.0
        %1214 = vmatpush1.msra.mxu0 0.0
        %1215 = vmatprep.subr.mxu0 0.0
        %1216 = vmatpush1.msra.mxu0 0.0
        %1217 = vmatprep.subr.mxu0 0.0
        %1218 = vmatpush1.msra.mxu0 0.0
        %1219 = vmatprep.subr.mxu0 0.0
        %1220 = vmatpush1.msra.mxu0 0.0
        %1221 = vmatprep.subr.mxu0 0.0
        %1222 = vmatpush1.msra.mxu0 0.0
        %1223 = vmatprep.subr.mxu0 0.0
        %1224 = vmatpush1.msra.mxu0 0.0
        %1225 = vmatprep.subr.mxu0 0.0
        %1226 = vmatpush1.msra.mxu0 0.0
        %1227 = vmatprep.subr.mxu0 0.0
        %1228 = vmatpush1.msra.mxu0 0.0
        %1229 = vmatprep.subr.mxu0 0.0
        %1230 = vmatpush1.msra.mxu0 0.0
        %1231 = vmatprep.subr.mxu0 0.0
        %1232 = vmatpush1.msra.mxu0 0.0
        %1233 = vmatprep.subr.mxu0 0.0
        %1234 = vmatpush1.msra.mxu0 0.0
        %1235 = vmatprep.subr.mxu0 0.0
        %1236 = vmatpush1.msra.mxu0 0.0
        %1237 = vmatprep.subr.mxu0 0.0
        %1238 = vmatpush1.msra.mxu0 0.0
        %1239 = vmatprep.subr.mxu0 0.0
        %1240 = vmatpush1.msra.mxu0 0.0
        %1241 = vmatprep.subr.mxu0 0.0
        %1242 = vmatpush1.msra.mxu0 0.0
        %1243 = vmatprep.subr.mxu0 0.0
        %1244 = vmatpush1.msra.mxu0 0.0
        %1245 = vmatprep.subr.mxu0 0.0
        %1246 = vmatpush1.msra.mxu0 0.0
        %1247 = vmatprep.subr.mxu0 0.0
        %1248 = vmatpush1.msra.mxu0 0.0
        %1249 = vmatprep.subr.mxu0 0.0
        %1250 = vmatpush1.msra.mxu0 0.0
        %1251 = vmatprep.subr.mxu0 0.0
        %1252 = vmatpush1.msra.mxu0 0.0
        %1253 = vmatprep.subr.mxu0 0.0
        %1254 = vmatpush1.msra.mxu0 0.0
        %1255 = vmatprep.subr.mxu0 0.0
        %1256 = vmatpush1.msra.mxu0 0.0
        %1257 = vmatprep.mubr.f32.mxu0 0.0
        %1258 = vmatmul.mubr.f32.gmra.mrb[0].mxu0 %v1188
        %v1259 = vpop.f32.mrb[0].mxu0
        %v1260 = vadd.f32 %v1179, %v1259
        %v1261 = vpop.f32.mrb[0].mxu0
        %1262 = vmatprep.mubr.f32.mxu0 0.0
        %1263 = vmatmul.mubr.f32.gmra.mrb[0].mxu0 %v1191
        %v1264 = vpop.f32.mrb[0].mxu0
        %v1265 = vadd.f32 %v1184, %v1264
        %v1266 = vpop.f32.mrb[0].mxu0
        %1267 = vdwg.mxu0
        %1268 = vrot.lane.b32.xlu0 %v697, 112
        %v1269 = vpop.permute.xlu0 %1268
        %1270 = vrot.lane.b32.xlu0 %v698, 112
        %v1271 = vpop.permute.xlu0 %1270
        %1272 = vrot.lane.b32.xlu0 %v687, 48
        %v1273 = vpop.permute.xlu0 %1272
        %1274 = vrot.lane.b32.xlu0 %v693, 48
        %v1275 = vpop.permute.xlu0 %1274
        %v1276 = vsel %vm714, %v1269, 0
        %v1278 = vsel %vm714, %v1271, 0
        %v1280 = vsel %vm714, %v1273, 0
        %v1282 = vsel %vm714, %v1275, 0
        %1284 = vmatprep.subr.mxu0 0.0
        %1285 = vmatpush1.xpose.msra.mxu0 %v1280
        %1286 = vmatprep.subr.mxu0 0.0
        %1287 = vmatpush1.xpose.msra.mxu0 %v1282
        %1288 = vmatprep.subr.mxu0 0.0
        %1289 = vmatpush1.xpose.msra.mxu0 0.0
        %1290 = vmatprep.subr.mxu0 0.0
        %1291 = vmatpush1.xpose.msra.mxu0 0.0
        %1292 = vmatprep.subr.mxu0 0.0
        %1293 = vmatpush1.xpose.msra.mxu0 0.0
        %1294 = vmatprep.subr.mxu0 0.0
        %1295 = vmatpush1.xpose.msra.mxu0 0.0
        %1296 = vmatprep.subr.mxu0 0.0
        %1297 = vmatpush1.xpose.msra.mxu0 0.0
        %1298 = vmatprep.subr.mxu0 0.0
        %1299 = vmatpush1.xpose.msra.mxu0 0.0
        %1300 = vmatprep.subr.mxu0 0.0
        %1301 = vmatpush1.xpose.msra.mxu0 0.0
        %1302 = vmatprep.subr.mxu0 0.0
        %1303 = vmatpush1.xpose.msra.mxu0 0.0
        %1304 = vmatprep.subr.mxu0 0.0
        %1305 = vmatpush1.xpose.msra.mxu0 0.0
        %1306 = vmatprep.subr.mxu0 0.0
        %1307 = vmatpush1.xpose.msra.mxu0 0.0
        %1308 = vmatprep.subr.mxu0 0.0
        %1309 = vmatpush1.xpose.msra.mxu0 0.0
        %1310 = vmatprep.subr.mxu0 0.0
        %1311 = vmatpush1.xpose.msra.mxu0 0.0
        %1312 = vmatprep.subr.mxu0 0.0
        %1313 = vmatpush1.xpose.msra.mxu0 0.0
        %1314 = vmatprep.subr.mxu0 0.0
        %1315 = vmatpush1.xpose.msra.mxu0 0.0
        %1316 = vmatprep.subr.mxu0 0.0
        %1317 = vmatpush1.xpose.msra.mxu0 0.0
        %1318 = vmatprep.subr.mxu0 0.0
        %1319 = vmatpush1.xpose.msra.mxu0 0.0
        %1320 = vmatprep.subr.mxu0 0.0
        %1321 = vmatpush1.xpose.msra.mxu0 0.0
        %1322 = vmatprep.subr.mxu0 0.0
        %1323 = vmatpush1.xpose.msra.mxu0 0.0
        %1324 = vmatprep.subr.mxu0 0.0
        %1325 = vmatpush1.xpose.msra.mxu0 0.0
        %1326 = vmatprep.subr.mxu0 0.0
        %1327 = vmatpush1.xpose.msra.mxu0 0.0
        %1328 = vmatprep.subr.mxu0 0.0
        %1329 = vmatpush1.xpose.msra.mxu0 0.0
        %1330 = vmatprep.subr.mxu0 0.0
        %1331 = vmatpush1.xpose.msra.mxu0 0.0
        %1332 = vmatprep.subr.mxu0 0.0
        %1333 = vmatpush1.xpose.msra.mxu0 0.0
        %1334 = vmatprep.subr.mxu0 0.0
        %1335 = vmatpush1.xpose.msra.mxu0 0.0
        %1336 = vmatprep.subr.mxu0 0.0
        %1337 = vmatpush1.xpose.msra.mxu0 0.0
        %1338 = vmatprep.subr.mxu0 0.0
        %1339 = vmatpush1.xpose.msra.mxu0 0.0
        %1340 = vmatprep.subr.mxu0 0.0
        %1341 = vmatpush1.xpose.msra.mxu0 0.0
        %1342 = vmatprep.subr.mxu0 0.0
        %1343 = vmatpush1.xpose.msra.mxu0 0.0
        %1344 = vmatprep.subr.mxu0 0.0
        %1345 = vmatpush1.xpose.msra.mxu0 0.0
        %1346 = vmatprep.subr.mxu0 0.0
        %1347 = vmatpush1.xpose.msra.mxu0 0.0
        %1348 = vmatprep.mubr.f32.mxu0 0.0
        %1349 = vmatmul.mubr.f32.gmra.mrb[0].mxu0 %v1276
        %v1350 = vpop.f32.mrb[0].mxu0
        %v1351 = vadd.f32 %v706, %v1350
        %v1352 = vpop.f32.mrb[0].mxu0
        %1353 = vmatprep.mubr.f32.mxu0 0.0
        %1354 = vmatmul.mubr.f32.gmra.mrb[0].mxu0 %v1278
        %v1355 = vpop.f32.mrb[0].mxu0
        %v1356 = vadd.f32 %v707, %v1355
        %v1357 = vpop.f32.mrb[0].mxu0
        %1358 = vdwg.mxu0
        %v1359 = vsel %vm800, %v1351, -inf
        %1360 = vmax.xlane.f32.xlu0 %v1359
        %v1361 = vpop.xlane.xlu0 %1360
        %v1362 = vsel %vm800, %v1356, -inf
        %1363 = vmax.xlane.f32.xlu0 %v1362
        %v1364 = vpop.xlane.xlu0 %1363
        %v1365 = vsub.f32 %v1351, %v1361
        %v1366 = vsub.f32 %v1356, %v1364
        %v1367 = vmul.f32 %v1365, 1.442695
        %v1368 = vpow.pop %v1367
        %v1369 = vmul.f32 %v1366, 1.442695
        %v1370 = vpow.pop %v1369
        %v1371 = vsel %vm800, %v1368, 0.0
        %1372 = vadd.xlane.f32.xlu0 %v1371
        %v1373 = vpop.xlane.xlu0 %1372
        %v1374 = vsel %vm800, %v1370, 0.0
        %1375 = vadd.xlane.f32.xlu0 %v1374
        %v1376 = vpop.xlane.xlu0 %1375
        %v1377 = vrcp.pop %v1373
        %v1378 = vrcp.pop %v1376
        %v1379 = vmul.f32 %v1368, %v1377
        %v1380 = vmul.f32 %v1370, %v1378
        %1381 = vrot.lane.b32.xlu0 %v689, 112
        %v1382 = vpop.permute.xlu0 %1381
        %1383 = vrot.lane.b32.xlu0 %v695, 112
        %v1384 = vpop.permute.xlu0 %1383
        %v1388 = vsel %vm800, %v1379, 0
        %v1391 = vsel %vm800, %v1380, 0
        %1393 = vmatprep.subr.mxu0 0.0
        %1394 = vmatpush1.msra.mxu0 %v1382
        %1395 = vmatprep.subr.mxu0 0.0
        %1396 = vmatpush1.msra.mxu0 %v1384
        %1397 = vmatprep.subr.mxu0 0.0
        %1398 = vmatpush1.msra.mxu0 0.0
        %1399 = vmatprep.subr.mxu0 0.0
        %1400 = vmatpush1.msra.mxu0 0.0
        %1401 = vmatprep.subr.mxu0 0.0
        %1402 = vmatpush1.msra.mxu0 0.0
        %1403 = vmatprep.subr.mxu0 0.0
        %1404 = vmatpush1.msra.mxu0 0.0
        %1405 = vmatprep.subr.mxu0 0.0
        %1406 = vmatpush1.msra.mxu0 0.0
        %1407 = vmatprep.subr.mxu0 0.0
        %1408 = vmatpush1.msra.mxu0 0.0
        %1409 = vmatprep.subr.mxu0 0.0
        %1410 = vmatpush1.msra.mxu0 0.0
        %1411 = vmatprep.subr.mxu0 0.0
        %1412 = vmatpush1.msra.mxu0 0.0
        %1413 = vmatprep.subr.mxu0 0.0
        %1414 = vmatpush1.msra.mxu0 0.0
        %1415 = vmatprep.subr.mxu0 0.0
        %1416 = vmatpush1.msra.mxu0 0.0
        %1417 = vmatprep.subr.mxu0 0.0
        %1418 = vmatpush1.msra.mxu0 0.0
        %1419 = vmatprep.subr.mxu0 0.0
        %1420 = vmatpush1.msra.mxu0 0.0
        %1421 = vmatprep.subr.mxu0 0.0
        %1422 = vmatpush1.msra.mxu0 0.0
        %1423 = vmatprep.subr.mxu0 0.0
        %1424 = vmatpush1.msra.mxu0 0.0
        %1425 = vmatprep.subr.mxu0 0.0
        %1426 = vmatpush1.msra.mxu0 0.0
        %1427 = vmatprep.subr.mxu0 0.0
        %1428 = vmatpush1.msra.mxu0 0.0
        %1429 = vmatprep.subr.mxu0 0.0
        %1430 = vmatpush1.msra.mxu0 0.0
        %1431 = vmatprep.subr.mxu0 0.0
        %1432 = vmatpush1.msra.mxu0 0.0
        %1433 = vmatprep.subr.mxu0 0.0
        %1434 = vmatpush1.msra.mxu0 0.0
        %1435 = vmatprep.subr.mxu0 0.0
        %1436 = vmatpush1.msra.mxu0 0.0
        %1437 = vmatprep.subr.mxu0 0.0
        %1438 = vmatpush1.msra.mxu0 0.0
        %1439 = vmatprep.subr.mxu0 0.0
        %1440 = vmatpush1.msra.mxu0 0.0
        %1441 = vmatprep.subr.mxu0 0.0
        %1442 = vmatpush1.msra.mxu0 0.0
        %1443 = vmatprep.subr.mxu0 0.0
        %1444 = vmatpush1.msra.mxu0 0.0
        %1445 = vmatprep.subr.mxu0 0.0
        %1446 = vmatpush1.msra.mxu0 0.0
        %1447 = vmatprep.subr.mxu0 0.0
        %1448 = vmatpush1.msra.mxu0 0.0
        %1449 = vmatprep.subr.mxu0 0.0
        %1450 = vmatpush1.msra.mxu0 0.0
        %1451 = vmatprep.subr.mxu0 0.0
        %1452 = vmatpush1.msra.mxu0 0.0
        %1453 = vmatprep.subr.mxu0 0.0
        %1454 = vmatpush1.msra.mxu0 0.0
        %1455 = vmatprep.subr.mxu0 0.0
        %1456 = vmatpush1.msra.mxu0 0.0
        %1457 = vmatprep.mubr.f32.mxu0 0.0
        %1458 = vmatmul.mubr.f32.gmra.mrb[0].mxu0 %v1388
        %v1459 = vpop.f32.mrb[0].mxu0
        %v1460 = vadd.f32 0.0, %v1459
        %v1461 = vpop.f32.mrb[0].mxu0
        %1462 = vmatprep.mubr.f32.mxu0 0.0
        %1463 = vmatmul.mubr.f32.gmra.mrb[0].mxu0 %v1391
        %v1464 = vpop.f32.mrb[0].mxu0
        %v1465 = vadd.f32 0.0, %v1464
        %v1466 = vpop.f32.mrb[0].mxu0
        %1467 = vdwg.mxu0
        %v1469 = vsel %vm714, %v1460, 0
        %v1472 = vsel %vm714, %v1465, 0
        %1474 = vmatprep.subr.mxu0 0.0
        %1475 = vmatpush1.msra.mxu0 %v541
        %1476 = vmatprep.subr.mxu0 0.0
        %1477 = vmatpush1.msra.mxu0 0.0
        %1478 = vmatprep.subr.mxu0 0.0
        %1479 = vmatpush1.msra.mxu0 0.0
        %1480 = vmatprep.subr.mxu0 0.0
        %1481 = vmatpush1.msra.mxu0 0.0
        %1482 = vmatprep.subr.mxu0 0.0
        %1483 = vmatpush1.msra.mxu0 0.0
        %1484 = vmatprep.subr.mxu0 0.0
        %1485 = vmatpush1.msra.mxu0 0.0
        %1486 = vmatprep.subr.mxu0 0.0
        %1487 = vmatpush1.msra.mxu0 0.0
        %1488 = vmatprep.subr.mxu0 0.0
        %1489 = vmatpush1.msra.mxu0 0.0
        %1490 = vmatprep.subr.mxu0 0.0
        %1491 = vmatpush1.msra.mxu0 0.0
        %1492 = vmatprep.subr.mxu0 0.0
        %1493 = vmatpush1.msra.mxu0 0.0
        %1494 = vmatprep.subr.mxu0 0.0
        %1495 = vmatpush1.msra.mxu0 0.0
        %1496 = vmatprep.subr.mxu0 0.0
        %1497 = vmatpush1.msra.mxu0 0.0
        %1498 = vmatprep.subr.mxu0 0.0
        %1499 = vmatpush1.msra.mxu0 0.0
        %1500 = vmatprep.subr.mxu0 0.0
        %1501 = vmatpush1.msra.mxu0 0.0
        %1502 = vmatprep.subr.mxu0 0.0
        %1503 = vmatpush1.msra.mxu0 0.0
        %1504 = vmatprep.subr.mxu0 0.0
        %1505 = vmatpush1.msra.mxu0 0.0
        %1506 = vmatprep.subr.mxu0 0.0
        %1507 = vmatpush1.msra.mxu0 0.0
        %1508 = vmatprep.subr.mxu0 0.0
        %1509 = vmatpush1.msra.mxu0 0.0
        %1510 = vmatprep.subr.mxu0 0.0
        %1511 = vmatpush1.msra.mxu0 0.0
        %1512 = vmatprep.subr.mxu0 0.0
        %1513 = vmatpush1.msra.mxu0 0.0
        %1514 = vmatprep.subr.mxu0 0.0
        %1515 = vmatpush1.msra.mxu0 0.0
        %1516 = vmatprep.subr.mxu0 0.0
        %1517 = vmatpush1.msra.mxu0 0.0
        %1518 = vmatprep.subr.mxu0 0.0
        %1519 = vmatpush1.msra.mxu0 0.0
        %1520 = vmatprep.subr.mxu0 0.0
        %1521 = vmatpush1.msra.mxu0 0.0
        %1522 = vmatprep.subr.mxu0 0.0
        %1523 = vmatpush1.msra.mxu0 0.0
        %1524 = vmatprep.subr.mxu0 0.0
        %1525 = vmatpush1.msra.mxu0 0.0
        %1526 = vmatprep.subr.mxu0 0.0
        %1527 = vmatpush1.msra.mxu0 0.0
        %1528 = vmatprep.subr.mxu0 0.0
        %1529 = vmatpush1.msra.mxu0 0.0
        %1530 = vmatprep.subr.mxu0 0.0
        %1531 = vmatpush1.msra.mxu0 0.0
        %1532 = vmatprep.subr.mxu0 0.0
        %1533 = vmatpush1.msra.mxu0 0.0
        %1534 = vmatprep.subr.mxu0 0.0
        %1535 = vmatpush1.msra.mxu0 0.0
        %1536 = vmatprep.subr.mxu0 0.0
        %1537 = vmatpush1.msra.mxu0 0.0
        %1538 = vmatprep.mubr.f32.mxu0 0.0
        %1539 = vmatmul.mubr.f32.gmra.mrb[0].mxu0 %v1469
        %v1540 = vpop.f32.mrb[0].mxu0
        %v1541 = vadd.f32 0.0, %v1540
        %v1542 = vpop.f32.mrb[0].mxu0
        %1543 = vmatprep.mubr.f32.mxu0 0.0
        %1544 = vmatmul.mubr.f32.gmra.mrb[0].mxu0 %v1472
        %v1545 = vpop.f32.mrb[0].mxu0
        %v1546 = vadd.f32 0.0, %v1545
        %v1547 = vpop.f32.mrb[0].mxu0
        %1548 = vdwg.mxu0
        %v1549 = vadd.f32 %v1260, %v1541
        %v1550 = vadd.f32 %v1265, %v1546
        %1551 = vrot.lane.b32.xlu0 %v697, 104
        %v1552 = vpop.permute.xlu0 %1551
        %1553 = vrot.lane.b32.xlu0 %v698, 104
        %v1554 = vpop.permute.xlu0 %1553
        %1555 = vrot.lane.b32.xlu0 %v687, 40
        %v1556 = vpop.permute.xlu0 %1555
        %1557 = vrot.lane.b32.xlu0 %v693, 40
        %v1558 = vpop.permute.xlu0 %1557
        %v1559 = vsel %vm714, %v1552, 0
        %v1561 = vsel %vm714, %v1554, 0
        %v1563 = vsel %vm714, %v1556, 0
        %v1565 = vsel %vm714, %v1558, 0
        %1567 = vmatprep.subr.mxu0 0.0
        %1568 = vmatpush1.xpose.msra.mxu0 %v1563
        %1569 = vmatprep.subr.mxu0 0.0
        %1570 = vmatpush1.xpose.msra.mxu0 %v1565
        %1571 = vmatprep.subr.mxu0 0.0
        %1572 = vmatpush1.xpose.msra.mxu0 0.0
        %1573 = vmatprep.subr.mxu0 0.0
        %1574 = vmatpush1.xpose.msra.mxu0 0.0
        %1575 = vmatprep.subr.mxu0 0.0
        %1576 = vmatpush1.xpose.msra.mxu0 0.0
        %1577 = vmatprep.subr.mxu0 0.0
        %1578 = vmatpush1.xpose.msra.mxu0 0.0
        %1579 = vmatprep.subr.mxu0 0.0
        %1580 = vmatpush1.xpose.msra.mxu0 0.0
        %1581 = vmatprep.subr.mxu0 0.0
        %1582 = vmatpush1.xpose.msra.mxu0 0.0
        %1583 = vmatprep.subr.mxu0 0.0
        %1584 = vmatpush1.xpose.msra.mxu0 0.0
        %1585 = vmatprep.subr.mxu0 0.0
        %1586 = vmatpush1.xpose.msra.mxu0 0.0
        %1587 = vmatprep.subr.mxu0 0.0
        %1588 = vmatpush1.xpose.msra.mxu0 0.0
        %1589 = vmatprep.subr.mxu0 0.0
        %1590 = vmatpush1.xpose.msra.mxu0 0.0
        %1591 = vmatprep.subr.mxu0 0.0
        %1592 = vmatpush1.xpose.msra.mxu0 0.0
        %1593 = vmatprep.subr.mxu0 0.0
        %1594 = vmatpush1.xpose.msra.mxu0 0.0
        %1595 = vmatprep.subr.mxu0 0.0
        %1596 = vmatpush1.xpose.msra.mxu0 0.0
        %1597 = vmatprep.subr.mxu0 0.0
        %1598 = vmatpush1.xpose.msra.mxu0 0.0
        %1599 = vmatprep.subr.mxu0 0.0
        %1600 = vmatpush1.xpose.msra.mxu0 0.0
        %1601 = vmatprep.subr.mxu0 0.0
        %1602 = vmatpush1.xpose.msra.mxu0 0.0
        %1603 = vmatprep.subr.mxu0 0.0
        %1604 = vmatpush1.xpose.msra.mxu0 0.0
        %1605 = vmatprep.subr.mxu0 0.0
        %1606 = vmatpush1.xpose.msra.mxu0 0.0
        %1607 = vmatprep.subr.mxu0 0.0
        %1608 = vmatpush1.xpose.msra.mxu0 0.0
        %1609 = vmatprep.subr.mxu0 0.0
        %1610 = vmatpush1.xpose.msra.mxu0 0.0
        %1611 = vmatprep.subr.mxu0 0.0
        %1612 = vmatpush1.xpose.msra.mxu0 0.0
        %1613 = vmatprep.subr.mxu0 0.0
        %1614 = vmatpush1.xpose.msra.mxu0 0.0
        %1615 = vmatprep.subr.mxu0 0.0
        %1616 = vmatpush1.xpose.msra.mxu0 0.0
        %1617 = vmatprep.subr.mxu0 0.0
        %1618 = vmatpush1.xpose.msra.mxu0 0.0
        %1619 = vmatprep.subr.mxu0 0.0
        %1620 = vmatpush1.xpose.msra.mxu0 0.0
        %1621 = vmatprep.subr.mxu0 0.0
        %1622 = vmatpush1.xpose.msra.mxu0 0.0
        %1623 = vmatprep.subr.mxu0 0.0
        %1624 = vmatpush1.xpose.msra.mxu0 0.0
        %1625 = vmatprep.subr.mxu0 0.0
        %1626 = vmatpush1.xpose.msra.mxu0 0.0
        %1627 = vmatprep.subr.mxu0 0.0
        %1628 = vmatpush1.xpose.msra.mxu0 0.0
        %1629 = vmatprep.subr.mxu0 0.0
        %1630 = vmatpush1.xpose.msra.mxu0 0.0
        %1631 = vmatprep.mubr.f32.mxu0 0.0
        %1632 = vmatmul.mubr.f32.gmra.mrb[0].mxu0 %v1559
        %v1633 = vpop.f32.mrb[0].mxu0
        %v1634 = vadd.f32 %v706, %v1633
        %v1635 = vpop.f32.mrb[0].mxu0
        %1636 = vmatprep.mubr.f32.mxu0 0.0
        %1637 = vmatmul.mubr.f32.gmra.mrb[0].mxu0 %v1561
        %v1638 = vpop.f32.mrb[0].mxu0
        %v1639 = vadd.f32 %v707, %v1638
        %v1640 = vpop.f32.mrb[0].mxu0
        %1641 = vdwg.mxu0
        %v1642 = vsel %vm800, %v1634, -inf
        %1643 = vmax.xlane.f32.xlu0 %v1642
        %v1644 = vpop.xlane.xlu0 %1643
        %v1645 = vsel %vm800, %v1639, -inf
        %1646 = vmax.xlane.f32.xlu0 %v1645
        %v1647 = vpop.xlane.xlu0 %1646
        %v1648 = vsub.f32 %v1634, %v1644
        %v1649 = vsub.f32 %v1639, %v1647
        %v1650 = vmul.f32 %v1648, 1.442695
        %v1651 = vpow.pop %v1650
        %v1652 = vmul.f32 %v1649, 1.442695
        %v1653 = vpow.pop %v1652
        %v1654 = vsel %vm800, %v1651, 0.0
        %1655 = vadd.xlane.f32.xlu0 %v1654
        %v1656 = vpop.xlane.xlu0 %1655
        %v1657 = vsel %vm800, %v1653, 0.0
        %1658 = vadd.xlane.f32.xlu0 %v1657
        %v1659 = vpop.xlane.xlu0 %1658
        %v1660 = vrcp.pop %v1656
        %v1661 = vrcp.pop %v1659
        %v1662 = vmul.f32 %v1651, %v1660
        %v1663 = vmul.f32 %v1653, %v1661
        %1664 = vrot.lane.b32.xlu0 %v689, 104
        %v1665 = vpop.permute.xlu0 %1664
        %1666 = vrot.lane.b32.xlu0 %v695, 104
        %v1667 = vpop.permute.xlu0 %1666
        %v1671 = vsel %vm800, %v1662, 0
        %v1674 = vsel %vm800, %v1663, 0
        %1676 = vmatprep.subr.mxu0 0.0
        %1677 = vmatpush1.msra.mxu0 %v1665
        %1678 = vmatprep.subr.mxu0 0.0
        %1679 = vmatpush1.msra.mxu0 %v1667
        %1680 = vmatprep.subr.mxu0 0.0
        %1681 = vmatpush1.msra.mxu0 0.0
        %1682 = vmatprep.subr.mxu0 0.0
        %1683 = vmatpush1.msra.mxu0 0.0
        %1684 = vmatprep.subr.mxu0 0.0
        %1685 = vmatpush1.msra.mxu0 0.0
        %1686 = vmatprep.subr.mxu0 0.0
        %1687 = vmatpush1.msra.mxu0 0.0
        %1688 = vmatprep.subr.mxu0 0.0
        %1689 = vmatpush1.msra.mxu0 0.0
        %1690 = vmatprep.subr.mxu0 0.0
        %1691 = vmatpush1.msra.mxu0 0.0
        %1692 = vmatprep.subr.mxu0 0.0
        %1693 = vmatpush1.msra.mxu0 0.0
        %1694 = vmatprep.subr.mxu0 0.0
        %1695 = vmatpush1.msra.mxu0 0.0
        %1696 = vmatprep.subr.mxu0 0.0
        %1697 = vmatpush1.msra.mxu0 0.0
        %1698 = vmatprep.subr.mxu0 0.0
        %1699 = vmatpush1.msra.mxu0 0.0
        %1700 = vmatprep.subr.mxu0 0.0
        %1701 = vmatpush1.msra.mxu0 0.0
        %1702 = vmatprep.subr.mxu0 0.0
        %1703 = vmatpush1.msra.mxu0 0.0
        %1704 = vmatprep.subr.mxu0 0.0
        %1705 = vmatpush1.msra.mxu0 0.0
        %1706 = vmatprep.subr.mxu0 0.0
        %1707 = vmatpush1.msra.mxu0 0.0
        %1708 = vmatprep.subr.mxu0 0.0
        %1709 = vmatpush1.msra.mxu0 0.0
        %1710 = vmatprep.subr.mxu0 0.0
        %1711 = vmatpush1.msra.mxu0 0.0
        %1712 = vmatprep.subr.mxu0 0.0
        %1713 = vmatpush1.msra.mxu0 0.0
        %1714 = vmatprep.subr.mxu0 0.0
        %1715 = vmatpush1.msra.mxu0 0.0
        %1716 = vmatprep.subr.mxu0 0.0
        %1717 = vmatpush1.msra.mxu0 0.0
        %1718 = vmatprep.subr.mxu0 0.0
        %1719 = vmatpush1.msra.mxu0 0.0
        %1720 = vmatprep.subr.mxu0 0.0
        %1721 = vmatpush1.msra.mxu0 0.0
        %1722 = vmatprep.subr.mxu0 0.0
        %1723 = vmatpush1.msra.mxu0 0.0
        %1724 = vmatprep.subr.mxu0 0.0
        %1725 = vmatpush1.msra.mxu0 0.0
        %1726 = vmatprep.subr.mxu0 0.0
        %1727 = vmatpush1.msra.mxu0 0.0
        %1728 = vmatprep.subr.mxu0 0.0
        %1729 = vmatpush1.msra.mxu0 0.0
        %1730 = vmatprep.subr.mxu0 0.0
        %1731 = vmatpush1.msra.mxu0 0.0
        %1732 = vmatprep.subr.mxu0 0.0
        %1733 = vmatpush1.msra.mxu0 0.0
        %1734 = vmatprep.subr.mxu0 0.0
        %1735 = vmatpush1.msra.mxu0 0.0
        %1736 = vmatprep.subr.mxu0 0.0
        %1737 = vmatpush1.msra.mxu0 0.0
        %1738 = vmatprep.subr.mxu0 0.0
        %1739 = vmatpush1.msra.mxu0 0.0
        %1740 = vmatprep.mubr.f32.mxu0 0.0
        %1741 = vmatmul.mubr.f32.gmra.mrb[0].mxu0 %v1671
        %v1742 = vpop.f32.mrb[0].mxu0
        %v1743 = vadd.f32 0.0, %v1742
        %v1744 = vpop.f32.mrb[0].mxu0
        %1745 = vmatprep.mubr.f32.mxu0 0.0
        %1746 = vmatmul.mubr.f32.gmra.mrb[0].mxu0 %v1674
        %v1747 = vpop.f32.mrb[0].mxu0
        %v1748 = vadd.f32 0.0, %v1747
        %v1749 = vpop.f32.mrb[0].mxu0
        %1750 = vdwg.mxu0
        %v1752 = vsel %vm714, %v1743, 0
        %v1755 = vsel %vm714, %v1748, 0
        %1757 = vmatprep.subr.mxu0 0.0
        %1758 = vmatpush1.msra.mxu0 %v542
        %1759 = vmatprep.subr.mxu0 0.0
        %1760 = vmatpush1.msra.mxu0 0.0
        %1761 = vmatprep.subr.mxu0 0.0
        %1762 = vmatpush1.msra.mxu0 0.0
        %1763 = vmatprep.subr.mxu0 0.0
        %1764 = vmatpush1.msra.mxu0 0.0
        %1765 = vmatprep.subr.mxu0 0.0
        %1766 = vmatpush1.msra.mxu0 0.0
        %1767 = vmatprep.subr.mxu0 0.0
        %1768 = vmatpush1.msra.mxu0 0.0
        %1769 = vmatprep.subr.mxu0 0.0
        %1770 = vmatpush1.msra.mxu0 0.0
        %1771 = vmatprep.subr.mxu0 0.0
        %1772 = vmatpush1.msra.mxu0 0.0
        %1773 = vmatprep.subr.mxu0 0.0
        %1774 = vmatpush1.msra.mxu0 0.0
        %1775 = vmatprep.subr.mxu0 0.0
        %1776 = vmatpush1.msra.mxu0 0.0
        %1777 = vmatprep.subr.mxu0 0.0
        %1778 = vmatpush1.msra.mxu0 0.0
        %1779 = vmatprep.subr.mxu0 0.0
        %1780 = vmatpush1.msra.mxu0 0.0
        %1781 = vmatprep.subr.mxu0 0.0
        %1782 = vmatpush1.msra.mxu0 0.0
        %1783 = vmatprep.subr.mxu0 0.0
        %1784 = vmatpush1.msra.mxu0 0.0
        %1785 = vmatprep.subr.mxu0 0.0
        %1786 = vmatpush1.msra.mxu0 0.0
        %1787 = vmatprep.subr.mxu0 0.0
        %1788 = vmatpush1.msra.mxu0 0.0
        %1789 = vmatprep.subr.mxu0 0.0
        %1790 = vmatpush1.msra.mxu0 0.0
        %1791 = vmatprep.subr.mxu0 0.0
        %1792 = vmatpush1.msra.mxu0 0.0
        %1793 = vmatprep.subr.mxu0 0.0
        %1794 = vmatpush1.msra.mxu0 0.0
        %1795 = vmatprep.subr.mxu0 0.0
        %1796 = vmatpush1.msra.mxu0 0.0
        %1797 = vmatprep.subr.mxu0 0.0
        %1798 = vmatpush1.msra.mxu0 0.0
        %1799 = vmatprep.subr.mxu0 0.0
        %1800 = vmatpush1.msra.mxu0 0.0
        %1801 = vmatprep.subr.mxu0 0.0
        %1802 = vmatpush1.msra.mxu0 0.0
        %1803 = vmatprep.subr.mxu0 0.0
        %1804 = vmatpush1.msra.mxu0 0.0
        %1805 = vmatprep.subr.mxu0 0.0
        %1806 = vmatpush1.msra.mxu0 0.0
        %1807 = vmatprep.subr.mxu0 0.0
        %1808 = vmatpush1.msra.mxu0 0.0
        %1809 = vmatprep.subr.mxu0 0.0
        %1810 = vmatpush1.msra.mxu0 0.0
        %1811 = vmatprep.subr.mxu0 0.0
        %1812 = vmatpush1.msra.mxu0 0.0
        %1813 = vmatprep.subr.mxu0 0.0
        %1814 = vmatpush1.msra.mxu0 0.0
        %1815 = vmatprep.subr.mxu0 0.0
        %1816 = vmatpush1.msra.mxu0 0.0
        %1817 = vmatprep.subr.mxu0 0.0
        %1818 = vmatpush1.msra.mxu0 0.0
        %1819 = vmatprep.subr.mxu0 0.0
        %1820 = vmatpush1.msra.mxu0 0.0
        %1821 = vmatprep.mubr.f32.mxu0 0.0
        %1822 = vmatmul.mubr.f32.gmra.mrb[0].mxu0 %v1752
        %v1823 = vpop.f32.mrb[0].mxu0
        %v1824 = vadd.f32 0.0, %v1823
        %v1825 = vpop.f32.mrb[0].mxu0
        %1826 = vmatprep.mubr.f32.mxu0 0.0
        %1827 = vmatmul.mubr.f32.gmra.mrb[0].mxu0 %v1755
        %v1828 = vpop.f32.mrb[0].mxu0
        %v1829 = vadd.f32 0.0, %v1828
        %v1830 = vpop.f32.mrb[0].mxu0
        %1831 = vdwg.mxu0
        %v1832 = vadd.f32 %v1549, %v1824
        %v1833 = vadd.f32 %v1550, %v1829
        %1834 = vrot.lane.b32.xlu0 %v697, 96
        %v1835 = vpop.permute.xlu0 %1834
        %1836 = vrot.lane.b32.xlu0 %v698, 96
        %v1837 = vpop.permute.xlu0 %1836
        %1838 = vrot.lane.b32.xlu0 %v687, 32
        %v1839 = vpop.permute.xlu0 %1838
        %1840 = vrot.lane.b32.xlu0 %v693, 32
        %v1841 = vpop.permute.xlu0 %1840
        %v1842 = vsel %vm714, %v1835, 0
        %v1844 = vsel %vm714, %v1837, 0
        %v1846 = vsel %vm714, %v1839, 0
        %v1848 = vsel %vm714, %v1841, 0
        %1850 = vmatprep.subr.mxu0 0.0
        %1851 = vmatpush1.xpose.msra.mxu0 %v1846
        %1852 = vmatprep.subr.mxu0 0.0
        %1853 = vmatpush1.xpose.msra.mxu0 %v1848
        %1854 = vmatprep.subr.mxu0 0.0
        %1855 = vmatpush1.xpose.msra.mxu0 0.0
        %1856 = vmatprep.subr.mxu0 0.0
        %1857 = vmatpush1.xpose.msra.mxu0 0.0
        %1858 = vmatprep.subr.mxu0 0.0
        %1859 = vmatpush1.xpose.msra.mxu0 0.0
        %1860 = vmatprep.subr.mxu0 0.0
        %1861 = vmatpush1.xpose.msra.mxu0 0.0
        %1862 = vmatprep.subr.mxu0 0.0
        %1863 = vmatpush1.xpose.msra.mxu0 0.0
        %1864 = vmatprep.subr.mxu0 0.0
        %1865 = vmatpush1.xpose.msra.mxu0 0.0
        %1866 = vmatprep.subr.mxu0 0.0
        %1867 = vmatpush1.xpose.msra.mxu0 0.0
        %1868 = vmatprep.subr.mxu0 0.0
        %1869 = vmatpush1.xpose.msra.mxu0 0.0
        %1870 = vmatprep.subr.mxu0 0.0
        %1871 = vmatpush1.xpose.msra.mxu0 0.0
        %1872 = vmatprep.subr.mxu0 0.0
        %1873 = vmatpush1.xpose.msra.mxu0 0.0
        %1874 = vmatprep.subr.mxu0 0.0
        %1875 = vmatpush1.xpose.msra.mxu0 0.0
        %1876 = vmatprep.subr.mxu0 0.0
        %1877 = vmatpush1.xpose.msra.mxu0 0.0
        %1878 = vmatprep.subr.mxu0 0.0
        %1879 = vmatpush1.xpose.msra.mxu0 0.0
        %1880 = vmatprep.subr.mxu0 0.0
        %1881 = vmatpush1.xpose.msra.mxu0 0.0
        %1882 = vmatprep.subr.mxu0 0.0
        %1883 = vmatpush1.xpose.msra.mxu0 0.0
        %1884 = vmatprep.subr.mxu0 0.0
        %1885 = vmatpush1.xpose.msra.mxu0 0.0
        %1886 = vmatprep.subr.mxu0 0.0
        %1887 = vmatpush1.xpose.msra.mxu0 0.0
        %1888 = vmatprep.subr.mxu0 0.0
        %1889 = vmatpush1.xpose.msra.mxu0 0.0
        %1890 = vmatprep.subr.mxu0 0.0
        %1891 = vmatpush1.xpose.msra.mxu0 0.0
        %1892 = vmatprep.subr.mxu0 0.0
        %1893 = vmatpush1.xpose.msra.mxu0 0.0
        %1894 = vmatprep.subr.mxu0 0.0
        %1895 = vmatpush1.xpose.msra.mxu0 0.0
        %1896 = vmatprep.subr.mxu0 0.0
        %1897 = vmatpush1.xpose.msra.mxu0 0.0
        %1898 = vmatprep.subr.mxu0 0.0
        %1899 = vmatpush1.xpose.msra.mxu0 0.0
        %1900 = vmatprep.subr.mxu0 0.0
        %1901 = vmatpush1.xpose.msra.mxu0 0.0
        %1902 = vmatprep.subr.mxu0 0.0
        %1903 = vmatpush1.xpose.msra.mxu0 0.0
        %1904 = vmatprep.subr.mxu0 0.0
        %1905 = vmatpush1.xpose.msra.mxu0 0.0
        %1906 = vmatprep.subr.mxu0 0.0
        %1907 = vmatpush1.xpose.msra.mxu0 0.0
        %1908 = vmatprep.subr.mxu0 0.0
        %1909 = vmatpush1.xpose.msra.mxu0 0.0
        %1910 = vmatprep.subr.mxu0 0.0
        %1911 = vmatpush1.xpose.msra.mxu0 0.0
        %1912 = vmatprep.subr.mxu0 0.0
        %1913 = vmatpush1.xpose.msra.mxu0 0.0
        %1914 = vmatprep.mubr.f32.mxu0 0.0
        %1915 = vmatmul.mubr.f32.gmra.mrb[0].mxu0 %v1842
        %v1916 = vpop.f32.mrb[0].mxu0
        %v1917 = vadd.f32 %v706, %v1916
        %v1918 = vpop.f32.mrb[0].mxu0
        %1919 = vmatprep.mubr.f32.mxu0 0.0
        %1920 = vmatmul.mubr.f32.gmra.mrb[0].mxu0 %v1844
        %v1921 = vpop.f32.mrb[0].mxu0
        %v1922 = vadd.f32 %v707, %v1921
        %v1923 = vpop.f32.mrb[0].mxu0
        %1924 = vdwg.mxu0
        %v1925 = vsel %vm800, %v1917, -inf
        %1926 = vmax.xlane.f32.xlu0 %v1925
        %v1927 = vpop.xlane.xlu0 %1926
        %v1928 = vsel %vm800, %v1922, -inf
        %1929 = vmax.xlane.f32.xlu0 %v1928
        %v1930 = vpop.xlane.xlu0 %1929
        %v1931 = vsub.f32 %v1917, %v1927
        %v1932 = vsub.f32 %v1922, %v1930
        %v1933 = vmul.f32 %v1931, 1.442695
        %v1934 = vpow.pop %v1933
        %v1935 = vmul.f32 %v1932, 1.442695
        %v1936 = vpow.pop %v1935
        %v1937 = vsel %vm800, %v1934, 0.0
        %1938 = vadd.xlane.f32.xlu0 %v1937
        %v1939 = vpop.xlane.xlu0 %1938
        %v1940 = vsel %vm800, %v1936, 0.0
        %1941 = vadd.xlane.f32.xlu0 %v1940
        %v1942 = vpop.xlane.xlu0 %1941
        %v1943 = vrcp.pop %v1939
        %v1944 = vrcp.pop %v1942
        %v1945 = vmul.f32 %v1934, %v1943
        %v1946 = vmul.f32 %v1936, %v1944
        %1947 = vrot.lane.b32.xlu0 %v689, 96
        %v1948 = vpop.permute.xlu0 %1947
        %1949 = vrot.lane.b32.xlu0 %v695, 96
        %v1950 = vpop.permute.xlu0 %1949
        %v1954 = vsel %vm800, %v1945, 0
        %v1957 = vsel %vm800, %v1946, 0
        %1959 = vmatprep.subr.mxu0 0.0
        %1960 = vmatpush1.msra.mxu0 %v1948
        %1961 = vmatprep.subr.mxu0 0.0
        %1962 = vmatpush1.msra.mxu0 %v1950
        %1963 = vmatprep.subr.mxu0 0.0
        %1964 = vmatpush1.msra.mxu0 0.0
        %1965 = vmatprep.subr.mxu0 0.0
        %1966 = vmatpush1.msra.mxu0 0.0
        %1967 = vmatprep.subr.mxu0 0.0
        %1968 = vmatpush1.msra.mxu0 0.0
        %1969 = vmatprep.subr.mxu0 0.0
        %1970 = vmatpush1.msra.mxu0 0.0
        %1971 = vmatprep.subr.mxu0 0.0
        %1972 = vmatpush1.msra.mxu0 0.0
        %1973 = vmatprep.subr.mxu0 0.0
        %1974 = vmatpush1.msra.mxu0 0.0
        %1975 = vmatprep.subr.mxu0 0.0
        %1976 = vmatpush1.msra.mxu0 0.0
        %1977 = vmatprep.subr.mxu0 0.0
        %1978 = vmatpush1.msra.mxu0 0.0
        %1979 = vmatprep.subr.mxu0 0.0
        %1980 = vmatpush1.msra.mxu0 0.0
        %1981 = vmatprep.subr.mxu0 0.0
        %1982 = vmatpush1.msra.mxu0 0.0
        %1983 = vmatprep.subr.mxu0 0.0
        %1984 = vmatpush1.msra.mxu0 0.0
        %1985 = vmatprep.subr.mxu0 0.0
        %1986 = vmatpush1.msra.mxu0 0.0
        %1987 = vmatprep.subr.mxu0 0.0
        %1988 = vmatpush1.msra.mxu0 0.0
        %1989 = vmatprep.subr.mxu0 0.0
        %1990 = vmatpush1.msra.mxu0 0.0
        %1991 = vmatprep.subr.mxu0 0.0
        %1992 = vmatpush1.msra.mxu0 0.0
        %1993 = vmatprep.subr.mxu0 0.0
        %1994 = vmatpush1.msra.mxu0 0.0
        %1995 = vmatprep.subr.mxu0 0.0
        %1996 = vmatpush1.msra.mxu0 0.0
        %1997 = vmatprep.subr.mxu0 0.0
        %1998 = vmatpush1.msra.mxu0 0.0
        %1999 = vmatprep.subr.mxu0 0.0
        %2000 = vmatpush1.msra.mxu0 0.0
        %2001 = vmatprep.subr.mxu0 0.0
        %2002 = vmatpush1.msra.mxu0 0.0
        %2003 = vmatprep.subr.mxu0 0.0
        %2004 = vmatpush1.msra.mxu0 0.0
        %2005 = vmatprep.subr.mxu0 0.0
        %2006 = vmatpush1.msra.mxu0 0.0
        %2007 = vmatprep.subr.mxu0 0.0
        %2008 = vmatpush1.msra.mxu0 0.0
        %2009 = vmatprep.subr.mxu0 0.0
        %2010 = vmatpush1.msra.mxu0 0.0
        %2011 = vmatprep.subr.mxu0 0.0
        %2012 = vmatpush1.msra.mxu0 0.0
        %2013 = vmatprep.subr.mxu0 0.0
        %2014 = vmatpush1.msra.mxu0 0.0
        %2015 = vmatprep.subr.mxu0 0.0
        %2016 = vmatpush1.msra.mxu0 0.0
        %2017 = vmatprep.subr.mxu0 0.0
        %2018 = vmatpush1.msra.mxu0 0.0
        %2019 = vmatprep.subr.mxu0 0.0
        %2020 = vmatpush1.msra.mxu0 0.0
        %2021 = vmatprep.subr.mxu0 0.0
        %2022 = vmatpush1.msra.mxu0 0.0
        %2023 = vmatprep.mubr.f32.mxu0 0.0
        %2024 = vmatmul.mubr.f32.gmra.mrb[0].mxu0 %v1954
        %v2025 = vpop.f32.mrb[0].mxu0
        %v2026 = vadd.f32 0.0, %v2025
        %v2027 = vpop.f32.mrb[0].mxu0
        %2028 = vmatprep.mubr.f32.mxu0 0.0
        %2029 = vmatmul.mubr.f32.gmra.mrb[0].mxu0 %v1957
        %v2030 = vpop.f32.mrb[0].mxu0
        %v2031 = vadd.f32 0.0, %v2030
        %v2032 = vpop.f32.mrb[0].mxu0
        %2033 = vdwg.mxu0
        %v2035 = vsel %vm714, %v2026, 0
        %v2038 = vsel %vm714, %v2031, 0
        %2040 = vmatprep.subr.mxu0 0.0
        %2041 = vmatpush1.msra.mxu0 %v543
        %2042 = vmatprep.subr.mxu0 0.0
        %2043 = vmatpush1.msra.mxu0 0.0
        %2044 = vmatprep.subr.mxu0 0.0
        %2045 = vmatpush1.msra.mxu0 0.0
        %2046 = vmatprep.subr.mxu0 0.0
        %2047 = vmatpush1.msra.mxu0 0.0
        %2048 = vmatprep.subr.mxu0 0.0
        %2049 = vmatpush1.msra.mxu0 0.0
        %2050 = vmatprep.subr.mxu0 0.0
        %2051 = vmatpush1.msra.mxu0 0.0
        %2052 = vmatprep.subr.mxu0 0.0
        %2053 = vmatpush1.msra.mxu0 0.0
        %2054 = vmatprep.subr.mxu0 0.0
        %2055 = vmatpush1.msra.mxu0 0.0
        %2056 = vmatprep.subr.mxu0 0.0
        %2057 = vmatpush1.msra.mxu0 0.0
        %2058 = vmatprep.subr.mxu0 0.0
        %2059 = vmatpush1.msra.mxu0 0.0
        %2060 = vmatprep.subr.mxu0 0.0
        %2061 = vmatpush1.msra.mxu0 0.0
        %2062 = vmatprep.subr.mxu0 0.0
        %2063 = vmatpush1.msra.mxu0 0.0
        %2064 = vmatprep.subr.mxu0 0.0
        %2065 = vmatpush1.msra.mxu0 0.0
        %2066 = vmatprep.subr.mxu0 0.0
        %2067 = vmatpush1.msra.mxu0 0.0
        %2068 = vmatprep.subr.mxu0 0.0
        %2069 = vmatpush1.msra.mxu0 0.0
        %2070 = vmatprep.subr.mxu0 0.0
        %2071 = vmatpush1.msra.mxu0 0.0
        %2072 = vmatprep.subr.mxu0 0.0
        %2073 = vmatpush1.msra.mxu0 0.0
        %2074 = vmatprep.subr.mxu0 0.0
        %2075 = vmatpush1.msra.mxu0 0.0
        %2076 = vmatprep.subr.mxu0 0.0
        %2077 = vmatpush1.msra.mxu0 0.0
        %2078 = vmatprep.subr.mxu0 0.0
        %2079 = vmatpush1.msra.mxu0 0.0
        %2080 = vmatprep.subr.mxu0 0.0
        %2081 = vmatpush1.msra.mxu0 0.0
        %2082 = vmatprep.subr.mxu0 0.0
        %2083 = vmatpush1.msra.mxu0 0.0
        %2084 = vmatprep.subr.mxu0 0.0
        %2085 = vmatpush1.msra.mxu0 0.0
        %2086 = vmatprep.subr.mxu0 0.0
        %2087 = vmatpush1.msra.mxu0 0.0
        %2088 = vmatprep.subr.mxu0 0.0
        %2089 = vmatpush1.msra.mxu0 0.0
        %2090 = vmatprep.subr.mxu0 0.0
        %2091 = vmatpush1.msra.mxu0 0.0
        %2092 = vmatprep.subr.mxu0 0.0
        %2093 = vmatpush1.msra.mxu0 0.0
        %2094 = vmatprep.subr.mxu0 0.0
        %2095 = vmatpush1.msra.mxu0 0.0
        %2096 = vmatprep.subr.mxu0 0.0
        %2097 = vmatpush1.msra.mxu0 0.0
        %2098 = vmatprep.subr.mxu0 0.0
        %2099 = vmatpush1.msra.mxu0 0.0
        %2100 = vmatprep.subr.mxu0 0.0
        %2101 = vmatpush1.msra.mxu0 0.0
        %2102 = vmatprep.subr.mxu0 0.0
        %2103 = vmatpush1.msra.mxu0 0.0
        %2104 = vmatprep.mubr.f32.mxu0 0.0
        %2105 = vmatmul.mubr.f32.gmra.mrb[0].mxu0 %v2035
        %v2106 = vpop.f32.mrb[0].mxu0
        %v2107 = vadd.f32 0.0, %v2106
        %v2108 = vpop.f32.mrb[0].mxu0
        %2109 = vmatprep.mubr.f32.mxu0 0.0
        %2110 = vmatmul.mubr.f32.gmra.mrb[0].mxu0 %v2038
        %v2111 = vpop.f32.mrb[0].mxu0
        %v2112 = vadd.f32 0.0, %v2111
        %v2113 = vpop.f32.mrb[0].mxu0
        %2114 = vdwg.mxu0
        %v2115 = vadd.f32 %v1832, %v2107
        %v2116 = vadd.f32 %v1833, %v2112
        %2117 = vrot.lane.b32.xlu0 %v697, 88
        %v2118 = vpop.permute.xlu0 %2117
        %2119 = vrot.lane.b32.xlu0 %v698, 88
        %v2120 = vpop.permute.xlu0 %2119
        %2121 = vrot.lane.b32.xlu0 %v687, 24
        %v2122 = vpop.permute.xlu0 %2121
        %2123 = vrot.lane.b32.xlu0 %v693, 24
        %v2124 = vpop.permute.xlu0 %2123
        %v2125 = vsel %vm714, %v2118, 0
        %v2127 = vsel %vm714, %v2120, 0
        %v2129 = vsel %vm714, %v2122, 0
        %v2131 = vsel %vm714, %v2124, 0
        %2133 = vmatprep.subr.mxu0 0.0
        %2134 = vmatpush1.xpose.msra.mxu0 %v2129
        %2135 = vmatprep.subr.mxu0 0.0
        %2136 = vmatpush1.xpose.msra.mxu0 %v2131
        %2137 = vmatprep.subr.mxu0 0.0
        %2138 = vmatpush1.xpose.msra.mxu0 0.0
        %2139 = vmatprep.subr.mxu0 0.0
        %2140 = vmatpush1.xpose.msra.mxu0 0.0
        %2141 = vmatprep.subr.mxu0 0.0
        %2142 = vmatpush1.xpose.msra.mxu0 0.0
        %2143 = vmatprep.subr.mxu0 0.0
        %2144 = vmatpush1.xpose.msra.mxu0 0.0
        %2145 = vmatprep.subr.mxu0 0.0
        %2146 = vmatpush1.xpose.msra.mxu0 0.0
        %2147 = vmatprep.subr.mxu0 0.0
        %2148 = vmatpush1.xpose.msra.mxu0 0.0
        %2149 = vmatprep.subr.mxu0 0.0
        %2150 = vmatpush1.xpose.msra.mxu0 0.0
        %2151 = vmatprep.subr.mxu0 0.0
        %2152 = vmatpush1.xpose.msra.mxu0 0.0
        %2153 = vmatprep.subr.mxu0 0.0
        %2154 = vmatpush1.xpose.msra.mxu0 0.0
        %2155 = vmatprep.subr.mxu0 0.0
        %2156 = vmatpush1.xpose.msra.mxu0 0.0
        %2157 = vmatprep.subr.mxu0 0.0
        %2158 = vmatpush1.xpose.msra.mxu0 0.0
        %2159 = vmatprep.subr.mxu0 0.0
        %2160 = vmatpush1.xpose.msra.mxu0 0.0
        %2161 = vmatprep.subr.mxu0 0.0
        %2162 = vmatpush1.xpose.msra.mxu0 0.0
        %2163 = vmatprep.subr.mxu0 0.0
        %2164 = vmatpush1.xpose.msra.mxu0 0.0
        %2165 = vmatprep.subr.mxu0 0.0
        %2166 = vmatpush1.xpose.msra.mxu0 0.0
        %2167 = vmatprep.subr.mxu0 0.0
        %2168 = vmatpush1.xpose.msra.mxu0 0.0
        %2169 = vmatprep.subr.mxu0 0.0
        %2170 = vmatpush1.xpose.msra.mxu0 0.0
        %2171 = vmatprep.subr.mxu0 0.0
        %2172 = vmatpush1.xpose.msra.mxu0 0.0
        %2173 = vmatprep.subr.mxu0 0.0
        %2174 = vmatpush1.xpose.msra.mxu0 0.0
        %2175 = vmatprep.subr.mxu0 0.0
        %2176 = vmatpush1.xpose.msra.mxu0 0.0
        %2177 = vmatprep.subr.mxu0 0.0
        %2178 = vmatpush1.xpose.msra.mxu0 0.0
        %2179 = vmatprep.subr.mxu0 0.0
        %2180 = vmatpush1.xpose.msra.mxu0 0.0
        %2181 = vmatprep.subr.mxu0 0.0
        %2182 = vmatpush1.xpose.msra.mxu0 0.0
        %2183 = vmatprep.subr.mxu0 0.0
        %2184 = vmatpush1.xpose.msra.mxu0 0.0
        %2185 = vmatprep.subr.mxu0 0.0
        %2186 = vmatpush1.xpose.msra.mxu0 0.0
        %2187 = vmatprep.subr.mxu0 0.0
        %2188 = vmatpush1.xpose.msra.mxu0 0.0
        %2189 = vmatprep.subr.mxu0 0.0
        %2190 = vmatpush1.xpose.msra.mxu0 0.0
        %2191 = vmatprep.subr.mxu0 0.0
        %2192 = vmatpush1.xpose.msra.mxu0 0.0
        %2193 = vmatprep.subr.mxu0 0.0
        %2194 = vmatpush1.xpose.msra.mxu0 0.0
        %2195 = vmatprep.subr.mxu0 0.0
        %2196 = vmatpush1.xpose.msra.mxu0 0.0
        %2197 = vmatprep.mubr.f32.mxu0 0.0
        %2198 = vmatmul.mubr.f32.gmra.mrb[0].mxu0 %v2125
        %v2199 = vpop.f32.mrb[0].mxu0
        %v2200 = vadd.f32 %v706, %v2199
        %v2201 = vpop.f32.mrb[0].mxu0
        %2202 = vmatprep.mubr.f32.mxu0 0.0
        %2203 = vmatmul.mubr.f32.gmra.mrb[0].mxu0 %v2127
        %v2204 = vpop.f32.mrb[0].mxu0
        %v2205 = vadd.f32 %v707, %v2204
        %v2206 = vpop.f32.mrb[0].mxu0
        %2207 = vdwg.mxu0
        %v2208 = vsel %vm800, %v2200, -inf
        %2209 = vmax.xlane.f32.xlu0 %v2208
        %v2210 = vpop.xlane.xlu0 %2209
        %v2211 = vsel %vm800, %v2205, -inf
        %2212 = vmax.xlane.f32.xlu0 %v2211
        %v2213 = vpop.xlane.xlu0 %2212
        %v2214 = vsub.f32 %v2200, %v2210
        %v2215 = vsub.f32 %v2205, %v2213
        %v2216 = vmul.f32 %v2214, 1.442695
        %v2217 = vpow.pop %v2216
        %v2218 = vmul.f32 %v2215, 1.442695
        %v2219 = vpow.pop %v2218
        %v2220 = vsel %vm800, %v2217, 0.0
        %2221 = vadd.xlane.f32.xlu0 %v2220
        %v2222 = vpop.xlane.xlu0 %2221
        %v2223 = vsel %vm800, %v2219, 0.0
        %2224 = vadd.xlane.f32.xlu0 %v2223
        %v2225 = vpop.xlane.xlu0 %2224
        %v2226 = vrcp.pop %v2222
        %v2227 = vrcp.pop %v2225
        %v2228 = vmul.f32 %v2217, %v2226
        %v2229 = vmul.f32 %v2219, %v2227
        %2230 = vrot.lane.b32.xlu0 %v689, 88
        %v2231 = vpop.permute.xlu0 %2230
        %2232 = vrot.lane.b32.xlu0 %v695, 88
        %v2233 = vpop.permute.xlu0 %2232
        %v2237 = vsel %vm800, %v2228, 0
        %v2240 = vsel %vm800, %v2229, 0
        %2242 = vmatprep.subr.mxu0 0.0
        %2243 = vmatpush1.msra.mxu0 %v2231
        %2244 = vmatprep.subr.mxu0 0.0
        %2245 = vmatpush1.msra.mxu0 %v2233
        %2246 = vmatprep.subr.mxu0 0.0
        %2247 = vmatpush1.msra.mxu0 0.0
        %2248 = vmatprep.subr.mxu0 0.0
        %2249 = vmatpush1.msra.mxu0 0.0
        %2250 = vmatprep.subr.mxu0 0.0
        %2251 = vmatpush1.msra.mxu0 0.0
        %2252 = vmatprep.subr.mxu0 0.0
        %2253 = vmatpush1.msra.mxu0 0.0
        %2254 = vmatprep.subr.mxu0 0.0
        %2255 = vmatpush1.msra.mxu0 0.0
        %2256 = vmatprep.subr.mxu0 0.0
        %2257 = vmatpush1.msra.mxu0 0.0
        %2258 = vmatprep.subr.mxu0 0.0
        %2259 = vmatpush1.msra.mxu0 0.0
        %2260 = vmatprep.subr.mxu0 0.0
        %2261 = vmatpush1.msra.mxu0 0.0
        %2262 = vmatprep.subr.mxu0 0.0
        %2263 = vmatpush1.msra.mxu0 0.0
        %2264 = vmatprep.subr.mxu0 0.0
        %2265 = vmatpush1.msra.mxu0 0.0
        %2266 = vmatprep.subr.mxu0 0.0
        %2267 = vmatpush1.msra.mxu0 0.0
        %2268 = vmatprep.subr.mxu0 0.0
        %2269 = vmatpush1.msra.mxu0 0.0
        %2270 = vmatprep.subr.mxu0 0.0
        %2271 = vmatpush1.msra.mxu0 0.0
        %2272 = vmatprep.subr.mxu0 0.0
        %2273 = vmatpush1.msra.mxu0 0.0
        %2274 = vmatprep.subr.mxu0 0.0
        %2275 = vmatpush1.msra.mxu0 0.0
        %2276 = vmatprep.subr.mxu0 0.0
        %2277 = vmatpush1.msra.mxu0 0.0
        %2278 = vmatprep.subr.mxu0 0.0
        %2279 = vmatpush1.msra.mxu0 0.0
        %2280 = vmatprep.subr.mxu0 0.0
        %2281 = vmatpush1.msra.mxu0 0.0
        %2282 = vmatprep.subr.mxu0 0.0
        %2283 = vmatpush1.msra.mxu0 0.0
        %2284 = vmatprep.subr.mxu0 0.0
        %2285 = vmatpush1.msra.mxu0 0.0
        %2286 = vmatprep.subr.mxu0 0.0
        %2287 = vmatpush1.msra.mxu0 0.0
        %2288 = vmatprep.subr.mxu0 0.0
        %2289 = vmatpush1.msra.mxu0 0.0
        %2290 = vmatprep.subr.mxu0 0.0
        %2291 = vmatpush1.msra.mxu0 0.0
        %2292 = vmatprep.subr.mxu0 0.0
        %2293 = vmatpush1.msra.mxu0 0.0
        %2294 = vmatprep.subr.mxu0 0.0
        %2295 = vmatpush1.msra.mxu0 0.0
        %2296 = vmatprep.subr.mxu0 0.0
        %2297 = vmatpush1.msra.mxu0 0.0
        %2298 = vmatprep.subr.mxu0 0.0
        %2299 = vmatpush1.msra.mxu0 0.0
        %2300 = vmatprep.subr.mxu0 0.0
        %2301 = vmatpush1.msra.mxu0 0.0
        %2302 = vmatprep.subr.mxu0 0.0
        %2303 = vmatpush1.msra.mxu0 0.0
        %2304 = vmatprep.subr.mxu0 0.0
        %2305 = vmatpush1.msra.mxu0 0.0
        %2306 = vmatprep.mubr.f32.mxu0 0.0
        %2307 = vmatmul.mubr.f32.gmra.mrb[0].mxu0 %v2237
        %v2308 = vpop.f32.mrb[0].mxu0
        %v2309 = vadd.f32 0.0, %v2308
        %v2310 = vpop.f32.mrb[0].mxu0
        %2311 = vmatprep.mubr.f32.mxu0 0.0
        %2312 = vmatmul.mubr.f32.gmra.mrb[0].mxu0 %v2240
        %v2313 = vpop.f32.mrb[0].mxu0
        %v2314 = vadd.f32 0.0, %v2313
        %v2315 = vpop.f32.mrb[0].mxu0
        %2316 = vdwg.mxu0
        %v2318 = vsel %vm714, %v2309, 0
        %v2321 = vsel %vm714, %v2314, 0
        %2323 = vmatprep.subr.mxu0 0.0
        %2324 = vmatpush1.msra.mxu0 %v544
        %2325 = vmatprep.subr.mxu0 0.0
        %2326 = vmatpush1.msra.mxu0 0.0
        %2327 = vmatprep.subr.mxu0 0.0
        %2328 = vmatpush1.msra.mxu0 0.0
        %2329 = vmatprep.subr.mxu0 0.0
        %2330 = vmatpush1.msra.mxu0 0.0
        %2331 = vmatprep.subr.mxu0 0.0
        %2332 = vmatpush1.msra.mxu0 0.0
        %2333 = vmatprep.subr.mxu0 0.0
        %2334 = vmatpush1.msra.mxu0 0.0
        %2335 = vmatprep.subr.mxu0 0.0
        %2336 = vmatpush1.msra.mxu0 0.0
        %2337 = vmatprep.subr.mxu0 0.0
        %2338 = vmatpush1.msra.mxu0 0.0
        %2339 = vmatprep.subr.mxu0 0.0
        %2340 = vmatpush1.msra.mxu0 0.0
        %2341 = vmatprep.subr.mxu0 0.0
        %2342 = vmatpush1.msra.mxu0 0.0
        %2343 = vmatprep.subr.mxu0 0.0
        %2344 = vmatpush1.msra.mxu0 0.0
        %2345 = vmatprep.subr.mxu0 0.0
        %2346 = vmatpush1.msra.mxu0 0.0
        %2347 = vmatprep.subr.mxu0 0.0
        %2348 = vmatpush1.msra.mxu0 0.0
        %2349 = vmatprep.subr.mxu0 0.0
        %2350 = vmatpush1.msra.mxu0 0.0
        %2351 = vmatprep.subr.mxu0 0.0
        %2352 = vmatpush1.msra.mxu0 0.0
        %2353 = vmatprep.subr.mxu0 0.0
        %2354 = vmatpush1.msra.mxu0 0.0
        %2355 = vmatprep.subr.mxu0 0.0
        %2356 = vmatpush1.msra.mxu0 0.0
        %2357 = vmatprep.subr.mxu0 0.0
        %2358 = vmatpush1.msra.mxu0 0.0
        %2359 = vmatprep.subr.mxu0 0.0
        %2360 = vmatpush1.msra.mxu0 0.0
        %2361 = vmatprep.subr.mxu0 0.0
        %2362 = vmatpush1.msra.mxu0 0.0
        %2363 = vmatprep.subr.mxu0 0.0
        %2364 = vmatpush1.msra.mxu0 0.0
        %2365 = vmatprep.subr.mxu0 0.0
        %2366 = vmatpush1.msra.mxu0 0.0
        %2367 = vmatprep.subr.mxu0 0.0
        %2368 = vmatpush1.msra.mxu0 0.0
        %2369 = vmatprep.subr.mxu0 0.0
        %2370 = vmatpush1.msra.mxu0 0.0
        %2371 = vmatprep.subr.mxu0 0.0
        %2372 = vmatpush1.msra.mxu0 0.0
        %2373 = vmatprep.subr.mxu0 0.0
        %2374 = vmatpush1.msra.mxu0 0.0
        %2375 = vmatprep.subr.mxu0 0.0
        %2376 = vmatpush1.msra.mxu0 0.0
        %2377 = vmatprep.subr.mxu0 0.0
        %2378 = vmatpush1.msra.mxu0 0.0
        %2379 = vmatprep.subr.mxu0 0.0
        %2380 = vmatpush1.msra.mxu0 0.0
        %2381 = vmatprep.subr.mxu0 0.0
        %2382 = vmatpush1.msra.mxu0 0.0
        %2383 = vmatprep.subr.mxu0 0.0
        %2384 = vmatpush1.msra.mxu0 0.0
        %2385 = vmatprep.subr.mxu0 0.0
        %2386 = vmatpush1.msra.mxu0 0.0
        %2387 = vmatprep.mubr.f32.mxu0 0.0
        %2388 = vmatmul.mubr.f32.gmra.mrb[0].mxu0 %v2318
        %v2389 = vpop.f32.mrb[0].mxu0
        %v2390 = vadd.f32 0.0, %v2389
        %v2391 = vpop.f32.mrb[0].mxu0
        %2392 = vmatprep.mubr.f32.mxu0 0.0
        %2393 = vmatmul.mubr.f32.gmra.mrb[0].mxu0 %v2321
        %v2394 = vpop.f32.mrb[0].mxu0
        %v2395 = vadd.f32 0.0, %v2394
        %v2396 = vpop.f32.mrb[0].mxu0
        %2397 = vdwg.mxu0
        %v2398 = vadd.f32 %v2115, %v2390
        %v2399 = vadd.f32 %v2116, %v2395
        %2400 = vrot.lane.b32.xlu0 %v697, 80
        %v2401 = vpop.permute.xlu0 %2400
        %2402 = vrot.lane.b32.xlu0 %v698, 80
        %v2403 = vpop.permute.xlu0 %2402
        %2404 = vrot.lane.b32.xlu0 %v687, 16
        %v2405 = vpop.permute.xlu0 %2404
        %2406 = vrot.lane.b32.xlu0 %v693, 16
        %v2407 = vpop.permute.xlu0 %2406
        %v2408 = vsel %vm714, %v2401, 0
        %v2410 = vsel %vm714, %v2403, 0
        %v2412 = vsel %vm714, %v2405, 0
        %v2414 = vsel %vm714, %v2407, 0
        %2416 = vmatprep.subr.mxu0 0.0
        %2417 = vmatpush1.xpose.msra.mxu0 %v2412
        %2418 = vmatprep.subr.mxu0 0.0
        %2419 = vmatpush1.xpose.msra.mxu0 %v2414
        %2420 = vmatprep.subr.mxu0 0.0
        %2421 = vmatpush1.xpose.msra.mxu0 0.0
        %2422 = vmatprep.subr.mxu0 0.0
        %2423 = vmatpush1.xpose.msra.mxu0 0.0
        %2424 = vmatprep.subr.mxu0 0.0
        %2425 = vmatpush1.xpose.msra.mxu0 0.0
        %2426 = vmatprep.subr.mxu0 0.0
        %2427 = vmatpush1.xpose.msra.mxu0 0.0
        %2428 = vmatprep.subr.mxu0 0.0
        %2429 = vmatpush1.xpose.msra.mxu0 0.0
        %2430 = vmatprep.subr.mxu0 0.0
        %2431 = vmatpush1.xpose.msra.mxu0 0.0
        %2432 = vmatprep.subr.mxu0 0.0
        %2433 = vmatpush1.xpose.msra.mxu0 0.0
        %2434 = vmatprep.subr.mxu0 0.0
        %2435 = vmatpush1.xpose.msra.mxu0 0.0
        %2436 = vmatprep.subr.mxu0 0.0
        %2437 = vmatpush1.xpose.msra.mxu0 0.0
        %2438 = vmatprep.subr.mxu0 0.0
        %2439 = vmatpush1.xpose.msra.mxu0 0.0
        %2440 = vmatprep.subr.mxu0 0.0
        %2441 = vmatpush1.xpose.msra.mxu0 0.0
        %2442 = vmatprep.subr.mxu0 0.0
        %2443 = vmatpush1.xpose.msra.mxu0 0.0
        %2444 = vmatprep.subr.mxu0 0.0
        %2445 = vmatpush1.xpose.msra.mxu0 0.0
        %2446 = vmatprep.subr.mxu0 0.0
        %2447 = vmatpush1.xpose.msra.mxu0 0.0
        %2448 = vmatprep.subr.mxu0 0.0
        %2449 = vmatpush1.xpose.msra.mxu0 0.0
        %2450 = vmatprep.subr.mxu0 0.0
        %2451 = vmatpush1.xpose.msra.mxu0 0.0
        %2452 = vmatprep.subr.mxu0 0.0
        %2453 = vmatpush1.xpose.msra.mxu0 0.0
        %2454 = vmatprep.subr.mxu0 0.0
        %2455 = vmatpush1.xpose.msra.mxu0 0.0
        %2456 = vmatprep.subr.mxu0 0.0
        %2457 = vmatpush1.xpose.msra.mxu0 0.0
        %2458 = vmatprep.subr.mxu0 0.0
        %2459 = vmatpush1.xpose.msra.mxu0 0.0
        %2460 = vmatprep.subr.mxu0 0.0
        %2461 = vmatpush1.xpose.msra.mxu0 0.0
        %2462 = vmatprep.subr.mxu0 0.0
        %2463 = vmatpush1.xpose.msra.mxu0 0.0
        %2464 = vmatprep.subr.mxu0 0.0
        %2465 = vmatpush1.xpose.msra.mxu0 0.0
        %2466 = vmatprep.subr.mxu0 0.0
        %2467 = vmatpush1.xpose.msra.mxu0 0.0
        %2468 = vmatprep.subr.mxu0 0.0
        %2469 = vmatpush1.xpose.msra.mxu0 0.0
        %2470 = vmatprep.subr.mxu0 0.0
        %2471 = vmatpush1.xpose.msra.mxu0 0.0
        %2472 = vmatprep.subr.mxu0 0.0
        %2473 = vmatpush1.xpose.msra.mxu0 0.0
        %2474 = vmatprep.subr.mxu0 0.0
        %2475 = vmatpush1.xpose.msra.mxu0 0.0
        %2476 = vmatprep.subr.mxu0 0.0
        %2477 = vmatpush1.xpose.msra.mxu0 0.0
        %2478 = vmatprep.subr.mxu0 0.0
        %2479 = vmatpush1.xpose.msra.mxu0 0.0
        %2480 = vmatprep.mubr.f32.mxu0 0.0
        %2481 = vmatmul.mubr.f32.gmra.mrb[0].mxu0 %v2408
        %v2482 = vpop.f32.mrb[0].mxu0
        %v2483 = vadd.f32 %v706, %v2482
        %v2484 = vpop.f32.mrb[0].mxu0
        %2485 = vmatprep.mubr.f32.mxu0 0.0
        %2486 = vmatmul.mubr.f32.gmra.mrb[0].mxu0 %v2410
        %v2487 = vpop.f32.mrb[0].mxu0
        %v2488 = vadd.f32 %v707, %v2487
        %v2489 = vpop.f32.mrb[0].mxu0
        %2490 = vdwg.mxu0
        %v2491 = vsel %vm800, %v2483, -inf
        %2492 = vmax.xlane.f32.xlu0 %v2491
        %v2493 = vpop.xlane.xlu0 %2492
        %v2494 = vsel %vm800, %v2488, -inf
        %2495 = vmax.xlane.f32.xlu0 %v2494
        %v2496 = vpop.xlane.xlu0 %2495
        %v2497 = vsub.f32 %v2483, %v2493
        %v2498 = vsub.f32 %v2488, %v2496
        %v2499 = vmul.f32 %v2497, 1.442695
        %v2500 = vpow.pop %v2499
        %v2501 = vmul.f32 %v2498, 1.442695
        %v2502 = vpow.pop %v2501
        %v2503 = vsel %vm800, %v2500, 0.0
        %2504 = vadd.xlane.f32.xlu0 %v2503
        %v2505 = vpop.xlane.xlu0 %2504
        %v2506 = vsel %vm800, %v2502, 0.0
        %2507 = vadd.xlane.f32.xlu0 %v2506
        %v2508 = vpop.xlane.xlu0 %2507
        %v2509 = vrcp.pop %v2505
        %v2510 = vrcp.pop %v2508
        %v2511 = vmul.f32 %v2500, %v2509
        %v2512 = vmul.f32 %v2502, %v2510
        %2513 = vrot.lane.b32.xlu0 %v689, 80
        %v2514 = vpop.permute.xlu0 %2513
        %2515 = vrot.lane.b32.xlu0 %v695, 80
        %v2516 = vpop.permute.xlu0 %2515
        %v2520 = vsel %vm800, %v2511, 0
        %v2523 = vsel %vm800, %v2512, 0
        %2525 = vmatprep.subr.mxu0 0.0
        %2526 = vmatpush1.msra.mxu0 %v2514
        %2527 = vmatprep.subr.mxu0 0.0
        %2528 = vmatpush1.msra.mxu0 %v2516
        %2529 = vmatprep.subr.mxu0 0.0
        %2530 = vmatpush1.msra.mxu0 0.0
        %2531 = vmatprep.subr.mxu0 0.0
        %2532 = vmatpush1.msra.mxu0 0.0
        %2533 = vmatprep.subr.mxu0 0.0
        %2534 = vmatpush1.msra.mxu0 0.0
        %2535 = vmatprep.subr.mxu0 0.0
        %2536 = vmatpush1.msra.mxu0 0.0
        %2537 = vmatprep.subr.mxu0 0.0
        %2538 = vmatpush1.msra.mxu0 0.0
        %2539 = vmatprep.subr.mxu0 0.0
        %2540 = vmatpush1.msra.mxu0 0.0
        %2541 = vmatprep.subr.mxu0 0.0
        %2542 = vmatpush1.msra.mxu0 0.0
        %2543 = vmatprep.subr.mxu0 0.0
        %2544 = vmatpush1.msra.mxu0 0.0
        %2545 = vmatprep.subr.mxu0 0.0
        %2546 = vmatpush1.msra.mxu0 0.0
        %2547 = vmatprep.subr.mxu0 0.0
        %2548 = vmatpush1.msra.mxu0 0.0
        %2549 = vmatprep.subr.mxu0 0.0
        %2550 = vmatpush1.msra.mxu0 0.0
        %2551 = vmatprep.subr.mxu0 0.0
        %2552 = vmatpush1.msra.mxu0 0.0
        %2553 = vmatprep.subr.mxu0 0.0
        %2554 = vmatpush1.msra.mxu0 0.0
        %2555 = vmatprep.subr.mxu0 0.0
        %2556 = vmatpush1.msra.mxu0 0.0
        %2557 = vmatprep.subr.mxu0 0.0
        %2558 = vmatpush1.msra.mxu0 0.0
        %2559 = vmatprep.subr.mxu0 0.0
        %2560 = vmatpush1.msra.mxu0 0.0
        %2561 = vmatprep.subr.mxu0 0.0
        %2562 = vmatpush1.msra.mxu0 0.0
        %2563 = vmatprep.subr.mxu0 0.0
        %2564 = vmatpush1.msra.mxu0 0.0
        %2565 = vmatprep.subr.mxu0 0.0
        %2566 = vmatpush1.msra.mxu0 0.0
        %2567 = vmatprep.subr.mxu0 0.0
        %2568 = vmatpush1.msra.mxu0 0.0
        %2569 = vmatprep.subr.mxu0 0.0
        %2570 = vmatpush1.msra.mxu0 0.0
        %2571 = vmatprep.subr.mxu0 0.0
        %2572 = vmatpush1.msra.mxu0 0.0
        %2573 = vmatprep.subr.mxu0 0.0
        %2574 = vmatpush1.msra.mxu0 0.0
        %2575 = vmatprep.subr.mxu0 0.0
        %2576 = vmatpush1.msra.mxu0 0.0
        %2577 = vmatprep.subr.mxu0 0.0
        %2578 = vmatpush1.msra.mxu0 0.0
        %2579 = vmatprep.subr.mxu0 0.0
        %2580 = vmatpush1.msra.mxu0 0.0
        %2581 = vmatprep.subr.mxu0 0.0
        %2582 = vmatpush1.msra.mxu0 0.0
        %2583 = vmatprep.subr.mxu0 0.0
        %2584 = vmatpush1.msra.mxu0 0.0
        %2585 = vmatprep.subr.mxu0 0.0
        %2586 = vmatpush1.msra.mxu0 0.0
        %2587 = vmatprep.subr.mxu0 0.0
        %2588 = vmatpush1.msra.mxu0 0.0
        %2589 = vmatprep.mubr.f32.mxu0 0.0
        %2590 = vmatmul.mubr.f32.gmra.mrb[0].mxu0 %v2520
        %v2591 = vpop.f32.mrb[0].mxu0
        %v2592 = vadd.f32 0.0, %v2591
        %v2593 = vpop.f32.mrb[0].mxu0
        %2594 = vmatprep.mubr.f32.mxu0 0.0
        %2595 = vmatmul.mubr.f32.gmra.mrb[0].mxu0 %v2523
        %v2596 = vpop.f32.mrb[0].mxu0
        %v2597 = vadd.f32 0.0, %v2596
        %v2598 = vpop.f32.mrb[0].mxu0
        %2599 = vdwg.mxu0
        %v2601 = vsel %vm714, %v2592, 0
        %v2604 = vsel %vm714, %v2597, 0
        %2606 = vmatprep.subr.mxu0 0.0
        %2607 = vmatpush1.msra.mxu0 %v545
        %2608 = vmatprep.subr.mxu0 0.0
        %2609 = vmatpush1.msra.mxu0 0.0
        %2610 = vmatprep.subr.mxu0 0.0
        %2611 = vmatpush1.msra.mxu0 0.0
        %2612 = vmatprep.subr.mxu0 0.0
        %2613 = vmatpush1.msra.mxu0 0.0
        %2614 = vmatprep.subr.mxu0 0.0
        %2615 = vmatpush1.msra.mxu0 0.0
        %2616 = vmatprep.subr.mxu0 0.0
        %2617 = vmatpush1.msra.mxu0 0.0
        %2618 = vmatprep.subr.mxu0 0.0
        %2619 = vmatpush1.msra.mxu0 0.0
        %2620 = vmatprep.subr.mxu0 0.0
        %2621 = vmatpush1.msra.mxu0 0.0
        %2622 = vmatprep.subr.mxu0 0.0
        %2623 = vmatpush1.msra.mxu0 0.0
        %2624 = vmatprep.subr.mxu0 0.0
        %2625 = vmatpush1.msra.mxu0 0.0
        %2626 = vmatprep.subr.mxu0 0.0
        %2627 = vmatpush1.msra.mxu0 0.0
        %2628 = vmatprep.subr.mxu0 0.0
        %2629 = vmatpush1.msra.mxu0 0.0
        %2630 = vmatprep.subr.mxu0 0.0
        %2631 = vmatpush1.msra.mxu0 0.0
        %2632 = vmatprep.subr.mxu0 0.0
        %2633 = vmatpush1.msra.mxu0 0.0
        %2634 = vmatprep.subr.mxu0 0.0
        %2635 = vmatpush1.msra.mxu0 0.0
        %2636 = vmatprep.subr.mxu0 0.0
        %2637 = vmatpush1.msra.mxu0 0.0
        %2638 = vmatprep.subr.mxu0 0.0
        %2639 = vmatpush1.msra.mxu0 0.0
        %2640 = vmatprep.subr.mxu0 0.0
        %2641 = vmatpush1.msra.mxu0 0.0
        %2642 = vmatprep.subr.mxu0 0.0
        %2643 = vmatpush1.msra.mxu0 0.0
        %2644 = vmatprep.subr.mxu0 0.0
        %2645 = vmatpush1.msra.mxu0 0.0
        %2646 = vmatprep.subr.mxu0 0.0
        %2647 = vmatpush1.msra.mxu0 0.0
        %2648 = vmatprep.subr.mxu0 0.0
        %2649 = vmatpush1.msra.mxu0 0.0
        %2650 = vmatprep.subr.mxu0 0.0
        %2651 = vmatpush1.msra.mxu0 0.0
        %2652 = vmatprep.subr.mxu0 0.0
        %2653 = vmatpush1.msra.mxu0 0.0
        %2654 = vmatprep.subr.mxu0 0.0
        %2655 = vmatpush1.msra.mxu0 0.0
        %2656 = vmatprep.subr.mxu0 0.0
        %2657 = vmatpush1.msra.mxu0 0.0
        %2658 = vmatprep.subr.mxu0 0.0
        %2659 = vmatpush1.msra.mxu0 0.0
        %2660 = vmatprep.subr.mxu0 0.0
        %2661 = vmatpush1.msra.mxu0 0.0
        %2662 = vmatprep.subr.mxu0 0.0
        %2663 = vmatpush1.msra.mxu0 0.0
        %2664 = vmatprep.subr.mxu0 0.0
        %2665 = vmatpush1.msra.mxu0 0.0
        %2666 = vmatprep.subr.mxu0 0.0
        %2667 = vmatpush1.msra.mxu0 0.0
        %2668 = vmatprep.subr.mxu0 0.0
        %2669 = vmatpush1.msra.mxu0 0.0
        %2670 = vmatprep.mubr.f32.mxu0 0.0
        %2671 = vmatmul.mubr.f32.gmra.mrb[0].mxu0 %v2601
        %v2672 = vpop.f32.mrb[0].mxu0
        %v2673 = vadd.f32 0.0, %v2672
        %v2674 = vpop.f32.mrb[0].mxu0
        %2675 = vmatprep.mubr.f32.mxu0 0.0
        %2676 = vmatmul.mubr.f32.gmra.mrb[0].mxu0 %v2604
        %v2677 = vpop.f32.mrb[0].mxu0
        %v2678 = vadd.f32 0.0, %v2677
        %v2679 = vpop.f32.mrb[0].mxu0
        %2680 = vdwg.mxu0
        %v2681 = vadd.f32 %v2398, %v2673
        %v2682 = vadd.f32 %v2399, %v2678
        %2683 = vrot.lane.b32.xlu0 %v697, 72
        %v2684 = vpop.permute.xlu0 %2683
        %2685 = vrot.lane.b32.xlu0 %v698, 72
        %v2686 = vpop.permute.xlu0 %2685
        %2687 = vrot.lane.b32.xlu0 %v687, 8
        %v2688 = vpop.permute.xlu0 %2687
        %2689 = vrot.lane.b32.xlu0 %v693, 8
        %v2690 = vpop.permute.xlu0 %2689
        %v2691 = vsel %vm714, %v2684, 0
        %v2693 = vsel %vm714, %v2686, 0
        %v2695 = vsel %vm714, %v2688, 0
        %v2697 = vsel %vm714, %v2690, 0
        %2699 = vmatprep.subr.mxu0 0.0
        %2700 = vmatpush1.xpose.msra.mxu0 %v2695
        %2701 = vmatprep.subr.mxu0 0.0
        %2702 = vmatpush1.xpose.msra.mxu0 %v2697
        %2703 = vmatprep.subr.mxu0 0.0
        %2704 = vmatpush1.xpose.msra.mxu0 0.0
        %2705 = vmatprep.subr.mxu0 0.0
        %2706 = vmatpush1.xpose.msra.mxu0 0.0
        %2707 = vmatprep.subr.mxu0 0.0
        %2708 = vmatpush1.xpose.msra.mxu0 0.0
        %2709 = vmatprep.subr.mxu0 0.0
        %2710 = vmatpush1.xpose.msra.mxu0 0.0
        %2711 = vmatprep.subr.mxu0 0.0
        %2712 = vmatpush1.xpose.msra.mxu0 0.0
        %2713 = vmatprep.subr.mxu0 0.0
        %2714 = vmatpush1.xpose.msra.mxu0 0.0
        %2715 = vmatprep.subr.mxu0 0.0
        %2716 = vmatpush1.xpose.msra.mxu0 0.0
        %2717 = vmatprep.subr.mxu0 0.0
        %2718 = vmatpush1.xpose.msra.mxu0 0.0
        %2719 = vmatprep.subr.mxu0 0.0
        %2720 = vmatpush1.xpose.msra.mxu0 0.0
        %2721 = vmatprep.subr.mxu0 0.0
        %2722 = vmatpush1.xpose.msra.mxu0 0.0
        %2723 = vmatprep.subr.mxu0 0.0
        %2724 = vmatpush1.xpose.msra.mxu0 0.0
        %2725 = vmatprep.subr.mxu0 0.0
        %2726 = vmatpush1.xpose.msra.mxu0 0.0
        %2727 = vmatprep.subr.mxu0 0.0
        %2728 = vmatpush1.xpose.msra.mxu0 0.0
        %2729 = vmatprep.subr.mxu0 0.0
        %2730 = vmatpush1.xpose.msra.mxu0 0.0
        %2731 = vmatprep.subr.mxu0 0.0
        %2732 = vmatpush1.xpose.msra.mxu0 0.0
        %2733 = vmatprep.subr.mxu0 0.0
        %2734 = vmatpush1.xpose.msra.mxu0 0.0
        %2735 = vmatprep.subr.mxu0 0.0
        %2736 = vmatpush1.xpose.msra.mxu0 0.0
        %2737 = vmatprep.subr.mxu0 0.0
        %2738 = vmatpush1.xpose.msra.mxu0 0.0
        %2739 = vmatprep.subr.mxu0 0.0
        %2740 = vmatpush1.xpose.msra.mxu0 0.0
        %2741 = vmatprep.subr.mxu0 0.0
        %2742 = vmatpush1.xpose.msra.mxu0 0.0
        %2743 = vmatprep.subr.mxu0 0.0
        %2744 = vmatpush1.xpose.msra.mxu0 0.0
        %2745 = vmatprep.subr.mxu0 0.0
        %2746 = vmatpush1.xpose.msra.mxu0 0.0
        %2747 = vmatprep.subr.mxu0 0.0
        %2748 = vmatpush1.xpose.msra.mxu0 0.0
        %2749 = vmatprep.subr.mxu0 0.0
        %2750 = vmatpush1.xpose.msra.mxu0 0.0
        %2751 = vmatprep.subr.mxu0 0.0
        %2752 = vmatpush1.xpose.msra.mxu0 0.0
        %2753 = vmatprep.subr.mxu0 0.0
        %2754 = vmatpush1.xpose.msra.mxu0 0.0
        %2755 = vmatprep.subr.mxu0 0.0
        %2756 = vmatpush1.xpose.msra.mxu0 0.0
        %2757 = vmatprep.subr.mxu0 0.0
        %2758 = vmatpush1.xpose.msra.mxu0 0.0
        %2759 = vmatprep.subr.mxu0 0.0
        %2760 = vmatpush1.xpose.msra.mxu0 0.0
        %2761 = vmatprep.subr.mxu0 0.0
        %2762 = vmatpush1.xpose.msra.mxu0 0.0
        %2763 = vmatprep.mubr.f32.mxu0 0.0
        %2764 = vmatmul.mubr.f32.gmra.mrb[0].mxu0 %v2691
        %v2765 = vpop.f32.mrb[0].mxu0
        %v2766 = vadd.f32 %v706, %v2765
        %v2767 = vpop.f32.mrb[0].mxu0
        %2768 = vmatprep.mubr.f32.mxu0 0.0
        %2769 = vmatmul.mubr.f32.gmra.mrb[0].mxu0 %v2693
        %v2770 = vpop.f32.mrb[0].mxu0
        %v2771 = vadd.f32 %v707, %v2770
        %v2772 = vpop.f32.mrb[0].mxu0
        %2773 = vdwg.mxu0
        %v2774 = vsel %vm800, %v2766, -inf
        %2775 = vmax.xlane.f32.xlu0 %v2774
        %v2776 = vpop.xlane.xlu0 %2775
        %v2777 = vsel %vm800, %v2771, -inf
        %2778 = vmax.xlane.f32.xlu0 %v2777
        %v2779 = vpop.xlane.xlu0 %2778
        %v2780 = vsub.f32 %v2766, %v2776
        %v2781 = vsub.f32 %v2771, %v2779
        %v2782 = vmul.f32 %v2780, 1.442695
        %v2783 = vpow.pop %v2782
        %v2784 = vmul.f32 %v2781, 1.442695
        %v2785 = vpow.pop %v2784
        %v2786 = vsel %vm800, %v2783, 0.0
        %2787 = vadd.xlane.f32.xlu0 %v2786
        %v2788 = vpop.xlane.xlu0 %2787
        %v2789 = vsel %vm800, %v2785, 0.0
        %2790 = vadd.xlane.f32.xlu0 %v2789
        %v2791 = vpop.xlane.xlu0 %2790
        %v2792 = vrcp.pop %v2788
        %v2793 = vrcp.pop %v2791
        %v2794 = vmul.f32 %v2783, %v2792
        %v2795 = vmul.f32 %v2785, %v2793
        %2796 = vrot.lane.b32.xlu0 %v689, 72
        %v2797 = vpop.permute.xlu0 %2796
        %2798 = vrot.lane.b32.xlu0 %v695, 72
        %v2799 = vpop.permute.xlu0 %2798
        %v2803 = vsel %vm800, %v2794, 0
        %v2806 = vsel %vm800, %v2795, 0
        %2808 = vmatprep.subr.mxu0 0.0
        %2809 = vmatpush1.msra.mxu0 %v2797
        %2810 = vmatprep.subr.mxu0 0.0
        %2811 = vmatpush1.msra.mxu0 %v2799
        %2812 = vmatprep.subr.mxu0 0.0
        %2813 = vmatpush1.msra.mxu0 0.0
        %2814 = vmatprep.subr.mxu0 0.0
        %2815 = vmatpush1.msra.mxu0 0.0
        %2816 = vmatprep.subr.mxu0 0.0
        %2817 = vmatpush1.msra.mxu0 0.0
        %2818 = vmatprep.subr.mxu0 0.0
        %2819 = vmatpush1.msra.mxu0 0.0
        %2820 = vmatprep.subr.mxu0 0.0
        %2821 = vmatpush1.msra.mxu0 0.0
        %2822 = vmatprep.subr.mxu0 0.0
        %2823 = vmatpush1.msra.mxu0 0.0
        %2824 = vmatprep.subr.mxu0 0.0
        %2825 = vmatpush1.msra.mxu0 0.0
        %2826 = vmatprep.subr.mxu0 0.0
        %2827 = vmatpush1.msra.mxu0 0.0
        %2828 = vmatprep.subr.mxu0 0.0
        %2829 = vmatpush1.msra.mxu0 0.0
        %2830 = vmatprep.subr.mxu0 0.0
        %2831 = vmatpush1.msra.mxu0 0.0
        %2832 = vmatprep.subr.mxu0 0.0
        %2833 = vmatpush1.msra.mxu0 0.0
        %2834 = vmatprep.subr.mxu0 0.0
        %2835 = vmatpush1.msra.mxu0 0.0
        %2836 = vmatprep.subr.mxu0 0.0
        %2837 = vmatpush1.msra.mxu0 0.0
        %2838 = vmatprep.subr.mxu0 0.0
        %2839 = vmatpush1.msra.mxu0 0.0
        %2840 = vmatprep.subr.mxu0 0.0
        %2841 = vmatpush1.msra.mxu0 0.0
        %2842 = vmatprep.subr.mxu0 0.0
        %2843 = vmatpush1.msra.mxu0 0.0
        %2844 = vmatprep.subr.mxu0 0.0
        %2845 = vmatpush1.msra.mxu0 0.0
        %2846 = vmatprep.subr.mxu0 0.0
        %2847 = vmatpush1.msra.mxu0 0.0
        %2848 = vmatprep.subr.mxu0 0.0
        %2849 = vmatpush1.msra.mxu0 0.0
        %2850 = vmatprep.subr.mxu0 0.0
        %2851 = vmatpush1.msra.mxu0 0.0
        %2852 = vmatprep.subr.mxu0 0.0
        %2853 = vmatpush1.msra.mxu0 0.0
        %2854 = vmatprep.subr.mxu0 0.0
        %2855 = vmatpush1.msra.mxu0 0.0
        %2856 = vmatprep.subr.mxu0 0.0
        %2857 = vmatpush1.msra.mxu0 0.0
        %2858 = vmatprep.subr.mxu0 0.0
        %2859 = vmatpush1.msra.mxu0 0.0
        %2860 = vmatprep.subr.mxu0 0.0
        %2861 = vmatpush1.msra.mxu0 0.0
        %2862 = vmatprep.subr.mxu0 0.0
        %2863 = vmatpush1.msra.mxu0 0.0
        %2864 = vmatprep.subr.mxu0 0.0
        %2865 = vmatpush1.msra.mxu0 0.0
        %2866 = vmatprep.subr.mxu0 0.0
        %2867 = vmatpush1.msra.mxu0 0.0
        %2868 = vmatprep.subr.mxu0 0.0
        %2869 = vmatpush1.msra.mxu0 0.0
        %2870 = vmatprep.subr.mxu0 0.0
        %2871 = vmatpush1.msra.mxu0 0.0
        %2872 = vmatprep.mubr.f32.mxu0 0.0
        %2873 = vmatmul.mubr.f32.gmra.mrb[0].mxu0 %v2803
        %v2874 = vpop.f32.mrb[0].mxu0
        %v2875 = vadd.f32 0.0, %v2874
        %v2876 = vpop.f32.mrb[0].mxu0
        %2877 = vmatprep.mubr.f32.mxu0 0.0
        %2878 = vmatmul.mubr.f32.gmra.mrb[0].mxu0 %v2806
        %v2879 = vpop.f32.mrb[0].mxu0
        %v2880 = vadd.f32 0.0, %v2879
        %v2881 = vpop.f32.mrb[0].mxu0
        %2882 = vdwg.mxu0
        %v2884 = vsel %vm714, %v2875, 0
        %v2887 = vsel %vm714, %v2880, 0
        %2889 = vmatprep.subr.mxu0 0.0
        %2890 = vmatpush1.msra.mxu0 %v546
        %2891 = vmatprep.subr.mxu0 0.0
        %2892 = vmatpush1.msra.mxu0 0.0
        %2893 = vmatprep.subr.mxu0 0.0
        %2894 = vmatpush1.msra.mxu0 0.0
        %2895 = vmatprep.subr.mxu0 0.0
        %2896 = vmatpush1.msra.mxu0 0.0
        %2897 = vmatprep.subr.mxu0 0.0
        %2898 = vmatpush1.msra.mxu0 0.0
        %2899 = vmatprep.subr.mxu0 0.0
        %2900 = vmatpush1.msra.mxu0 0.0
        %2901 = vmatprep.subr.mxu0 0.0
        %2902 = vmatpush1.msra.mxu0 0.0
        %2903 = vmatprep.subr.mxu0 0.0
        %2904 = vmatpush1.msra.mxu0 0.0
        %2905 = vmatprep.subr.mxu0 0.0
        %2906 = vmatpush1.msra.mxu0 0.0
        %2907 = vmatprep.subr.mxu0 0.0
        %2908 = vmatpush1.msra.mxu0 0.0
        %2909 = vmatprep.subr.mxu0 0.0
        %2910 = vmatpush1.msra.mxu0 0.0
        %2911 = vmatprep.subr.mxu0 0.0
        %2912 = vmatpush1.msra.mxu0 0.0
        %2913 = vmatprep.subr.mxu0 0.0
        %2914 = vmatpush1.msra.mxu0 0.0
        %2915 = vmatprep.subr.mxu0 0.0
        %2916 = vmatpush1.msra.mxu0 0.0
        %2917 = vmatprep.subr.mxu0 0.0
        %2918 = vmatpush1.msra.mxu0 0.0
        %2919 = vmatprep.subr.mxu0 0.0
        %2920 = vmatpush1.msra.mxu0 0.0
        %2921 = vmatprep.subr.mxu0 0.0
        %2922 = vmatpush1.msra.mxu0 0.0
        %2923 = vmatprep.subr.mxu0 0.0
        %2924 = vmatpush1.msra.mxu0 0.0
        %2925 = vmatprep.subr.mxu0 0.0
        %2926 = vmatpush1.msra.mxu0 0.0
        %2927 = vmatprep.subr.mxu0 0.0
        %2928 = vmatpush1.msra.mxu0 0.0
        %2929 = vmatprep.subr.mxu0 0.0
        %2930 = vmatpush1.msra.mxu0 0.0
        %2931 = vmatprep.subr.mxu0 0.0
        %2932 = vmatpush1.msra.mxu0 0.0
        %2933 = vmatprep.subr.mxu0 0.0
        %2934 = vmatpush1.msra.mxu0 0.0
        %2935 = vmatprep.subr.mxu0 0.0
        %2936 = vmatpush1.msra.mxu0 0.0
        %2937 = vmatprep.subr.mxu0 0.0
        %2938 = vmatpush1.msra.mxu0 0.0
        %2939 = vmatprep.subr.mxu0 0.0
        %2940 = vmatpush1.msra.mxu0 0.0
        %2941 = vmatprep.subr.mxu0 0.0
        %2942 = vmatpush1.msra.mxu0 0.0
        %2943 = vmatprep.subr.mxu0 0.0
        %2944 = vmatpush1.msra.mxu0 0.0
        %2945 = vmatprep.subr.mxu0 0.0
        %2946 = vmatpush1.msra.mxu0 0.0
        %2947 = vmatprep.subr.mxu0 0.0
        %2948 = vmatpush1.msra.mxu0 0.0
        %2949 = vmatprep.subr.mxu0 0.0
        %2950 = vmatpush1.msra.mxu0 0.0
        %2951 = vmatprep.subr.mxu0 0.0
        %2952 = vmatpush1.msra.mxu0 0.0
        %2953 = vmatprep.mubr.f32.mxu0 0.0
        %2954 = vmatmul.mubr.f32.gmra.mrb[0].mxu0 %v2884
        %v2955 = vpop.f32.mrb[0].mxu0
        %v2956 = vadd.f32 0.0, %v2955
        %v2957 = vpop.f32.mrb[0].mxu0
        %2958 = vmatprep.mubr.f32.mxu0 0.0
        %2959 = vmatmul.mubr.f32.gmra.mrb[0].mxu0 %v2887
        %v2960 = vpop.f32.mrb[0].mxu0
        %v2961 = vadd.f32 0.0, %v2960
        %v2962 = vpop.f32.mrb[0].mxu0
        %2963 = vdwg.mxu0
        %v2964 = vadd.f32 %v2681, %v2956
        %v2965 = vadd.f32 %v2682, %v2961
        %v2967 = vlaneseq
        %v2968 = vshrl.u32 %v2967, 7
        %v2969 = vsub.s32 0, %v2968
        %v2970 = vrot.slane %v547, %v2969
        %v2972 = vadd.f32 %v2964, %v2970
        %v2973 = vadd.f32 %v2965, %v2970
        %v2974 = vadd.f32 %v520, %v2972
        %v2975 = vadd.f32 %v521, %v2973
        %v2976 = vsel %vm613, %v2974, 0.0
        %2977 = vadd.xlane.f32.xlu0 %v2976
        %v2978 = vpop.xlane.xlu0 %2977
        %v2979 = vsel %vm613, %v2975, 0.0
        %2980 = vadd.xlane.f32.xlu0 %v2979
        %v2981 = vpop.xlane.xlu0 %2980
        %v2982 = vrcp.pop 64.0
        %v2983 = vmul.f32 %v2978, %v2982
        %v2984 = vmul.f32 %v2981, %v2982
        %v2985 = vsub.f32 %v2974, %v2983
        %v2986 = vsub.f32 %v2975, %v2984
        %v2987 = vmul.f32 %v2985, %v2985
        %v2988 = vmul.f32 %v2986, %v2986
        %v2989 = vsel %vm613, %v2987, 0.0
        %2990 = vadd.xlane.f32.xlu0 %v2989
        %v2991 = vpop.xlane.xlu0 %2990
        %v2992 = vsel %vm613, %v2988, 0.0
        %2993 = vadd.xlane.f32.xlu0 %v2992
        %v2994 = vpop.xlane.xlu0 %2993
        %v2995 = vmul.f32 %v2991, %v2982
        %v2996 = vmul.f32 %v2994, %v2982
        %v2997 = vadd.f32 %v2995, 1e-05
        %v2998 = vadd.f32 %v2996, 1e-05
        %v2999 = vrsqrt.pop %v2997
        %v3000 = vrsqrt.pop %v2998
        %v3001 = vmul.f32 %v2985, %v2999
        %v3002 = vmul.f32 %v2986, %v3000
        %v3004 = vlaneseq
        %v3005 = vshrl.u32 %v3004, 7
        %v3006 = vsub.s32 0, %v3005
        %v3007 = vrot.slane %v548, %v3006
        %v3009 = vmul.f32 %v3001, %v3007
        %v3010 = vmul.f32 %v3002, %v3007
        %v3012 = vlaneseq
        %v3013 = vshrl.u32 %v3012, 7
        %v3014 = vsub.s32 0, %v3013
        %v3015 = vrot.slane %v549, %v3014
        %v3017 = vadd.f32 %v3009, %v3015
        %v3018 = vadd.f32 %v3010, %v3015
        %v3020 = vlaneseq
        %v3021 = vshrl.u32 %v3020, 7
        %v3022 = vsub.s32 0, %v3021
        %v3023 = vrot.slane %v566, %v3022
        %v3024 = vlaneseq
        %v3025 = vshrl.u32 %v3024, 7
        %v3026 = vsub.s32 1, %v3025
        %v3027 = vrot.slane %v566, %v3026
        %v3031 = vsel %vm613, %v3017, 0
        %v3034 = vsel %vm613, %v3018, 0
        %3036 = vmatprep.subr.mxu0 %v551
        %3037 = vmatpush1.msra.mxu0 %v550
        %3038 = vmatprep.subr.mxu0 %v553
        %3039 = vmatpush1.msra.mxu0 %v552
        %3040 = vmatprep.subr.mxu0 %v555
        %3041 = vmatpush1.msra.mxu0 %v554
        %3042 = vmatprep.subr.mxu0 %v557
        %3043 = vmatpush1.msra.mxu0 %v556
        %3044 = vmatprep.subr.mxu0 %v559
        %3045 = vmatpush1.msra.mxu0 %v558
        %3046 = vmatprep.subr.mxu0 %v561
        %3047 = vmatpush1.msra.mxu0 %v560
        %3048 = vmatprep.subr.mxu0 %v563
        %3049 = vmatpush1.msra.mxu0 %v562
        %3050 = vmatprep.subr.mxu0 %v565
        %3051 = vmatpush1.msra.mxu0 %v564
        %3052 = vmatprep.subr.mxu0 0.0
        %3053 = vmatpush1.msra.mxu0 0.0
        %3054 = vmatprep.subr.mxu0 0.0
        %3055 = vmatpush1.msra.mxu0 0.0
        %3056 = vmatprep.subr.mxu0 0.0
        %3057 = vmatpush1.msra.mxu0 0.0
        %3058 = vmatprep.subr.mxu0 0.0
        %3059 = vmatpush1.msra.mxu0 0.0
        %3060 = vmatprep.subr.mxu0 0.0
        %3061 = vmatpush1.msra.mxu0 0.0
        %3062 = vmatprep.subr.mxu0 0.0
        %3063 = vmatpush1.msra.mxu0 0.0
        %3064 = vmatprep.subr.mxu0 0.0
        %3065 = vmatpush1.msra.mxu0 0.0
        %3066 = vmatprep.subr.mxu0 0.0
        %3067 = vmatpush1.msra.mxu0 0.0
        %3068 = vmatprep.subr.mxu0 0.0
        %3069 = vmatpush1.msra.mxu0 0.0
        %3070 = vmatprep.subr.mxu0 0.0
        %3071 = vmatpush1.msra.mxu0 0.0
        %3072 = vmatprep.subr.mxu0 0.0
        %3073 = vmatpush1.msra.mxu0 0.0
        %3074 = vmatprep.subr.mxu0 0.0
        %3075 = vmatpush1.msra.mxu0 0.0
        %3076 = vmatprep.subr.mxu0 0.0
        %3077 = vmatpush1.msra.mxu0 0.0
        %3078 = vmatprep.subr.mxu0 0.0
        %3079 = vmatpush1.msra.mxu0 0.0
        %3080 = vmatprep.subr.mxu0 0.0
        %3081 = vmatpush1.msra.mxu0 0.0
        %3082 = vmatprep.subr.mxu0 0.0
        %3083 = vmatpush1.msra.mxu0 0.0
        %3084 = vmatprep.subr.mxu0 0.0
        %3085 = vmatpush1.msra.mxu0 0.0
        %3086 = vmatprep.subr.mxu0 0.0
        %3087 = vmatpush1.msra.mxu0 0.0
        %3088 = vmatprep.subr.mxu0 0.0
        %3089 = vmatpush1.msra.mxu0 0.0
        %3090 = vmatprep.subr.mxu0 0.0
        %3091 = vmatpush1.msra.mxu0 0.0
        %3092 = vmatprep.subr.mxu0 0.0
        %3093 = vmatpush1.msra.mxu0 0.0
        %3094 = vmatprep.subr.mxu0 0.0
        %3095 = vmatpush1.msra.mxu0 0.0
        %3096 = vmatprep.subr.mxu0 0.0
        %3097 = vmatpush1.msra.mxu0 0.0
        %3098 = vmatprep.subr.mxu0 0.0
        %3099 = vmatpush1.msra.mxu0 0.0
        %3100 = vmatprep.mubr.f32.mxu0 0.0
        %3101 = vmatmul.mubr.f32.gmra.mrb[0].mxu0 %v3031
        %v3102 = vpop.f32.mrb[0].mxu0
        %v3103 = vadd.f32 %v3023, %v3102
        %v3104 = vpop.f32.mrb[0].mxu0
        %v3105 = vadd.f32 %v3027, %v3104
        %3106 = vmatprep.mubr.f32.mxu0 0.0
        %3107 = vmatmul.mubr.f32.gmra.mrb[0].mxu0 %v3034
        %v3108 = vpop.f32.mrb[0].mxu0
        %v3109 = vadd.f32 %v3023, %v3108
        %v3110 = vpop.f32.mrb[0].mxu0
        %v3111 = vadd.f32 %v3027, %v3110
        %3112 = vdwg.mxu0
        %v3113 = vmax.f32 %v3103, 0.0
        %v3114 = vmax.f32 %v3105, 0.0
        %v3115 = vmax.f32 %v3109, 0.0
        %v3116 = vmax.f32 %v3111, 0.0
        %3117 = vmatprep.subr.mxu0 0.0
        %3118 = vmatpush1.msra.mxu0 %v567
        %3119 = vmatprep.subr.mxu0 0.0
        %3120 = vmatpush1.msra.mxu0 %v568
        %3121 = vmatprep.subr.mxu0 0.0
        %3122 = vmatpush1.msra.mxu0 %v569
        %3123 = vmatprep.subr.mxu0 0.0
        %3124 = vmatpush1.msra.mxu0 %v570
        %3125 = vmatprep.subr.mxu0 0.0
        %3126 = vmatpush1.msra.mxu0 %v571
        %3127 = vmatprep.subr.mxu0 0.0
        %3128 = vmatpush1.msra.mxu0 %v572
        %3129 = vmatprep.subr.mxu0 0.0
        %3130 = vmatpush1.msra.mxu0 %v573
        %3131 = vmatprep.subr.mxu0 0.0
        %3132 = vmatpush1.msra.mxu0 %v574
        %3133 = vmatprep.subr.mxu0 0.0
        %3134 = vmatpush1.msra.mxu0 %v575
        %3135 = vmatprep.subr.mxu0 0.0
        %3136 = vmatpush1.msra.mxu0 %v576
        %3137 = vmatprep.subr.mxu0 0.0
        %3138 = vmatpush1.msra.mxu0 %v577
        %3139 = vmatprep.subr.mxu0 0.0
        %3140 = vmatpush1.msra.mxu0 %v578
        %3141 = vmatprep.subr.mxu0 0.0
        %3142 = vmatpush1.msra.mxu0 %v579
        %3143 = vmatprep.subr.mxu0 0.0
        %3144 = vmatpush1.msra.mxu0 %v580
        %3145 = vmatprep.subr.mxu0 0.0
        %3146 = vmatpush1.msra.mxu0 %v581
        %3147 = vmatprep.subr.mxu0 0.0
        %3148 = vmatpush1.msra.mxu0 %v582
        %3149 = vmatprep.subr.mxu0 0.0
        %3150 = vmatpush1.msra.mxu0 %v583
        %3151 = vmatprep.subr.mxu0 0.0
        %3152 = vmatpush1.msra.mxu0 %v584
        %3153 = vmatprep.subr.mxu0 0.0
        %3154 = vmatpush1.msra.mxu0 %v585
        %3155 = vmatprep.subr.mxu0 0.0
        %3156 = vmatpush1.msra.mxu0 %v586
        %3157 = vmatprep.subr.mxu0 0.0
        %3158 = vmatpush1.msra.mxu0 %v587
        %3159 = vmatprep.subr.mxu0 0.0
        %3160 = vmatpush1.msra.mxu0 %v588
        %3161 = vmatprep.subr.mxu0 0.0
        %3162 = vmatpush1.msra.mxu0 %v589
        %3163 = vmatprep.subr.mxu0 0.0
        %3164 = vmatpush1.msra.mxu0 %v590
        %3165 = vmatprep.subr.mxu0 0.0
        %3166 = vmatpush1.msra.mxu0 %v591
        %3167 = vmatprep.subr.mxu0 0.0
        %3168 = vmatpush1.msra.mxu0 %v592
        %3169 = vmatprep.subr.mxu0 0.0
        %3170 = vmatpush1.msra.mxu0 %v593
        %3171 = vmatprep.subr.mxu0 0.0
        %3172 = vmatpush1.msra.mxu0 %v594
        %3173 = vmatprep.subr.mxu0 0.0
        %3174 = vmatpush1.msra.mxu0 %v595
        %3175 = vmatprep.subr.mxu0 0.0
        %3176 = vmatpush1.msra.mxu0 %v596
        %3177 = vmatprep.subr.mxu0 0.0
        %3178 = vmatpush1.msra.mxu0 %v597
        %3179 = vmatprep.subr.mxu0 0.0
        %3180 = vmatpush1.msra.mxu0 %v598
        %3181 = vmatprep.mubr.f32.mxu0 %v3114
        %3182 = vmatmul.mubr.f32.gmra.mrb[0].mxu0 %v3113
        %v3183 = vpop.f32.mrb[0].mxu0
        %v3184 = vadd.f32 0.0, %v3183
        %v3185 = vpop.f32.mrb[0].mxu0
        %3186 = vmatprep.mubr.f32.mxu0 %v3116
        %3187 = vmatmul.mubr.f32.gmra.mrb[0].mxu0 %v3115
        %v3188 = vpop.f32.mrb[0].mxu0
        %v3189 = vadd.f32 0.0, %v3188
        %v3190 = vpop.f32.mrb[0].mxu0
        %3191 = vdwg.mxu0
        %v3192 = vadd.f32 %v3017, %v3184
        %v3193 = vadd.f32 %v3018, %v3189
        %v3195 = vlaneseq
        %v3196 = vshrl.u32 %v3195, 7
        %v3197 = vsub.s32 0, %v3196
        %v3198 = vrot.slane %v599, %v3197
        %v3200 = vadd.f32 %v3192, %v3198
        %v3201 = vadd.f32 %v3193, %v3198
        %v3202 = vsel %vm613, %v3200, 0.0
        %3203 = vadd.xlane.f32.xlu0 %v3202
        %v3204 = vpop.xlane.xlu0 %3203
        %v3205 = vsel %vm613, %v3201, 0.0
        %3206 = vadd.xlane.f32.xlu0 %v3205
        %v3207 = vpop.xlane.xlu0 %3206
        %v3208 = vmul.f32 %v3204, %v2982
        %v3209 = vmul.f32 %v3207, %v2982
        %v3210 = vsub.f32 %v3200, %v3208
        %v3211 = vsub.f32 %v3201, %v3209
        %v3212 = vmul.f32 %v3210, %v3210
        %v3213 = vmul.f32 %v3211, %v3211
        %v3214 = vsel %vm613, %v3212, 0.0
        %3215 = vadd.xlane.f32.xlu0 %v3214
        %v3216 = vpop.xlane.xlu0 %3215
        %v3217 = vsel %vm613, %v3213, 0.0
        %3218 = vadd.xlane.f32.xlu0 %v3217
        %v3219 = vpop.xlane.xlu0 %3218
        %v3220 = vmul.f32 %v3216, %v2982
        %v3221 = vmul.f32 %v3219, %v2982
        %v3222 = vadd.f32 %v3220, 1e-05
        %v3223 = vadd.f32 %v3221, 1e-05
        %v3224 = vrsqrt.pop %v3222
        %v3225 = vrsqrt.pop %v3223
        %v3226 = vmul.f32 %v3210, %v3224
        %v3227 = vmul.f32 %v3211, %v3225
        %v3229 = vlaneseq
        %v3230 = vshrl.u32 %v3229, 7
        %v3231 = vsub.s32 0, %v3230
        %v3232 = vrot.slane %v600, %v3231
        %v3234 = vmul.f32 %v3226, %v3232
        %v3235 = vmul.f32 %v3227, %v3232
        %v3237 = vlaneseq
        %v3238 = vshrl.u32 %v3237, 7
        %v3239 = vsub.s32 0, %v3238
        %v3240 = vrot.slane %v601, %v3239
        %v3242 = vadd.f32 %v3234, %v3240
        %v3243 = vadd.f32 %v3235, %v3240
        %v3244 = vld [vmem:[%s13] sm:$0x1]
        %v3245 = vld [vmem:[%s14] sm:$0x1]
        %v3246 = vsel %vm613, %v3242, 0.0
        %3247 = vadd.xlane.f32.xlu0 %v3246
        %v3248 = vpop.xlane.xlu0 %3247
        %v3249 = vsel %vm613, %v3243, 0.0
        %3250 = vadd.xlane.f32.xlu0 %v3249
        %v3251 = vpop.xlane.xlu0 %3250
        %v3252 = vmul.f32 %v3248, %v2982
        %v3253 = vmul.f32 %v3251, %v2982
        %v3254 = vsub.f32 %v3242, %v3252
        %v3255 = vsub.f32 %v3243, %v3253
        %v3256 = vmul.f32 %v3254, %v3254
        %v3257 = vmul.f32 %v3255, %v3255
        %v3258 = vsel %vm613, %v3256, 0.0
        %3259 = vadd.xlane.f32.xlu0 %v3258
        %v3260 = vpop.xlane.xlu0 %3259
        %v3261 = vsel %vm613, %v3257, 0.0
        %3262 = vadd.xlane.f32.xlu0 %v3261
        %v3263 = vpop.xlane.xlu0 %3262
        %v3264 = vmul.f32 %v3260, %v2982
        %v3265 = vmul.f32 %v3263, %v2982
        %v3266 = vadd.f32 %v3264, 1e-05
        %v3267 = vadd.f32 %v3265, 1e-05
        %v3268 = vrsqrt.pop %v3266
        %v3269 = vrsqrt.pop %v3267
        %v3270 = vmul.f32 %v3254, %v3268
        %v3271 = vmul.f32 %v3255, %v3269
        %v3273 = vlaneseq
        %v3274 = vshrl.u32 %v3273, 7
        %v3275 = vsub.s32 0, %v3274
        %v3276 = vrot.slane %v3244, %v3275
        %v3278 = vmul.f32 %v3270, %v3276
        %v3279 = vmul.f32 %v3271, %v3276
        %v3281 = vlaneseq
        %v3282 = vshrl.u32 %v3281, 7
        %v3283 = vsub.s32 0, %v3282
        %v3284 = vrot.slane %v3245, %v3283
        %v3286 = vadd.f32 %v3278, %v3284
        %v3287 = vadd.f32 %v3279, %v3284
        %v3288 = vld [vmem:[%s15] sm:$0xff]
        %v3289 = vld [vmem:[%s15 + $0x8] sm:$0xff]
        %v3290 = vld [vmem:[%s15 + $0x10] sm:$0xff]
        %v3291 = vld [vmem:[%s15 + $0x18] sm:$0xff]
        %v3292 = vld [vmem:[%s15 + $0x20] sm:$0xff]
        %v3293 = vld [vmem:[%s15 + $0x28] sm:$0xff]
        %v3294 = vld [vmem:[%s15 + $0x30] sm:$0xff]
        %v3295 = vld [vmem:[%s15 + $0x38] sm:$0xff]
        %v3296 = vld [vmem:[%s15 + $0x40] sm:$0xff]
        %v3297 = vld [vmem:[%s15 + $0x48] sm:$0xff]
        %v3298 = vld [vmem:[%s15 + $0x50] sm:$0xff]
        %v3299 = vld [vmem:[%s15 + $0x58] sm:$0xff]
        %v3300 = vld [vmem:[%s15 + $0x60] sm:$0xff]
        %v3301 = vld [vmem:[%s15 + $0x68] sm:$0xff]
        %v3302 = vld [vmem:[%s15 + $0x70] sm:$0xff]
        %v3303 = vld [vmem:[%s15 + $0x78] sm:$0xff]
        %v3305 = vsel %vm613, %v3286, 0
        %v3308 = vsel %vm613, %v3287, 0
        %3310 = vmatprep.subr.mxu0 %v3289
        %3311 = vmatpush1.msra.mxu0 %v3288
        %3312 = vmatprep.subr.mxu0 %v3291
        %3313 = vmatpush1.msra.mxu0 %v3290
        %3314 = vmatprep.subr.mxu0 %v3293
        %3315 = vmatpush1.msra.mxu0 %v3292
        %3316 = vmatprep.subr.mxu0 %v3295
        %3317 = vmatpush1.msra.mxu0 %v3294
        %3318 = vmatprep.subr.mxu0 %v3297
        %3319 = vmatpush1.msra.mxu0 %v3296
        %3320 = vmatprep.subr.mxu0 %v3299
        %3321 = vmatpush1.msra.mxu0 %v3298
        %3322 = vmatprep.subr.mxu0 %v3301
        %3323 = vmatpush1.msra.mxu0 %v3300
        %3324 = vmatprep.subr.mxu0 %v3303
        %3325 = vmatpush1.msra.mxu0 %v3302
        %3326 = vmatprep.subr.mxu0 0.0
        %3327 = vmatpush1.msra.mxu0 0.0
        %3328 = vmatprep.subr.mxu0 0.0
        %3329 = vmatpush1.msra.mxu0 0.0
        %3330 = vmatprep.subr.mxu0 0.0
        %3331 = vmatpush1.msra.mxu0 0.0
        %3332 = vmatprep.subr.mxu0 0.0
        %3333 = vmatpush1.msra.mxu0 0.0
        %3334 = vmatprep.subr.mxu0 0.0
        %3335 = vmatpush1.msra.mxu0 0.0
        %3336 = vmatprep.subr.mxu0 0.0
        %3337 = vmatpush1.msra.mxu0 0.0
        %3338 = vmatprep.subr.mxu0 0.0
        %3339 = vmatpush1.msra.mxu0 0.0
        %3340 = vmatprep.subr.mxu0 0.0
        %3341 = vmatpush1.msra.mxu0 0.0
        %3342 = vmatprep.subr.mxu0 0.0
        %3343 = vmatpush1.msra.mxu0 0.0
        %3344 = vmatprep.subr.mxu0 0.0
        %3345 = vmatpush1.msra.mxu0 0.0
        %3346 = vmatprep.subr.mxu0 0.0
        %3347 = vmatpush1.msra.mxu0 0.0
        %3348 = vmatprep.subr.mxu0 0.0
        %3349 = vmatpush1.msra.mxu0 0.0
        %3350 = vmatprep.subr.mxu0 0.0
        %3351 = vmatpush1.msra.mxu0 0.0
        %3352 = vmatprep.subr.mxu0 0.0
        %3353 = vmatpush1.msra.mxu0 0.0
        %3354 = vmatprep.subr.mxu0 0.0
        %3355 = vmatpush1.msra.mxu0 0.0
        %3356 = vmatprep.subr.mxu0 0.0
        %3357 = vmatpush1.msra.mxu0 0.0
        %3358 = vmatprep.subr.mxu0 0.0
        %3359 = vmatpush1.msra.mxu0 0.0
        %3360 = vmatprep.subr.mxu0 0.0
        %3361 = vmatpush1.msra.mxu0 0.0
        %3362 = vmatprep.subr.mxu0 0.0
        %3363 = vmatpush1.msra.mxu0 0.0
        %3364 = vmatprep.subr.mxu0 0.0
        %3365 = vmatpush1.msra.mxu0 0.0
        %3366 = vmatprep.subr.mxu0 0.0
        %3367 = vmatpush1.msra.mxu0 0.0
        %3368 = vmatprep.subr.mxu0 0.0
        %3369 = vmatpush1.msra.mxu0 0.0
        %3370 = vmatprep.subr.mxu0 0.0
        %3371 = vmatpush1.msra.mxu0 0.0
        %3372 = vmatprep.subr.mxu0 0.0
        %3373 = vmatpush1.msra.mxu0 0.0
        %3374 = vmatprep.mubr.f32.mxu0 0.0
        %3375 = vmatmul.mubr.f32.gmra.mrb[0].mxu0 %v3305
        %v3376 = vpop.f32.mrb[0].mxu0
        %v3377 = vadd.f32 0.0, %v3376
        %v3378 = vpop.f32.mrb[0].mxu0
        %v3379 = vadd.f32 0.0, %v3378
        %3380 = vmatprep.mubr.f32.mxu0 0.0
        %3381 = vmatmul.mubr.f32.gmra.mrb[0].mxu0 %v3308
        %v3382 = vpop.f32.mrb[0].mxu0
        %v3383 = vadd.f32 0.0, %v3382
        %v3384 = vpop.f32.mrb[0].mxu0
        %v3385 = vadd.f32 0.0, %v3384
        %3386 = vdwg.mxu0
        %3387 = vst [vmem:[%s514] sm:$0xff] %v3377
        %3388 = vst [vmem:[%s514 + $0x8] sm:$0xff] %v3379
        %3389 = vst [vmem:[%s514 + $0x10] sm:$0xff] %v3383
        %3390 = vst [vmem:[%s514 + $0x18] sm:$0xff] %v3385
        %s3391 = sand.u32 %s379, 1
        %s3392 = scalar_lea.sflag [#allocation3], %s3391
        %s3393 = sand.u32 %s379, 1
        %s3394 = smul.addr %s3393, 32
        %s3395 = scalar_lea.vmem [#allocation2], %s3394
        // Predicated region
        $region85: #{babyjoey_forward.1} parent=83 // pred_check
          %p3396 = pneg %p389
        $region86: #{babyjoey_forward.1} parent=83 // pred_check_branch
          %3398 = sbr.rel (%p3396) target = $region88
        $region87: #{babyjoey_forward.1} parent=83 // pred_region
          %s3400 = ssub.s32 512, 512
          %3401 = vsyncadd %s3392, %s3400
          %s3402 = smul.addr %s30, 4
          %s3403 = smul.addr %s3402, 128
          %s3404 = scalar_lea.hbm %s16, %s3403
          %s3405 = sshll.u32 %s3395, 4
          %s3406 = int_to_ptr.vmem [resolvable:$true] %s3405
          %3411 = dma.vmem_to_hbm [thread:$0]  %s3406, 512, %s3404, %s3392, 256, 256, 16
        $region88: #{babyjoey_forward.1} parent=83 // pred_fallthru
          _
      $region84: #{babyjoey_forward.1} parent=5 // pred_fallthru
        _
      %p3412 = scmp.le.s32.totalorder 2, %s25
      // Predicated region
      $region89: #{babyjoey_forward.1} parent=5 // pred_check
        %p3413 = pneg %p3412
      $region90: #{babyjoey_forward.1} parent=5 // pred_check_branch
        %3415 = sbr.rel (%p3413) target = $region92
      $region91: #{babyjoey_forward.1} parent=5 // pred_region
        %s3416 = ssub.s32 %s25, 2
        // Predicated region
        $region93: #{babyjoey_forward.1} parent=91 // pred_check
          %p3417 = pneg %p395
        $region94: #{babyjoey_forward.1} parent=91 // pred_check_branch
          %3419 = sbr.rel (%p3417) target = $region96
        $region95: #{babyjoey_forward.1} parent=91 // pred_region
          %s3420 = sand.u32 %s380, 1
          %s3421 = scalar_lea.sflag [#allocation3], %s3420
          %s3422 = sand.u32 %s380, 1
          %s3423 = smul.addr %s3422, 32
          %s3424 = scalar_lea.vmem [#allocation2], %s3423
          %3425 = dma.done %s3421, 512
        $region96: #{babyjoey_forward.1} parent=91 // pred_fallthru
          _
      $region92: #{babyjoey_forward.1} parent=5 // pred_fallthru
        _
    $region6: #{babyjoey_forward.1} parent=1 // loop_footer
      %s29 = sadd.s32 1, %s25
    $region7: #{babyjoey_forward.1} parent=1 // loop_footer_branch
      %24 = sbr.rel target = $region3
    $region8: #{babyjoey_forward.1} parent=1 // loop_exit
      _
    %3426 = vsyncpa [#allocation3], 1
    %s3427 = scalar_lea.sflag [#allocation3], 1
    %3428 = vsyncpa %s3427, 1

</llo_original>
